<compile_context>
chip_gen: v7x
topology: tpu7x:2x2x1
jax: 0.10.0
libtpu: 0.0.40
codegen_flags: <defaults>
</compile_context>

<pallas_src>
import functools

import numpy as np
import jax
import jax.numpy as jnp
from jax.experimental import pallas as pl
from jax.experimental.pallas import tpu as pltpu


# ----------------------------------------------------------------------------
# Gaussian window helpers (match kornia/torch get_gaussian_kernel2d semantics).
# ----------------------------------------------------------------------------
def _gaussian_kernel_1d(window_size: int, sigma: float) -> np.ndarray:
    assert window_size % 2 == 1, "window_size must be odd"
    x = np.arange(window_size, dtype=np.float64) - window_size // 2
    g = np.exp(-(x ** 2) / (2.0 * sigma ** 2))
    g = g / g.sum()
    return g.astype(np.float32)


def _band_matrix(n: int, taps: np.ndarray) -> np.ndarray:
    """Banded matrix B with B[m, j] = taps[m - j + r].

    `z @ B` equals the zero-padded 1-D cross-correlation of each row of z with
    `taps` (identical to F.conv2d(..., padding=(ws-1)//2) along that axis)."""
    ws = taps.shape[0]
    r = (ws - 1) // 2
    b = np.zeros((n, n), dtype=np.float32)
    for j in range(n):
        for t in range(ws):
            m = j + t - r
            if 0 <= m < n:
                b[m, j] = taps[t]
    return b


def _round_up(x: int, m: int) -> int:
    return (x + m - 1) // m * m


# ----------------------------------------------------------------------------
# Pallas kernel
# ----------------------------------------------------------------------------
def _ssim_kernel(x_ref, y_ref, gh_ref, gw_ref, out_ref, *, cb, c1, c2,
                 conv_dtype):
    # Banded Gaussian matrices stay resident in VMEM (constant index_map).
    gh = gh_ref[...].astype(conv_dtype)
    gw = gw_ref[...].astype(conv_dtype)

    def gconv(z):
        # Separable zero-padded Gaussian filter: two MXU matmuls, f32 accumulate.
        hz = jnp.dot(z.astype(conv_dtype), gw, preferred_element_type=jnp.float32)
        return jnp.dot(gh, hz.astype(conv_dtype), preferred_element_type=jnp.float32)

    # Static (unrolled) loop over the channel slices in this block; live
    # temporaries are bounded to one (Hpad, Wpad) slice's worth per iteration.
    for ci in range(cb):
        x = x_ref[ci]          # (Hpad, Wpad) f32
        y = y_ref[ci]

        mu1 = gconv(x)
        mu2 = gconv(y)
        # x*x / y*y / x*y formed in-kernel: only 2 image reads hit HBM.
        e_xx = gconv(x * x)
        e_yy = gconv(y * y)
        e_xy = gconv(x * y)

        mu1_sq = mu1 * mu1
        mu2_sq = mu2 * mu2
        mu1_mu2 = mu1 * mu2
        sigma1_sq = e_xx - mu1_sq          # f32: avoids cancellation issues
        sigma2_sq = e_yy - mu2_sq
        sigma12 = e_xy - mu1_mu2

        num = (2.0 * mu1_mu2 + c1) * (2.0 * sigma12 + c2)
        den = (mu1_sq + mu2_sq + c1) * (sigma1_sq + sigma2_sq + c2)

        # EUP approx reciprocal + one Newton step (~f32 accurate); keeps the
        # divide off the VALU slot. den >= C1*C2 > 0 so approx is safe.
        r = pl.reciprocal(den, approx=True)
        r = r * (2.0 - den * r)
        ssim_map = num * r

        loss = jnp.clip(1.0 - ssim_map, 0.0, 1.0) * 0.5
        out_ref[ci] = loss.astype(out_ref.dtype)


def _pick_channels_per_step(c: int, hpad: int, wpad: int,
                            budget_bytes: int = 24 * 1024 * 1024) -> int:
    """Largest divisor of C whose block plan fits a conservative VMEM budget
    (valid even for v7x's smaller scoped VMEM)."""
    tile_bytes = hpad * wpad * 4
    fixed = (hpad * hpad + wpad * wpad) * 4 * 2            # resident band matrices
    per_chan = tile_bytes * (2 * 2 + 1 * 2 + 6)            # dbl-buffered ins/out + temps
    best = 1
    for cb in range(1, c + 1):
        if c % cb == 0 and fixed + cb * per_chan <= budget_bytes:
            best = cb
    return best


# ----------------------------------------------------------------------------
# Public wrapper: equivalent of SSIM(window_size, reduction='none').forward
# ----------------------------------------------------------------------------
def ssim_loss(img1, img2, *, window_size: int = 11, sigma: float = 1.5,
              max_val: float = 1.0, conv_dtype=jnp.float32):
    assert img1.shape == img2.shape and img1.ndim == 4
    n, c, h, w = img1.shape
    c1 = (0.01 * max_val) ** 2
    c2 = (0.03 * max_val) ** 2

    hpad = _round_up(h, 8)       # sublane alignment
    wpad = _round_up(w, 128)     # lane-dense output tiles

    x = jnp.pad(img1.astype(jnp.float32).reshape(n * c, h, w),
                ((0, 0), (0, hpad - h), (0, wpad - w)))
    y = jnp.pad(img2.astype(jnp.float32).reshape(n * c, h, w),
                ((0, 0), (0, hpad - h), (0, wpad - w)))

    taps = _gaussian_kernel_1d(window_size, sigma)
    gw = jnp.asarray(_band_matrix(wpad, taps), dtype=conv_dtype)      # right-multiply
    gh = jnp.asarray(_band_matrix(hpad, taps).T, dtype=conv_dtype)    # left-multiply

    cb = _pick_channels_per_step(c, hpad, wpad)
    grid = (n * c // cb,)
    # TODO(synk): for very large images (e.g. 1080p on v7x's 64 MiB VMEM), tile H
    # into row blocks with a (window_size-1)//2-row halo instead of full slices.

    kernel = functools.partial(_ssim_kernel, cb=cb, c1=c1, c2=c2,
                               conv_dtype=conv_dtype)

    out = pl.pallas_call(
        kernel,
        out_shape=jax.ShapeDtypeStruct((n * c, hpad, wpad), jnp.float32),
        grid_spec=pltpu.PrefetchScalarGridSpec(
            num_scalar_prefetch=0,
            grid=grid,
            in_specs=[
                pl.BlockSpec((cb, hpad, wpad), lambda i: (i, 0, 0)),   # img1 block
                pl.BlockSpec((cb, hpad, wpad), lambda i: (i, 0, 0)),   # img2 block
                pl.BlockSpec((hpad, hpad), lambda i: (0, 0)),          # Gh (resident)
                pl.BlockSpec((wpad, wpad), lambda i: (0, 0)),          # Gw (resident)
            ],
            out_specs=pl.BlockSpec((cb, hpad, wpad), lambda i: (i, 0, 0)),
        ),
        compiler_params=pltpu.CompilerParams(
            dimension_semantics=("parallel",),   # image axis splits across TCs (v7x)
        ),
    )(x, y, gh, gw)

    return out[:, :h, :w].reshape(n, c, h, w)


# ----------------------------------------------------------------------------
# Pure-JAX reference (mirrors the PyTorch module) for a correctness check.
# ----------------------------------------------------------------------------
def ssim_loss_reference(img1, img2, *, window_size=11, sigma=1.5, max_val=1.0):
    n, c, h, w = img1.shape
    taps = _gaussian_kernel_1d(window_size, sigma)
    k2d = np.outer(taps, taps).astype(np.float32)
    kernel = jnp.tile(jnp.asarray(k2d)[None, None], (c, 1, 1, 1))
    pad = (window_size - 1) // 2

    def conv(z):
        return jax.lax.conv_general_dilated(
            z.astype(jnp.float32), kernel, window_strides=(1, 1),
            padding=[(pad, pad), (pad, pad)],
            dimension_numbers=("NCHW", "OIHW", "NCHW"),
            feature_group_count=c,
            precision=jax.lax.Precision.HIGHEST)

    c1 = (0.01 * max_val) ** 2
    c2 = (0.03 * max_val) ** 2
    mu1, mu2 = conv(img1), conv(img2)
    mu1_sq, mu2_sq, mu1_mu2 = mu1 * mu1, mu2 * mu2, mu1 * mu2
    s1 = conv(img1 * img1) - mu1_sq
    s2 = conv(img2 * img2) - mu2_sq
    s12 = conv(img1 * img2) - mu1_mu2
    ssim_map = ((2 * mu1_mu2 + c1) * (2 * s12 + c2)) / \
               ((mu1_sq + mu2_sq + c1) * (s1 + s2 + c2))
    return jnp.clip(1.0 - ssim_map, 0.0, 1.0) / 2.0


if __name__ == "__main__":
    key = jax.random.PRNGKey(0)
    k1, k2 = jax.random.split(key)
    n, c, h, w = 2, 4, 16, 16
    img1 = jax.random.uniform(k1, (n, c, h, w), dtype=jnp.float32)
    img2 = jnp.clip(
        img1 + 0.1 * jax.random.normal(k2, (n, c, h, w), dtype=jnp.float32),
        0.0, 1.0)

    out = ssim_loss(img1, img2, window_size=11, max_val=1.0)
    out = jax.block_until_ready(out)

    ref = jax.block_until_ready(
        ssim_loss_reference(img1, img2, window_size=11, max_val=1.0))

    assert out.shape == (n, c, h, w), out.shape
    err = float(jnp.max(jnp.abs(out - ref)))
    assert err < 1e-3, f"max abs error vs reference: {err}"
    print("KERNEL_OK")
</pallas_src>

<mosaic_0001>
module attributes {stable_mosaic.version = 11 : i64} {
  func.func @_ssim_kernel(%arg0: i32, %arg1: memref<4x16x128xf32, #tpu.memory_space<vmem>>, %arg2: memref<4x16x128xf32, #tpu.memory_space<vmem>>, %arg3: memref<16x16xf32, #tpu.memory_space<vmem>>, %arg4: memref<128x128xf32, #tpu.memory_space<vmem>>, %arg5: memref<4x16x128xf32, #tpu.memory_space<vmem>>) attributes {dimension_semantics = [#tpu.dimension_semantics<parallel>], iteration_bounds = array<i64: 2>, scalar_prefetch = 0 : i64, scratch_operands = 0 : i64, tpu.core_type = #tpu.core_type<tc>, window_params = [{transform_indices = @transform_0, window_bounds = array<i64: 4, 16, 128>}, {transform_indices = @transform_1, window_bounds = array<i64: 4, 16, 128>}, {pipeline_mode = #tpu.pipeline_mode<synchronous>, transform_indices = @transform_2, window_bounds = array<i64: 16, 16>}, {pipeline_mode = #tpu.pipeline_mode<synchronous>, transform_indices = @transform_3, window_bounds = array<i64: 128, 128>}, {transform_indices = @transform_4, window_bounds = array<i64: 4, 16, 128>}]} {
    %c0 = arith.constant 0 : index
    %c0_0 = arith.constant 0 : index
    %0 = vector.load %arg3[%c0, %c0_0] : memref<16x16xf32, #tpu.memory_space<vmem>>, vector<16x16xf32>
    %c0_1 = arith.constant 0 : index
    %c0_2 = arith.constant 0 : index
    %1 = vector.load %arg4[%c0_1, %c0_2] : memref<128x128xf32, #tpu.memory_space<vmem>>, vector<128x128xf32>
    %c0_3 = arith.constant 0 : index
    %c0_4 = arith.constant 0 : index
    %c0_5 = arith.constant 0 : index
    %2 = vector.load %arg1[%c0_3, %c0_4, %c0_5] : memref<4x16x128xf32, #tpu.memory_space<vmem>>, vector<1x16x128xf32>
    %3 = vector.shape_cast %2 : vector<1x16x128xf32> to vector<16x128xf32>
    %c0_6 = arith.constant 0 : index
    %c0_7 = arith.constant 0 : index
    %c0_8 = arith.constant 0 : index
    %4 = vector.load %arg2[%c0_6, %c0_7, %c0_8] : memref<4x16x128xf32, #tpu.memory_space<vmem>>, vector<1x16x128xf32>
    %5 = vector.shape_cast %4 : vector<1x16x128xf32> to vector<16x128xf32>
    %cst = arith.constant dense<0.000000e+00> : vector<16x128xf32>
    %6 = tpu.matmul %3, %1, %cst {dimension_numbers = #tpu.dot_dimension_numbers<[1], [0], [0], [1], [0, 0, 1, 1], [], []>} : vector<16x128xf32>, vector<128x128xf32>, vector<16x128xf32> -> vector<16x128xf32>
    %cst_9 = arith.constant dense<0.000000e+00> : vector<16x128xf32>
    %7 = tpu.matmul %0, %6, %cst_9 {dimension_numbers = #tpu.dot_dimension_numbers<[1], [0], [0], [1], [0, 0, 1, 1], [], []>} : vector<16x16xf32>, vector<16x128xf32>, vector<16x128xf32> -> vector<16x128xf32>
    %cst_10 = arith.constant dense<0.000000e+00> : vector<16x128xf32>
    %8 = tpu.matmul %5, %1, %cst_10 {dimension_numbers = #tpu.dot_dimension_numbers<[1], [0], [0], [1], [0, 0, 1, 1], [], []>} : vector<16x128xf32>, vector<128x128xf32>, vector<16x128xf32> -> vector<16x128xf32>
    %cst_11 = arith.constant dense<0.000000e+00> : vector<16x128xf32>
    %9 = tpu.matmul %0, %8, %cst_11 {dimension_numbers = #tpu.dot_dimension_numbers<[1], [0], [0], [1], [0, 0, 1, 1], [], []>} : vector<16x16xf32>, vector<16x128xf32>, vector<16x128xf32> -> vector<16x128xf32>
    %10 = arith.mulf %3, %3 : vector<16x128xf32>
    %cst_12 = arith.constant dense<0.000000e+00> : vector<16x128xf32>
    %11 = tpu.matmul %10, %1, %cst_12 {dimension_numbers = #tpu.dot_dimension_numbers<[1], [0], [0], [1], [0, 0, 1, 1], [], []>} : vector<16x128xf32>, vector<128x128xf32>, vector<16x128xf32> -> vector<16x128xf32>
    %cst_13 = arith.constant dense<0.000000e+00> : vector<16x128xf32>
    %12 = tpu.matmul %0, %11, %cst_13 {dimension_numbers = #tpu.dot_dimension_numbers<[1], [0], [0], [1], [0, 0, 1, 1], [], []>} : vector<16x16xf32>, vector<16x128xf32>, vector<16x128xf32> -> vector<16x128xf32>
    %13 = arith.mulf %5, %5 : vector<16x128xf32>
    %cst_14 = arith.constant dense<0.000000e+00> : vector<16x128xf32>
    %14 = tpu.matmul %13, %1, %cst_14 {dimension_numbers = #tpu.dot_dimension_numbers<[1], [0], [0], [1], [0, 0, 1, 1], [], []>} : vector<16x128xf32>, vector<128x128xf32>, vector<16x128xf32> -> vector<16x128xf32>
    %cst_15 = arith.constant dense<0.000000e+00> : vector<16x128xf32>
    %15 = tpu.matmul %0, %14, %cst_15 {dimension_numbers = #tpu.dot_dimension_numbers<[1], [0], [0], [1], [0, 0, 1, 1], [], []>} : vector<16x16xf32>, vector<16x128xf32>, vector<16x128xf32> -> vector<16x128xf32>
    %16 = arith.mulf %3, %5 : vector<16x128xf32>
    %cst_16 = arith.constant dense<0.000000e+00> : vector<16x128xf32>
    %17 = tpu.matmul %16, %1, %cst_16 {dimension_numbers = #tpu.dot_dimension_numbers<[1], [0], [0], [1], [0, 0, 1, 1], [], []>} : vector<16x128xf32>, vector<128x128xf32>, vector<16x128xf32> -> vector<16x128xf32>
    %cst_17 = arith.constant dense<0.000000e+00> : vector<16x128xf32>
    %18 = tpu.matmul %0, %17, %cst_17 {dimension_numbers = #tpu.dot_dimension_numbers<[1], [0], [0], [1], [0, 0, 1, 1], [], []>} : vector<16x16xf32>, vector<16x128xf32>, vector<16x128xf32> -> vector<16x128xf32>
    %19 = arith.mulf %7, %7 : vector<16x128xf32>
    %20 = arith.mulf %9, %9 : vector<16x128xf32>
    %21 = arith.mulf %7, %9 : vector<16x128xf32>
    %22 = arith.subf %12, %19 : vector<16x128xf32>
    %23 = arith.subf %15, %20 : vector<16x128xf32>
    %24 = arith.subf %18, %21 : vector<16x128xf32>
    %cst_18 = arith.constant 2.000000e+00 : f32
    %25 = vector.broadcast %cst_18 : f32 to vector<16x128xf32>
    %26 = arith.mulf %25, %21 : vector<16x128xf32>
    %cst_19 = arith.constant 9.99999974E-5 : f32
    %27 = vector.broadcast %cst_19 : f32 to vector<16x128xf32>
    %28 = arith.addf %26, %27 : vector<16x128xf32>
    %cst_20 = arith.constant 2.000000e+00 : f32
    %29 = vector.broadcast %cst_20 : f32 to vector<16x128xf32>
    %30 = arith.mulf %29, %24 : vector<16x128xf32>
    %cst_21 = arith.constant 8.99999984E-4 : f32
    %31 = vector.broadcast %cst_21 : f32 to vector<16x128xf32>
    %32 = arith.addf %30, %31 : vector<16x128xf32>
    %33 = arith.mulf %28, %32 : vector<16x128xf32>
    %34 = arith.addf %19, %20 : vector<16x128xf32>
    %cst_22 = arith.constant 9.99999974E-5 : f32
    %35 = vector.broadcast %cst_22 : f32 to vector<16x128xf32>
    %36 = arith.addf %34, %35 : vector<16x128xf32>
    %37 = arith.addf %22, %23 : vector<16x128xf32>
    %cst_23 = arith.constant 8.99999984E-4 : f32
    %38 = vector.broadcast %cst_23 : f32 to vector<16x128xf32>
    %39 = arith.addf %37, %38 : vector<16x128xf32>
    %40 = arith.mulf %36, %39 : vector<16x128xf32>
    %41 = tpu.reciprocal %40 {approx = true} : vector<16x128xf32> -> vector<16x128xf32>
    %42 = arith.mulf %40, %41 : vector<16x128xf32>
    %cst_24 = arith.constant 2.000000e+00 : f32
    %43 = vector.broadcast %cst_24 : f32 to vector<16x128xf32>
    %44 = arith.subf %43, %42 : vector<16x128xf32>
    %45 = arith.mulf %41, %44 : vector<16x128xf32>
    %46 = arith.mulf %33, %45 : vector<16x128xf32>
    %cst_25 = arith.constant 1.000000e+00 : f32
    %47 = vector.broadcast %cst_25 : f32 to vector<16x128xf32>
    %48 = arith.subf %47, %46 : vector<16x128xf32>
    %cst_26 = arith.constant 0.000000e+00 : f32
    %cst_27 = arith.constant 1.000000e+00 : f32
    %49 = vector.broadcast %cst_26 : f32 to vector<16x128xf32>
    %50 = arith.maximumf %49, %48 : vector<16x128xf32>
    %51 = vector.broadcast %cst_27 : f32 to vector<16x128xf32>
    %52 = arith.minimumf %51, %50 : vector<16x128xf32>
    %cst_28 = arith.constant 5.000000e-01 : f32
    %53 = vector.broadcast %cst_28 : f32 to vector<16x128xf32>
    %54 = arith.mulf %52, %53 : vector<16x128xf32>
    %c0_29 = arith.constant 0 : index
    %c0_30 = arith.constant 0 : index
    %c0_31 = arith.constant 0 : index
    %55 = vector.load %arg5[%c0_29, %c0_30, %c0_31] : memref<4x16x128xf32, #tpu.memory_space<vmem>>, vector<1x16x128xf32>
    %56 = vector.shape_cast %55 : vector<1x16x128xf32> to vector<16x128xf32>
    %57 = vector.shape_cast %54 : vector<16x128xf32> to vector<1x16x128xf32>
    tpu.vector_store %arg5[%c0_29, %c0_30, %c0_31], %57 {strides = array<i32>} : memref<4x16x128xf32, #tpu.memory_space<vmem>>, vector<1x16x128xf32>,
    %c1 = arith.constant 1 : index
    %c0_32 = arith.constant 0 : index
    %c0_33 = arith.constant 0 : index
    %58 = vector.load %arg1[%c1, %c0_32, %c0_33] : memref<4x16x128xf32, #tpu.memory_space<vmem>>, vector<1x16x128xf32>
    %59 = vector.shape_cast %58 : vector<1x16x128xf32> to vector<16x128xf32>
    %c1_34 = arith.constant 1 : index
    %c0_35 = arith.constant 0 : index
    %c0_36 = arith.constant 0 : index
    %60 = vector.load %arg2[%c1_34, %c0_35, %c0_36] : memref<4x16x128xf32, #tpu.memory_space<vmem>>, vector<1x16x128xf32>
    %61 = vector.shape_cast %60 : vector<1x16x128xf32> to vector<16x128xf32>
    %cst_37 = arith.constant dense<0.000000e+00> : vector<16x128xf32>
    %62 = tpu.matmul %59, %1, %cst_37 {dimension_numbers = #tpu.dot_dimension_numbers<[1], [0], [0], [1], [0, 0, 1, 1], [], []>} : vector<16x128xf32>, vector<128x128xf32>, vector<16x128xf32> -> vector<16x128xf32>
    %cst_38 = arith.constant dense<0.000000e+00> : vector<16x128xf32>
    %63 = tpu.matmul %0, %62, %cst_38 {dimension_numbers = #tpu.dot_dimension_numbers<[1], [0], [0], [1], [0, 0, 1, 1], [], []>} : vector<16x16xf32>, vector<16x128xf32>, vector<16x128xf32> -> vector<16x128xf32>
    %cst_39 = arith.constant dense<0.000000e+00> : vector<16x128xf32>
    %64 = tpu.matmul %61, %1, %cst_39 {dimension_numbers = #tpu.dot_dimension_numbers<[1], [0], [0], [1], [0, 0, 1, 1], [], []>} : vector<16x128xf32>, vector<128x128xf32>, vector<16x128xf32> -> vector<16x128xf32>
    %cst_40 = arith.constant dense<0.000000e+00> : vector<16x128xf32>
    %65 = tpu.matmul %0, %64, %cst_40 {dimension_numbers = #tpu.dot_dimension_numbers<[1], [0], [0], [1], [0, 0, 1, 1], [], []>} : vector<16x16xf32>, vector<16x128xf32>, vector<16x128xf32> -> vector<16x128xf32>
    %66 = arith.mulf %59, %59 : vector<16x128xf32>
    %cst_41 = arith.constant dense<0.000000e+00> : vector<16x128xf32>
    %67 = tpu.matmul %66, %1, %cst_41 {dimension_numbers = #tpu.dot_dimension_numbers<[1], [0], [0], [1], [0, 0, 1, 1], [], []>} : vector<16x128xf32>, vector<128x128xf32>, vector<16x128xf32> -> vector<16x128xf32>
    %cst_42 = arith.constant dense<0.000000e+00> : vector<16x128xf32>
    %68 = tpu.matmul %0, %67, %cst_42 {dimension_numbers = #tpu.dot_dimension_numbers<[1], [0], [0], [1], [0, 0, 1, 1], [], []>} : vector<16x16xf32>, vector<16x128xf32>, vector<16x128xf32> -> vector<16x128xf32>
    %69 = arith.mulf %61, %61 : vector<16x128xf32>
    %cst_43 = arith.constant dense<0.000000e+00> : vector<16x128xf32>
    %70 = tpu.matmul %69, %1, %cst_43 {dimension_numbers = #tpu.dot_dimension_numbers<[1], [0], [0], [1], [0, 0, 1, 1], [], []>} : vector<16x128xf32>, vector<128x128xf32>, vector<16x128xf32> -> vector<16x128xf32>
    %cst_44 = arith.constant dense<0.000000e+00> : vector<16x128xf32>
    %71 = tpu.matmul %0, %70, %cst_44 {dimension_numbers = #tpu.dot_dimension_numbers<[1], [0], [0], [1], [0, 0, 1, 1], [], []>} : vector<16x16xf32>, vector<16x128xf32>, vector<16x128xf32> -> vector<16x128xf32>
    %72 = arith.mulf %59, %61 : vector<16x128xf32>
    %cst_45 = arith.constant dense<0.000000e+00> : vector<16x128xf32>
    %73 = tpu.matmul %72, %1, %cst_45 {dimension_numbers = #tpu.dot_dimension_numbers<[1], [0], [0], [1], [0, 0, 1, 1], [], []>} : vector<16x128xf32>, vector<128x128xf32>, vector<16x128xf32> -> vector<16x128xf32>
    %cst_46 = arith.constant dense<0.000000e+00> : vector<16x128xf32>
    %74 = tpu.matmul %0, %73, %cst_46 {dimension_numbers = #tpu.dot_dimension_numbers<[1], [0], [0], [1], [0, 0, 1, 1], [], []>} : vector<16x16xf32>, vector<16x128xf32>, vector<16x128xf32> -> vector<16x128xf32>
    %75 = arith.mulf %63, %63 : vector<16x128xf32>
    %76 = arith.mulf %65, %65 : vector<16x128xf32>
    %77 = arith.mulf %63, %65 : vector<16x128xf32>
    %78 = arith.subf %68, %75 : vector<16x128xf32>
    %79 = arith.subf %71, %76 : vector<16x128xf32>
    %80 = arith.subf %74, %77 : vector<16x128xf32>
    %cst_47 = arith.constant 2.000000e+00 : f32
    %81 = vector.broadcast %cst_47 : f32 to vector<16x128xf32>
    %82 = arith.mulf %81, %77 : vector<16x128xf32>
    %cst_48 = arith.constant 9.99999974E-5 : f32
    %83 = vector.broadcast %cst_48 : f32 to vector<16x128xf32>
    %84 = arith.addf %82, %83 : vector<16x128xf32>
    %cst_49 = arith.constant 2.000000e+00 : f32
    %85 = vector.broadcast %cst_49 : f32 to vector<16x128xf32>
    %86 = arith.mulf %85, %80 : vector<16x128xf32>
    %cst_50 = arith.constant 8.99999984E-4 : f32
    %87 = vector.broadcast %cst_50 : f32 to vector<16x128xf32>
    %88 = arith.addf %86, %87 : vector<16x128xf32>
    %89 = arith.mulf %84, %88 : vector<16x128xf32>
    %90 = arith.addf %75, %76 : vector<16x128xf32>
    %cst_51 = arith.constant 9.99999974E-5 : f32
    %91 = vector.broadcast %cst_51 : f32 to vector<16x128xf32>
    %92 = arith.addf %90, %91 : vector<16x128xf32>
    %93 = arith.addf %78, %79 : vector<16x128xf32>
    %cst_52 = arith.constant 8.99999984E-4 : f32
    %94 = vector.broadcast %cst_52 : f32 to vector<16x128xf32>
    %95 = arith.addf %93, %94 : vector<16x128xf32>
    %96 = arith.mulf %92, %95 : vector<16x128xf32>
    %97 = tpu.reciprocal %96 {approx = true} : vector<16x128xf32> -> vector<16x128xf32>
    %98 = arith.mulf %96, %97 : vector<16x128xf32>
    %cst_53 = arith.constant 2.000000e+00 : f32
    %99 = vector.broadcast %cst_53 : f32 to vector<16x128xf32>
    %100 = arith.subf %99, %98 : vector<16x128xf32>
    %101 = arith.mulf %97, %100 : vector<16x128xf32>
    %102 = arith.mulf %89, %101 : vector<16x128xf32>
    %cst_54 = arith.constant 1.000000e+00 : f32
    %103 = vector.broadcast %cst_54 : f32 to vector<16x128xf32>
    %104 = arith.subf %103, %102 : vector<16x128xf32>
    %cst_55 = arith.constant 0.000000e+00 : f32
    %cst_56 = arith.constant 1.000000e+00 : f32
    %105 = vector.broadcast %cst_55 : f32 to vector<16x128xf32>
    %106 = arith.maximumf %105, %104 : vector<16x128xf32>
    %107 = vector.broadcast %cst_56 : f32 to vector<16x128xf32>
    %108 = arith.minimumf %107, %106 : vector<16x128xf32>
    %cst_57 = arith.constant 5.000000e-01 : f32
    %109 = vector.broadcast %cst_57 : f32 to vector<16x128xf32>
    %110 = arith.mulf %108, %109 : vector<16x128xf32>
    %c1_58 = arith.constant 1 : index
    %c0_59 = arith.constant 0 : index
    %c0_60 = arith.constant 0 : index
    %111 = vector.load %arg5[%c1_58, %c0_59, %c0_60] : memref<4x16x128xf32, #tpu.memory_space<vmem>>, vector<1x16x128xf32>
    %112 = vector.shape_cast %111 : vector<1x16x128xf32> to vector<16x128xf32>
    %113 = vector.shape_cast %110 : vector<16x128xf32> to vector<1x16x128xf32>
    tpu.vector_store %arg5[%c1_58, %c0_59, %c0_60], %113 {strides = array<i32>} : memref<4x16x128xf32, #tpu.memory_space<vmem>>, vector<1x16x128xf32>,
    %c2 = arith.constant 2 : index
    %c0_61 = arith.constant 0 : index
    %c0_62 = arith.constant 0 : index
    %114 = vector.load %arg1[%c2, %c0_61, %c0_62] : memref<4x16x128xf32, #tpu.memory_space<vmem>>, vector<1x16x128xf32>
    %115 = vector.shape_cast %114 : vector<1x16x128xf32> to vector<16x128xf32>
    %c2_63 = arith.constant 2 : index
    %c0_64 = arith.constant 0 : index
    %c0_65 = arith.constant 0 : index
    %116 = vector.load %arg2[%c2_63, %c0_64, %c0_65] : memref<4x16x128xf32, #tpu.memory_space<vmem>>, vector<1x16x128xf32>
    %117 = vector.shape_cast %116 : vector<1x16x128xf32> to vector<16x128xf32>
    %cst_66 = arith.constant dense<0.000000e+00> : vector<16x128xf32>
    %118 = tpu.matmul %115, %1, %cst_66 {dimension_numbers = #tpu.dot_dimension_numbers<[1], [0], [0], [1], [0, 0, 1, 1], [], []>} : vector<16x128xf32>, vector<128x128xf32>, vector<16x128xf32> -> vector<16x128xf32>
    %cst_67 = arith.constant dense<0.000000e+00> : vector<16x128xf32>
    %119 = tpu.matmul %0, %118, %cst_67 {dimension_numbers = #tpu.dot_dimension_numbers<[1], [0], [0], [1], [0, 0, 1, 1], [], []>} : vector<16x16xf32>, vector<16x128xf32>, vector<16x128xf32> -> vector<16x128xf32>
    %cst_68 = arith.constant dense<0.000000e+00> : vector<16x128xf32>
    %120 = tpu.matmul %117, %1, %cst_68 {dimension_numbers = #tpu.dot_dimension_numbers<[1], [0], [0], [1], [0, 0, 1, 1], [], []>} : vector<16x128xf32>, vector<128x128xf32>, vector<16x128xf32> -> vector<16x128xf32>
    %cst_69 = arith.constant dense<0.000000e+00> : vector<16x128xf32>
    %121 = tpu.matmul %0, %120, %cst_69 {dimension_numbers = #tpu.dot_dimension_numbers<[1], [0], [0], [1], [0, 0, 1, 1], [], []>} : vector<16x16xf32>, vector<16x128xf32>, vector<16x128xf32> -> vector<16x128xf32>
    %122 = arith.mulf %115, %115 : vector<16x128xf32>
    %cst_70 = arith.constant dense<0.000000e+00> : vector<16x128xf32>
    %123 = tpu.matmul %122, %1, %cst_70 {dimension_numbers = #tpu.dot_dimension_numbers<[1], [0], [0], [1], [0, 0, 1, 1], [], []>} : vector<16x128xf32>, vector<128x128xf32>, vector<16x128xf32> -> vector<16x128xf32>
    %cst_71 = arith.constant dense<0.000000e+00> : vector<16x128xf32>
    %124 = tpu.matmul %0, %123, %cst_71 {dimension_numbers = #tpu.dot_dimension_numbers<[1], [0], [0], [1], [0, 0, 1, 1], [], []>} : vector<16x16xf32>, vector<16x128xf32>, vector<16x128xf32> -> vector<16x128xf32>
    %125 = arith.mulf %117, %117 : vector<16x128xf32>
    %cst_72 = arith.constant dense<0.000000e+00> : vector<16x128xf32>
    %126 = tpu.matmul %125, %1, %cst_72 {dimension_numbers = #tpu.dot_dimension_numbers<[1], [0], [0], [1], [0, 0, 1, 1], [], []>} : vector<16x128xf32>, vector<128x128xf32>, vector<16x128xf32> -> vector<16x128xf32>
    %cst_73 = arith.constant dense<0.000000e+00> : vector<16x128xf32>
    %127 = tpu.matmul %0, %126, %cst_73 {dimension_numbers = #tpu.dot_dimension_numbers<[1], [0], [0], [1], [0, 0, 1, 1], [], []>} : vector<16x16xf32>, vector<16x128xf32>, vector<16x128xf32> -> vector<16x128xf32>
    %128 = arith.mulf %115, %117 : vector<16x128xf32>
    %cst_74 = arith.constant dense<0.000000e+00> : vector<16x128xf32>
    %129 = tpu.matmul %128, %1, %cst_74 {dimension_numbers = #tpu.dot_dimension_numbers<[1], [0], [0], [1], [0, 0, 1, 1], [], []>} : vector<16x128xf32>, vector<128x128xf32>, vector<16x128xf32> -> vector<16x128xf32>
    %cst_75 = arith.constant dense<0.000000e+00> : vector<16x128xf32>
    %130 = tpu.matmul %0, %129, %cst_75 {dimension_numbers = #tpu.dot_dimension_numbers<[1], [0], [0], [1], [0, 0, 1, 1], [], []>} : vector<16x16xf32>, vector<16x128xf32>, vector<16x128xf32> -> vector<16x128xf32>
    %131 = arith.mulf %119, %119 : vector<16x128xf32>
    %132 = arith.mulf %121, %121 : vector<16x128xf32>
    %133 = arith.mulf %119, %121 : vector<16x128xf32>
    %134 = arith.subf %124, %131 : vector<16x128xf32>
    %135 = arith.subf %127, %132 : vector<16x128xf32>
    %136 = arith.subf %130, %133 : vector<16x128xf32>
    %cst_76 = arith.constant 2.000000e+00 : f32
    %137 = vector.broadcast %cst_76 : f32 to vector<16x128xf32>
    %138 = arith.mulf %137, %133 : vector<16x128xf32>
    %cst_77 = arith.constant 9.99999974E-5 : f32
    %139 = vector.broadcast %cst_77 : f32 to vector<16x128xf32>
    %140 = arith.addf %138, %139 : vector<16x128xf32>
    %cst_78 = arith.constant 2.000000e+00 : f32
    %141 = vector.broadcast %cst_78 : f32 to vector<16x128xf32>
    %142 = arith.mulf %141, %136 : vector<16x128xf32>
    %cst_79 = arith.constant 8.99999984E-4 : f32
    %143 = vector.broadcast %cst_79 : f32 to vector<16x128xf32>
    %144 = arith.addf %142, %143 : vector<16x128xf32>
    %145 = arith.mulf %140, %144 : vector<16x128xf32>
    %146 = arith.addf %131, %132 : vector<16x128xf32>
    %cst_80 = arith.constant 9.99999974E-5 : f32
    %147 = vector.broadcast %cst_80 : f32 to vector<16x128xf32>
    %148 = arith.addf %146, %147 : vector<16x128xf32>
    %149 = arith.addf %134, %135 : vector<16x128xf32>
    %cst_81 = arith.constant 8.99999984E-4 : f32
    %150 = vector.broadcast %cst_81 : f32 to vector<16x128xf32>
    %151 = arith.addf %149, %150 : vector<16x128xf32>
    %152 = arith.mulf %148, %151 : vector<16x128xf32>
    %153 = tpu.reciprocal %152 {approx = true} : vector<16x128xf32> -> vector<16x128xf32>
    %154 = arith.mulf %152, %153 : vector<16x128xf32>
    %cst_82 = arith.constant 2.000000e+00 : f32
    %155 = vector.broadcast %cst_82 : f32 to vector<16x128xf32>
    %156 = arith.subf %155, %154 : vector<16x128xf32>
    %157 = arith.mulf %153, %156 : vector<16x128xf32>
    %158 = arith.mulf %145, %157 : vector<16x128xf32>
    %cst_83 = arith.constant 1.000000e+00 : f32
    %159 = vector.broadcast %cst_83 : f32 to vector<16x128xf32>
    %160 = arith.subf %159, %158 : vector<16x128xf32>
    %cst_84 = arith.constant 0.000000e+00 : f32
    %cst_85 = arith.constant 1.000000e+00 : f32
    %161 = vector.broadcast %cst_84 : f32 to vector<16x128xf32>
    %162 = arith.maximumf %161, %160 : vector<16x128xf32>
    %163 = vector.broadcast %cst_85 : f32 to vector<16x128xf32>
    %164 = arith.minimumf %163, %162 : vector<16x128xf32>
    %cst_86 = arith.constant 5.000000e-01 : f32
    %165 = vector.broadcast %cst_86 : f32 to vector<16x128xf32>
    %166 = arith.mulf %164, %165 : vector<16x128xf32>
    %c2_87 = arith.constant 2 : index
    %c0_88 = arith.constant 0 : index
    %c0_89 = arith.constant 0 : index
    %167 = vector.load %arg5[%c2_87, %c0_88, %c0_89] : memref<4x16x128xf32, #tpu.memory_space<vmem>>, vector<1x16x128xf32>
    %168 = vector.shape_cast %167 : vector<1x16x128xf32> to vector<16x128xf32>
    %169 = vector.shape_cast %166 : vector<16x128xf32> to vector<1x16x128xf32>
    tpu.vector_store %arg5[%c2_87, %c0_88, %c0_89], %169 {strides = array<i32>} : memref<4x16x128xf32, #tpu.memory_space<vmem>>, vector<1x16x128xf32>,
    %c3 = arith.constant 3 : index
    %c0_90 = arith.constant 0 : index
    %c0_91 = arith.constant 0 : index
    %170 = vector.load %arg1[%c3, %c0_90, %c0_91] : memref<4x16x128xf32, #tpu.memory_space<vmem>>, vector<1x16x128xf32>
    %171 = vector.shape_cast %170 : vector<1x16x128xf32> to vector<16x128xf32>
    %c3_92 = arith.constant 3 : index
    %c0_93 = arith.constant 0 : index
    %c0_94 = arith.constant 0 : index
    %172 = vector.load %arg2[%c3_92, %c0_93, %c0_94] : memref<4x16x128xf32, #tpu.memory_space<vmem>>, vector<1x16x128xf32>
    %173 = vector.shape_cast %172 : vector<1x16x128xf32> to vector<16x128xf32>
    %cst_95 = arith.constant dense<0.000000e+00> : vector<16x128xf32>
    %174 = tpu.matmul %171, %1, %cst_95 {dimension_numbers = #tpu.dot_dimension_numbers<[1], [0], [0], [1], [0, 0, 1, 1], [], []>} : vector<16x128xf32>, vector<128x128xf32>, vector<16x128xf32> -> vector<16x128xf32>
    %cst_96 = arith.constant dense<0.000000e+00> : vector<16x128xf32>
    %175 = tpu.matmul %0, %174, %cst_96 {dimension_numbers = #tpu.dot_dimension_numbers<[1], [0], [0], [1], [0, 0, 1, 1], [], []>} : vector<16x16xf32>, vector<16x128xf32>, vector<16x128xf32> -> vector<16x128xf32>
    %cst_97 = arith.constant dense<0.000000e+00> : vector<16x128xf32>
    %176 = tpu.matmul %173, %1, %cst_97 {dimension_numbers = #tpu.dot_dimension_numbers<[1], [0], [0], [1], [0, 0, 1, 1], [], []>} : vector<16x128xf32>, vector<128x128xf32>, vector<16x128xf32> -> vector<16x128xf32>
    %cst_98 = arith.constant dense<0.000000e+00> : vector<16x128xf32>
    %177 = tpu.matmul %0, %176, %cst_98 {dimension_numbers = #tpu.dot_dimension_numbers<[1], [0], [0], [1], [0, 0, 1, 1], [], []>} : vector<16x16xf32>, vector<16x128xf32>, vector<16x128xf32> -> vector<16x128xf32>
    %178 = arith.mulf %171, %171 : vector<16x128xf32>
    %cst_99 = arith.constant dense<0.000000e+00> : vector<16x128xf32>
    %179 = tpu.matmul %178, %1, %cst_99 {dimension_numbers = #tpu.dot_dimension_numbers<[1], [0], [0], [1], [0, 0, 1, 1], [], []>} : vector<16x128xf32>, vector<128x128xf32>, vector<16x128xf32> -> vector<16x128xf32>
    %cst_100 = arith.constant dense<0.000000e+00> : vector<16x128xf32>
    %180 = tpu.matmul %0, %179, %cst_100 {dimension_numbers = #tpu.dot_dimension_numbers<[1], [0], [0], [1], [0, 0, 1, 1], [], []>} : vector<16x16xf32>, vector<16x128xf32>, vector<16x128xf32> -> vector<16x128xf32>
    %181 = arith.mulf %173, %173 : vector<16x128xf32>
    %cst_101 = arith.constant dense<0.000000e+00> : vector<16x128xf32>
    %182 = tpu.matmul %181, %1, %cst_101 {dimension_numbers = #tpu.dot_dimension_numbers<[1], [0], [0], [1], [0, 0, 1, 1], [], []>} : vector<16x128xf32>, vector<128x128xf32>, vector<16x128xf32> -> vector<16x128xf32>
    %cst_102 = arith.constant dense<0.000000e+00> : vector<16x128xf32>
    %183 = tpu.matmul %0, %182, %cst_102 {dimension_numbers = #tpu.dot_dimension_numbers<[1], [0], [0], [1], [0, 0, 1, 1], [], []>} : vector<16x16xf32>, vector<16x128xf32>, vector<16x128xf32> -> vector<16x128xf32>
    %184 = arith.mulf %171, %173 : vector<16x128xf32>
    %cst_103 = arith.constant dense<0.000000e+00> : vector<16x128xf32>
    %185 = tpu.matmul %184, %1, %cst_103 {dimension_numbers = #tpu.dot_dimension_numbers<[1], [0], [0], [1], [0, 0, 1, 1], [], []>} : vector<16x128xf32>, vector<128x128xf32>, vector<16x128xf32> -> vector<16x128xf32>
    %cst_104 = arith.constant dense<0.000000e+00> : vector<16x128xf32>
    %186 = tpu.matmul %0, %185, %cst_104 {dimension_numbers = #tpu.dot_dimension_numbers<[1], [0], [0], [1], [0, 0, 1, 1], [], []>} : vector<16x16xf32>, vector<16x128xf32>, vector<16x128xf32> -> vector<16x128xf32>
    %187 = arith.mulf %175, %175 : vector<16x128xf32>
    %188 = arith.mulf %177, %177 : vector<16x128xf32>
    %189 = arith.mulf %175, %177 : vector<16x128xf32>
    %190 = arith.subf %180, %187 : vector<16x128xf32>
    %191 = arith.subf %183, %188 : vector<16x128xf32>
    %192 = arith.subf %186, %189 : vector<16x128xf32>
    %cst_105 = arith.constant 2.000000e+00 : f32
    %193 = vector.broadcast %cst_105 : f32 to vector<16x128xf32>
    %194 = arith.mulf %193, %189 : vector<16x128xf32>
    %cst_106 = arith.constant 9.99999974E-5 : f32
    %195 = vector.broadcast %cst_106 : f32 to vector<16x128xf32>
    %196 = arith.addf %194, %195 : vector<16x128xf32>
    %cst_107 = arith.constant 2.000000e+00 : f32
    %197 = vector.broadcast %cst_107 : f32 to vector<16x128xf32>
    %198 = arith.mulf %197, %192 : vector<16x128xf32>
    %cst_108 = arith.constant 8.99999984E-4 : f32
    %199 = vector.broadcast %cst_108 : f32 to vector<16x128xf32>
    %200 = arith.addf %198, %199 : vector<16x128xf32>
    %201 = arith.mulf %196, %200 : vector<16x128xf32>
    %202 = arith.addf %187, %188 : vector<16x128xf32>
    %cst_109 = arith.constant 9.99999974E-5 : f32
    %203 = vector.broadcast %cst_109 : f32 to vector<16x128xf32>
    %204 = arith.addf %202, %203 : vector<16x128xf32>
    %205 = arith.addf %190, %191 : vector<16x128xf32>
    %cst_110 = arith.constant 8.99999984E-4 : f32
    %206 = vector.broadcast %cst_110 : f32 to vector<16x128xf32>
    %207 = arith.addf %205, %206 : vector<16x128xf32>
    %208 = arith.mulf %204, %207 : vector<16x128xf32>
    %209 = tpu.reciprocal %208 {approx = true} : vector<16x128xf32> -> vector<16x128xf32>
    %210 = arith.mulf %208, %209 : vector<16x128xf32>
    %cst_111 = arith.constant 2.000000e+00 : f32
    %211 = vector.broadcast %cst_111 : f32 to vector<16x128xf32>
    %212 = arith.subf %211, %210 : vector<16x128xf32>
    %213 = arith.mulf %209, %212 : vector<16x128xf32>
    %214 = arith.mulf %201, %213 : vector<16x128xf32>
    %cst_112 = arith.constant 1.000000e+00 : f32
    %215 = vector.broadcast %cst_112 : f32 to vector<16x128xf32>
    %216 = arith.subf %215, %214 : vector<16x128xf32>
    %cst_113 = arith.constant 0.000000e+00 : f32
    %cst_114 = arith.constant 1.000000e+00 : f32
    %217 = vector.broadcast %cst_113 : f32 to vector<16x128xf32>
    %218 = arith.maximumf %217, %216 : vector<16x128xf32>
    %219 = vector.broadcast %cst_114 : f32 to vector<16x128xf32>
    %220 = arith.minimumf %219, %218 : vector<16x128xf32>
    %cst_115 = arith.constant 5.000000e-01 : f32
    %221 = vector.broadcast %cst_115 : f32 to vector<16x128xf32>
    %222 = arith.mulf %220, %221 : vector<16x128xf32>
    %c3_116 = arith.constant 3 : index
    %c0_117 = arith.constant 0 : index
    %c0_118 = arith.constant 0 : index
    %223 = vector.load %arg5[%c3_116, %c0_117, %c0_118] : memref<4x16x128xf32, #tpu.memory_space<vmem>>, vector<1x16x128xf32>
    %224 = vector.shape_cast %223 : vector<1x16x128xf32> to vector<16x128xf32>
    %225 = vector.shape_cast %222 : vector<16x128xf32> to vector<1x16x128xf32>
    tpu.vector_store %arg5[%c3_116, %c0_117, %c0_118], %225 {strides = array<i32>} : memref<4x16x128xf32, #tpu.memory_space<vmem>>, vector<1x16x128xf32>,
    return
  }
  func.func @transform_0(%arg0: i32) -> (i32, i32, i32) {
    %c0_i32 = arith.constant 0 : i32
    %c0_i32_0 = arith.constant 0 : i32
    %c0_i32_1 = arith.constant 0 : i32
    return %arg0, %c0_i32, %c0_i32_0 : i32, i32, i32
  }
  func.func @transform_1(%arg0: i32) -> (i32, i32, i32) {
    %c0_i32 = arith.constant 0 : i32
    %c0_i32_0 = arith.constant 0 : i32
    %c0_i32_1 = arith.constant 0 : i32
    return %arg0, %c0_i32, %c0_i32_0 : i32, i32, i32
  }
  func.func @transform_2(%arg0: i32) -> (i32, i32) {
    %c0_i32 = arith.constant 0 : i32
    %c0_i32_0 = arith.constant 0 : i32
    %c0_i32_1 = arith.constant 0 : i32
    return %c0_i32, %c0_i32_0 : i32, i32
  }
  func.func @transform_3(%arg0: i32) -> (i32, i32) {
    %c0_i32 = arith.constant 0 : i32
    %c0_i32_0 = arith.constant 0 : i32
    %c0_i32_1 = arith.constant 0 : i32
    return %c0_i32, %c0_i32_0 : i32, i32
  }
  func.func @transform_4(%arg0: i32) -> (i32, i32, i32) {
    %c0_i32 = arith.constant 0 : i32
    %c0_i32_0 = arith.constant 0 : i32
    %c0_i32_1 = arith.constant 0 : i32
    return %arg0, %c0_i32, %c0_i32_0 : i32, i32, i32
  }
}

</mosaic_0001>

<llo_original>
// kernel: tpu_custom_call.1
$region0: #{tpu_custom_call.1}
  #allocation0 [shape = 'u32[]', space=smem, size = 0x4, offset = 0x4, fixed_abs, tag = 'smem constant byte address 0x4 - core index']
  #allocation1 [shape = 'u32[144,128]{1,0:T(1,128)}', space=vmem, size = 0x12000, scoped, tag = 'internal scratch']
  %s0 = inlined_call_operand.hbm [shape: f32[8,16,128], index: 0, kind: input, shape index: {}]
  %s1 = inlined_call_operand.hbm [shape: f32[8,16,128], index: 1, kind: input, shape index: {}]
  %s2 = inlined_call_operand.hbm [shape: f32[16,16], index: 2, kind: input, shape index: {}]
  %s3 = inlined_call_operand.hbm [shape: f32[128,128], index: 3, kind: input, shape index: {}]
  %s4 = inlined_call_operand.hbm [shape: f32[8,16,128], index: 4, kind: output, shape index: {}]
  %s5 = sld [smem:[#allocation0]]
  $region65: #{tpu_custom_call.1} parent=0
    _
  %s7 = ssub.s32 1, %s5
  %s8 = scalar_select 0, %s7, %s5
  $region1: #{tpu_custom_call.1} parent=0
    #allocation2 [shape = 'u8[65536]{0}', space=vmem, size = 0x10000, scoped, tag = 'input window, operand 0']
    #allocation3 [shape = 's32[2]{0}', space=sflag, size = 0x8, scoped, tag = 'scoped memory for tpu_custom_call.1']
    #allocation4 [shape = 's32[2]{0}', space=sflag, size = 0x8, scoped, tag = 'scoped memory for tpu_custom_call.1']
    #allocation5 [shape = 'u8[65536]{0}', space=vmem, size = 0x10000, scoped, tag = 'input window, operand 1']
    #allocation6 [shape = 's32[2]{0}', space=sflag, size = 0x8, scoped, tag = 'scoped memory for tpu_custom_call.1']
    #allocation7 [shape = 'u8[8192]{0}', space=vmem, size = 0x2000, scoped, tag = 'input window, operand 2, single buffered']
    #allocation8 [shape = 'u8[65536]{0}', space=vmem, size = 0x10000, scoped, tag = 'input window, operand 3, single buffered']
    #allocation9 [shape = 's32[1]{0}', space=sflag, size = 0x4, scoped, tag = 'scoped memory for tpu_custom_call.1']
    #allocation10 [shape = 'u8[65536]{0}', space=vmem, size = 0x10000, scoped, tag = 'output window, operand 0']
    %9 = vsyncpa [#allocation3], 0
    %s10 = scalar_lea.sflag [#allocation3], 1
    %11 = vsyncpa %s10, 0
    %12 = vsyncpa [#allocation6], 0
    %s13 = scalar_lea.sflag [#allocation6], 1
    %14 = vsyncpa %s13, 0
    %15 = vsyncpa [#allocation9], 0
    %16 = vsyncpa [#allocation4], 0
    %s17 = scalar_lea.sflag [#allocation4], 1
    %18 = vsyncpa %s17, 0
    loop: start=0, step=1, limit=4
    $region2: #{tpu_custom_call.1} parent=1 // loop_pre_header
      _
    $region3: #{tpu_custom_call.1} parent=1 // loop_header
      %s20 = sphi 0, %s24
      %p21 = scmp.ge.s32.totalorder %s20, 4
      %s30 = sphi 0, %s32
      %s33 = sphi 0, %s30
      %s34 = sphi 0, %s33
      %s50 = sphi 0, %s34
      %s56 = sphi 0, %s58
      %s59 = sphi 0, %s56
      %s60 = sphi 0, %s59
      %s76 = sphi 0, %s60
      %s80 = sphi 0, %s80
      %s82 = sphi 0, %s80
      %s83 = sphi 0, %s82
      %s97 = sphi 0, %s83
      %s101 = sphi 0, %s101
      %s103 = sphi 0, %s101
      %s104 = sphi 0, %s103
      %s118 = sphi 0, %s104
      %s124 = sphi 0, %s126
      %s127 = sphi 0, %s124
      %s128 = sphi 0, %s127
      %s144 = sphi 0, %s128
    $region4: #{tpu_custom_call.1} parent=1 // loop_header_branch
      %23 = sbr.rel (%p21) target = $region8
    $region5: #{tpu_custom_call.1} parent=1 // loop_body
      %s25 = ssub.s32 %s20, 1
      %s26 = ssub.s32 %s20, 2
      %s27 = sadd.s32 %s20, 1
      %s28 = ssub.s32 %s20, %s27
      %p29 = scmp.eq.s32.totalorder %s28, 0
      %s31 = sadd.s32 %s30, 1
      %s32 = scalar_select %p29, %s30, %s31
      %p35 = pneg %p29
      %p36 = scmp.eq.s32.totalorder %s20, 1
      %p37 = por %p35, %p36
      %p38 = scmp.ne.s32.totalorder %s30, %s33
      %p39 = scmp.eq.s32.totalorder %s20, 0
      %p40 = por %p38, %p39
      %p41 = scmp.ne.s32.totalorder %s30, %s33
      %p42 = scmp.eq.s32.totalorder %s25, 1
      %p43 = por %p41, %p42
      %p44 = scmp.ne.s32.totalorder %s33, %s34
      %p45 = scmp.eq.s32.totalorder %s25, 0
      %p46 = por %p44, %p45
      %p47 = scmp.ne.s32.totalorder %s33, %s34
      %p48 = scmp.eq.s32.totalorder %s26, 1
      %p49 = por %p47, %p48
      %p51 = scmp.ne.s32.totalorder %s34, %s50
      %p52 = scmp.eq.s32.totalorder %s26, 0
      %p53 = por %p51, %p52
      %s54 = ssub.s32 %s20, %s27
      %p55 = scmp.eq.s32.totalorder %s54, 0
      %s57 = sadd.s32 %s56, 1
      %s58 = scalar_select %p55, %s56, %s57
      %p61 = pneg %p55
      %p62 = scmp.eq.s32.totalorder %s20, 1
      %p63 = por %p61, %p62
      %p64 = scmp.ne.s32.totalorder %s56, %s59
      %p65 = scmp.eq.s32.totalorder %s20, 0
      %p66 = por %p64, %p65
      %p67 = scmp.ne.s32.totalorder %s56, %s59
      %p68 = scmp.eq.s32.totalorder %s25, 1
      %p69 = por %p67, %p68
      %p70 = scmp.ne.s32.totalorder %s59, %s60
      %p71 = scmp.eq.s32.totalorder %s25, 0
      %p72 = por %p70, %p71
      %p73 = scmp.ne.s32.totalorder %s59, %s60
      %p74 = scmp.eq.s32.totalorder %s26, 1
      %p75 = por %p73, %p74
      %p77 = scmp.ne.s32.totalorder %s60, %s76
      %p78 = scmp.eq.s32.totalorder %s26, 0
      %p79 = por %p77, %p78
      %s81 = sadd.s32 %s80, 1
      %p84 = scmp.eq.s32.totalorder %s20, 1
      %p85 = scmp.ne.s32.totalorder %s80, %s82
      %p86 = scmp.eq.s32.totalorder %s20, 0
      %p87 = por %p85, %p86
      %p88 = scmp.ne.s32.totalorder %s80, %s82
      %p89 = scmp.eq.s32.totalorder %s25, 1
      %p90 = por %p88, %p89
      %p91 = scmp.ne.s32.totalorder %s82, %s83
      %p92 = scmp.eq.s32.totalorder %s25, 0
      %p93 = por %p91, %p92
      %p94 = scmp.ne.s32.totalorder %s82, %s83
      %p95 = scmp.eq.s32.totalorder %s26, 1
      %p96 = por %p94, %p95
      %p98 = scmp.ne.s32.totalorder %s83, %s97
      %p99 = scmp.eq.s32.totalorder %s26, 0
      %p100 = por %p98, %p99
      %s102 = sadd.s32 %s101, 1
      %p105 = scmp.eq.s32.totalorder %s20, 1
      %p106 = scmp.ne.s32.totalorder %s101, %s103
      %p107 = scmp.eq.s32.totalorder %s20, 0
      %p108 = por %p106, %p107
      %p109 = scmp.ne.s32.totalorder %s101, %s103
      %p110 = scmp.eq.s32.totalorder %s25, 1
      %p111 = por %p109, %p110
      %p112 = scmp.ne.s32.totalorder %s103, %s104
      %p113 = scmp.eq.s32.totalorder %s25, 0
      %p114 = por %p112, %p113
      %p115 = scmp.ne.s32.totalorder %s103, %s104
      %p116 = scmp.eq.s32.totalorder %s26, 1
      %p117 = por %p115, %p116
      %p119 = scmp.ne.s32.totalorder %s104, %s118
      %p120 = scmp.eq.s32.totalorder %s26, 0
      %p121 = por %p119, %p120
      %s122 = ssub.s32 %s20, %s27
      %p123 = scmp.eq.s32.totalorder %s122, 0
      %s125 = sadd.s32 %s124, 1
      %s126 = scalar_select %p123, %s124, %s125
      %p129 = pneg %p123
      %p130 = scmp.eq.s32.totalorder %s20, 1
      %p131 = por %p129, %p130
      %p132 = scmp.ne.s32.totalorder %s124, %s127
      %p133 = scmp.eq.s32.totalorder %s20, 0
      %p134 = por %p132, %p133
      %p135 = scmp.ne.s32.totalorder %s124, %s127
      %p136 = scmp.eq.s32.totalorder %s25, 1
      %p137 = por %p135, %p136
      %p138 = scmp.ne.s32.totalorder %s127, %s128
      %p139 = scmp.eq.s32.totalorder %s25, 0
      %p140 = por %p138, %p139
      %p141 = scmp.ne.s32.totalorder %s127, %s128
      %p142 = scmp.eq.s32.totalorder %s26, 1
      %p143 = por %p141, %p142
      %p145 = scmp.ne.s32.totalorder %s128, %s144
      %p146 = scmp.eq.s32.totalorder %s26, 0
      %p147 = por %p145, %p146
      %p148 = scmp.le.s32.totalorder 1, %s20
      %p149 = scmp.lt.s32.totalorder %s20, 3
      %p150 = pnand %p148, %p149
      %p151 = pneg %p150
      // Predicated region
      $region9: #{tpu_custom_call.1} parent=5 // pred_check
        _
      $region10: #{tpu_custom_call.1} parent=5 // pred_check_branch
        %153 = sbr.rel (%p150) target = $region12
      $region11: #{tpu_custom_call.1} parent=5 // pred_region
        %s154 = ssub.s32 %s20, 1
        // Predicated region
        $region13: #{tpu_custom_call.1} parent=11 // pred_check
          %p155 = pneg %p93
        $region14: #{tpu_custom_call.1} parent=11 // pred_check_branch
          %157 = sbr.rel (%p155) target = $region16
        $region15: #{tpu_custom_call.1} parent=11 // pred_region
          %s159 = ssub.s32 256, 256
          %160 = vsyncadd [#allocation6], %s159
          %s161 = sshll.u32 [#allocation7], 4
          %s162 = int_to_ptr.vmem [resolvable:$true] %s161
          %167 = dma.hbm_to_vmem [thread:$0]  %s2, 256, %s162, [#allocation6], 128, 128, 8
        $region16: #{tpu_custom_call.1} parent=11 // pred_fallthru
          _
        // Predicated region
        $region17: #{tpu_custom_call.1} parent=11 // pred_check
          %p168 = pneg %p114
        $region18: #{tpu_custom_call.1} parent=11 // pred_check_branch
          %170 = sbr.rel (%p168) target = $region20
        $region19: #{tpu_custom_call.1} parent=11 // pred_region
          %s172 = ssub.s32 2048, 2048
          %173 = vsyncadd [#allocation9], %s172
          %s174 = sshll.u32 [#allocation8], 4
          %s175 = int_to_ptr.vmem [resolvable:$true] %s174
          %180 = dma.hbm_to_vmem [thread:$0]  %s3, 2048, %s175, [#allocation9], 128, 128, 8
        $region20: #{tpu_custom_call.1} parent=11 // pred_fallthru
          _
      $region12: #{tpu_custom_call.1} parent=5 // pred_fallthru
        _
      %p181 = scmp.lt.s32.totalorder %s20, 2
      // Predicated region
      $region21: #{tpu_custom_call.1} parent=5 // pred_check
        %p182 = pneg %p181
      $region22: #{tpu_custom_call.1} parent=5 // pred_check_branch
        %184 = sbr.rel (%p182) target = $region24
      $region23: #{tpu_custom_call.1} parent=5 // pred_region
        // Predicated region
        $region25: #{tpu_custom_call.1} parent=23 // pred_check
          %p185 = pneg %p40
        $region26: #{tpu_custom_call.1} parent=23 // pred_check_branch
          %187 = sbr.rel (%p185) target = $region28
        $region27: #{tpu_custom_call.1} parent=23 // pred_region
          %s188 = sand.u32 %s30, 1
          %s189 = scalar_lea.sflag [#allocation3], %s188
          %s190 = sand.u32 %s30, 1
          %s191 = smul.addr %s190, 64
          %s192 = scalar_lea.vmem [#allocation2], %s191
          %s193 = smul.u32 4, %s20
          %s195 = ssub.s32 1024, 1024
          %196 = vsyncadd %s189, %s195
          %s197 = smul.addr %s193, 2
          %s198 = smul.addr %s197, 128
          %s199 = scalar_lea.hbm %s0, %s198
          %s200 = sshll.u32 %s192, 4
          %s201 = int_to_ptr.vmem [resolvable:$true] %s200
          %206 = dma.hbm_to_vmem [thread:$0]  %s199, 1024, %s201, %s189, 128, 128, 8
        $region28: #{tpu_custom_call.1} parent=23 // pred_fallthru
          _
        // Predicated region
        $region29: #{tpu_custom_call.1} parent=23 // pred_check
          %p207 = pneg %p66
        $region30: #{tpu_custom_call.1} parent=23 // pred_check_branch
          %209 = sbr.rel (%p207) target = $region32
        $region31: #{tpu_custom_call.1} parent=23 // pred_region
          %s210 = sand.u32 %s20, 1
          %s211 = scalar_lea.sflag [#allocation6], %s210
          %s212 = sand.u32 %s56, 1
          %s213 = smul.addr %s212, 64
          %s214 = scalar_lea.vmem [#allocation5], %s213
          %s215 = smul.u32 4, %s20
          %s217 = ssub.s32 1024, 1024
          %218 = vsyncadd %s211, %s217
          %s219 = smul.addr %s215, 2
          %s220 = smul.addr %s219, 128
          %s221 = scalar_lea.hbm %s1, %s220
          %s222 = sshll.u32 %s214, 4
          %s223 = int_to_ptr.vmem [resolvable:$true] %s222
          %228 = dma.hbm_to_vmem [thread:$0]  %s221, 1024, %s223, %s211, 128, 128, 8
        $region32: #{tpu_custom_call.1} parent=23 // pred_fallthru
          _
      $region24: #{tpu_custom_call.1} parent=5 // pred_fallthru
        _
      %p229 = scmp.le.s32.totalorder 1, %s20
      %p230 = scmp.lt.s32.totalorder %s20, 3
      %p231 = pnand %p229, %p230
      %p232 = pneg %p231
      // Predicated region
      $region33: #{tpu_custom_call.1} parent=5 // pred_check
        _
      $region34: #{tpu_custom_call.1} parent=5 // pred_check_branch
        %234 = sbr.rel (%p231) target = $region36
      $region35: #{tpu_custom_call.1} parent=5 // pred_region
        %s235 = ssub.s32 %s20, 1
        %s236 = sand.u32 %s33, 1
        %s237 = scalar_lea.sflag [#allocation3], %s236
        %s238 = sand.u32 %s33, 1
        %s239 = smul.addr %s238, 64
        %s240 = scalar_lea.vmem [#allocation2], %s239
        // Predicated region
        $region37: #{tpu_custom_call.1} parent=35 // pred_check
          %p241 = pneg %p46
        $region38: #{tpu_custom_call.1} parent=35 // pred_check_branch
          %243 = sbr.rel (%p241) target = $region40
        $region39: #{tpu_custom_call.1} parent=35 // pred_region
          %244 = dma.done %s237, 1024
        $region40: #{tpu_custom_call.1} parent=35 // pred_fallthru
          _
        %s245 = sand.u32 %s25, 1
        %s246 = scalar_lea.sflag [#allocation6], %s245
        %s247 = sand.u32 %s59, 1
        %s248 = smul.addr %s247, 64
        %s249 = scalar_lea.vmem [#allocation5], %s248
        // Predicated region
        $region41: #{tpu_custom_call.1} parent=35 // pred_check
          %p250 = pneg %p72
        $region42: #{tpu_custom_call.1} parent=35 // pred_check_branch
          %252 = sbr.rel (%p250) target = $region44
        $region43: #{tpu_custom_call.1} parent=35 // pred_region
          %253 = dma.done %s246, 1024
        $region44: #{tpu_custom_call.1} parent=35 // pred_fallthru
          _
        // Predicated region
        $region45: #{tpu_custom_call.1} parent=35 // pred_check
          %p254 = pneg %p93
        $region46: #{tpu_custom_call.1} parent=35 // pred_check_branch
          %256 = sbr.rel (%p254) target = $region48
        $region47: #{tpu_custom_call.1} parent=35 // pred_region
          %257 = dma.done [#allocation6], 256
        $region48: #{tpu_custom_call.1} parent=35 // pred_fallthru
          _
        // Predicated region
        $region49: #{tpu_custom_call.1} parent=35 // pred_check
          %p258 = pneg %p114
        $region50: #{tpu_custom_call.1} parent=35 // pred_check_branch
          %260 = sbr.rel (%p258) target = $region52
        $region51: #{tpu_custom_call.1} parent=35 // pred_region
          %261 = dma.done [#allocation9], 2048
        $region52: #{tpu_custom_call.1} parent=35 // pred_fallthru
          _
        %s262 = sand.u32 %s33, 1
        %s263 = scalar_lea.sflag [#allocation3], %s262
        %s264 = sand.u32 %s33, 1
        %s265 = smul.addr %s264, 64
        %s266 = scalar_lea.vmem [#allocation2], %s265
        %p267 = pneg %p46
        %p268 = pneg %p43
        %s269 = sand.u32 %s25, 1
        %s270 = scalar_lea.sflag [#allocation6], %s269
        %s271 = sand.u32 %s59, 1
        %s272 = smul.addr %s271, 64
        %s273 = scalar_lea.vmem [#allocation5], %s272
        %p274 = pneg %p72
        %p275 = pneg %p69
        %p276 = pneg %p93
        %p277 = pneg %p90
        %p278 = pneg %p114
        %p279 = pneg %p111
        %p280 = pneg %p140
        %p281 = pneg %p137
        %s282 = sand.u32 %s127, 1
        %s283 = scalar_lea.sflag [#allocation4], %s282
        %s284 = sand.u32 %s127, 1
        %s285 = smul.addr %s284, 64
        %s286 = scalar_lea.vmem [#allocation10], %s285
        %s287 = smul.u32 4, %s25
        %s288 = smul.u32 4, %s25
        %s289 = smul.u32 4, %s25
        %v290 = vld [vmem:[#allocation7] sm:$0xff]
        %v291 = vld [vmem:[#allocation7 + $0x8] sm:$0xff]
        %v292 = vld [vmem:[#allocation8] sm:$0xff]
        %v293 = vld [vmem:[#allocation8 + $0x8] sm:$0xff]
        %v294 = vld [vmem:[#allocation8 + $0x10] sm:$0xff]
        %v295 = vld [vmem:[#allocation8 + $0x18] sm:$0xff]
        %v296 = vld [vmem:[#allocation8 + $0x20] sm:$0xff]
        %v297 = vld [vmem:[#allocation8 + $0x28] sm:$0xff]
        %v298 = vld [vmem:[#allocation8 + $0x30] sm:$0xff]
        %v299 = vld [vmem:[#allocation8 + $0x38] sm:$0xff]
        %v300 = vld [vmem:[#allocation8 + $0x40] sm:$0xff]
        %v301 = vld [vmem:[#allocation8 + $0x48] sm:$0xff]
        %v302 = vld [vmem:[#allocation8 + $0x50] sm:$0xff]
        %v303 = vld [vmem:[#allocation8 + $0x58] sm:$0xff]
        %v304 = vld [vmem:[#allocation8 + $0x60] sm:$0xff]
        %v305 = vld [vmem:[#allocation8 + $0x68] sm:$0xff]
        %v306 = vld [vmem:[#allocation8 + $0x70] sm:$0xff]
        %v307 = vld [vmem:[#allocation8 + $0x78] sm:$0xff]
        %v308 = vld [vmem:[%s240] sm:$0xff]
        %v309 = vld [vmem:[%s240 + $0x8] sm:$0xff]
        %v310 = vld [vmem:[%s249] sm:$0xff]
        %v311 = vld [vmem:[%s249 + $0x8] sm:$0xff]
        %312 = vmatprep.subr.mxu0 0.0
        %313 = vmatpush1.msra.mxu0 %v292
        %314 = vmatprep.subr.mxu0 0.0
        %315 = vmatpush1.msra.mxu0 %v293
        %316 = vmatprep.subr.mxu0 0.0
        %317 = vmatpush1.msra.mxu0 %v294
        %318 = vmatprep.subr.mxu0 0.0
        %319 = vmatpush1.msra.mxu0 %v295
        %320 = vmatprep.subr.mxu0 0.0
        %321 = vmatpush1.msra.mxu0 %v296
        %322 = vmatprep.subr.mxu0 0.0
        %323 = vmatpush1.msra.mxu0 %v297
        %324 = vmatprep.subr.mxu0 0.0
        %325 = vmatpush1.msra.mxu0 %v298
        %326 = vmatprep.subr.mxu0 0.0
        %327 = vmatpush1.msra.mxu0 %v299
        %328 = vmatprep.subr.mxu0 0.0
        %329 = vmatpush1.msra.mxu0 %v300
        %330 = vmatprep.subr.mxu0 0.0
        %331 = vmatpush1.msra.mxu0 %v301
        %332 = vmatprep.subr.mxu0 0.0
        %333 = vmatpush1.msra.mxu0 %v302
        %334 = vmatprep.subr.mxu0 0.0
        %335 = vmatpush1.msra.mxu0 %v303
        %336 = vmatprep.subr.mxu0 0.0
        %337 = vmatpush1.msra.mxu0 %v304
        %338 = vmatprep.subr.mxu0 0.0
        %339 = vmatpush1.msra.mxu0 %v305
        %340 = vmatprep.subr.mxu0 0.0
        %341 = vmatpush1.msra.mxu0 %v306
        %342 = vmatprep.subr.mxu0 0.0
        %343 = vmatpush1.msra.mxu0 %v307
        %344 = vmatprep.subr.mxu0 0.0
        %345 = vmatpush1.msra.mxu0 0.0
        %346 = vmatprep.subr.mxu0 0.0
        %347 = vmatpush1.msra.mxu0 0.0
        %348 = vmatprep.subr.mxu0 0.0
        %349 = vmatpush1.msra.mxu0 0.0
        %350 = vmatprep.subr.mxu0 0.0
        %351 = vmatpush1.msra.mxu0 0.0
        %352 = vmatprep.subr.mxu0 0.0
        %353 = vmatpush1.msra.mxu0 0.0
        %354 = vmatprep.subr.mxu0 0.0
        %355 = vmatpush1.msra.mxu0 0.0
        %356 = vmatprep.subr.mxu0 0.0
        %357 = vmatpush1.msra.mxu0 0.0
        %358 = vmatprep.subr.mxu0 0.0
        %359 = vmatpush1.msra.mxu0 0.0
        %360 = vmatprep.subr.mxu0 0.0
        %361 = vmatpush1.msra.mxu0 0.0
        %362 = vmatprep.subr.mxu0 0.0
        %363 = vmatpush1.msra.mxu0 0.0
        %364 = vmatprep.subr.mxu0 0.0
        %365 = vmatpush1.msra.mxu0 0.0
        %366 = vmatprep.subr.mxu0 0.0
        %367 = vmatpush1.msra.mxu0 0.0
        %368 = vmatprep.subr.mxu0 0.0
        %369 = vmatpush1.msra.mxu0 0.0
        %370 = vmatprep.subr.mxu0 0.0
        %371 = vmatpush1.msra.mxu0 0.0
        %372 = vmatprep.subr.mxu0 0.0
        %373 = vmatpush1.msra.mxu0 0.0
        %374 = vmatprep.subr.mxu0 0.0
        %375 = vmatpush1.msra.mxu0 0.0
        %376 = vmatprep.mubr.f32.mxu0 0.0
        %377 = vmatmul.mubr.f32.gmra.mrb[0].mxu0 %v308
        %v378 = vpop.f32.mrb[0].mxu0
        %v379 = vadd.f32 0.0, %v378
        %v380 = vpop.f32.mrb[0].mxu0
        %381 = vmatprep.mubr.f32.mxu0 0.0
        %382 = vmatmul.mubr.f32.gmra.mrb[0].mxu0 %v309
        %v383 = vpop.f32.mrb[0].mxu0
        %v384 = vadd.f32 0.0, %v383
        %v385 = vpop.f32.mrb[0].mxu0
        %386 = vdwg.mxu0
        %vm387 = vcmask 130048
        %v389 = vsel %vm387, %v290, 0
        %v392 = vsel %vm387, %v291, 0
        %394 = vmatprep.subr.mxu0 0.0
        %395 = vmatpush1.msra.mxu0 %v379
        %396 = vmatprep.subr.mxu0 0.0
        %397 = vmatpush1.msra.mxu0 %v384
        %398 = vmatprep.subr.mxu0 0.0
        %399 = vmatpush1.msra.mxu0 0.0
        %400 = vmatprep.subr.mxu0 0.0
        %401 = vmatpush1.msra.mxu0 0.0
        %402 = vmatprep.subr.mxu0 0.0
        %403 = vmatpush1.msra.mxu0 0.0
        %404 = vmatprep.subr.mxu0 0.0
        %405 = vmatpush1.msra.mxu0 0.0
        %406 = vmatprep.subr.mxu0 0.0
        %407 = vmatpush1.msra.mxu0 0.0
        %408 = vmatprep.subr.mxu0 0.0
        %409 = vmatpush1.msra.mxu0 0.0
        %410 = vmatprep.subr.mxu0 0.0
        %411 = vmatpush1.msra.mxu0 0.0
        %412 = vmatprep.subr.mxu0 0.0
        %413 = vmatpush1.msra.mxu0 0.0
        %414 = vmatprep.subr.mxu0 0.0
        %415 = vmatpush1.msra.mxu0 0.0
        %416 = vmatprep.subr.mxu0 0.0
        %417 = vmatpush1.msra.mxu0 0.0
        %418 = vmatprep.subr.mxu0 0.0
        %419 = vmatpush1.msra.mxu0 0.0
        %420 = vmatprep.subr.mxu0 0.0
        %421 = vmatpush1.msra.mxu0 0.0
        %422 = vmatprep.subr.mxu0 0.0
        %423 = vmatpush1.msra.mxu0 0.0
        %424 = vmatprep.subr.mxu0 0.0
        %425 = vmatpush1.msra.mxu0 0.0
        %426 = vmatprep.subr.mxu0 0.0
        %427 = vmatpush1.msra.mxu0 0.0
        %428 = vmatprep.subr.mxu0 0.0
        %429 = vmatpush1.msra.mxu0 0.0
        %430 = vmatprep.subr.mxu0 0.0
        %431 = vmatpush1.msra.mxu0 0.0
        %432 = vmatprep.subr.mxu0 0.0
        %433 = vmatpush1.msra.mxu0 0.0
        %434 = vmatprep.subr.mxu0 0.0
        %435 = vmatpush1.msra.mxu0 0.0
        %436 = vmatprep.subr.mxu0 0.0
        %437 = vmatpush1.msra.mxu0 0.0
        %438 = vmatprep.subr.mxu0 0.0
        %439 = vmatpush1.msra.mxu0 0.0
        %440 = vmatprep.subr.mxu0 0.0
        %441 = vmatpush1.msra.mxu0 0.0
        %442 = vmatprep.subr.mxu0 0.0
        %443 = vmatpush1.msra.mxu0 0.0
        %444 = vmatprep.subr.mxu0 0.0
        %445 = vmatpush1.msra.mxu0 0.0
        %446 = vmatprep.subr.mxu0 0.0
        %447 = vmatpush1.msra.mxu0 0.0
        %448 = vmatprep.subr.mxu0 0.0
        %449 = vmatpush1.msra.mxu0 0.0
        %450 = vmatprep.subr.mxu0 0.0
        %451 = vmatpush1.msra.mxu0 0.0
        %452 = vmatprep.subr.mxu0 0.0
        %453 = vmatpush1.msra.mxu0 0.0
        %454 = vmatprep.subr.mxu0 0.0
        %455 = vmatpush1.msra.mxu0 0.0
        %456 = vmatprep.subr.mxu0 0.0
        %457 = vmatpush1.msra.mxu0 0.0
        %458 = vmatprep.mubr.f32.mxu0 0.0
        %459 = vmatmul.mubr.f32.gmra.mrb[0].mxu0 %v389
        %v460 = vpop.f32.mrb[0].mxu0
        %v461 = vadd.f32 0.0, %v460
        %v462 = vpop.f32.mrb[0].mxu0
        %463 = vmatprep.mubr.f32.mxu0 0.0
        %464 = vmatmul.mubr.f32.gmra.mrb[0].mxu0 %v392
        %v465 = vpop.f32.mrb[0].mxu0
        %v466 = vadd.f32 0.0, %v465
        %v467 = vpop.f32.mrb[0].mxu0
        %468 = vdwg.mxu0
        %469 = vmatprep.subr.mxu0 0.0
        %470 = vmatpush1.msra.mxu0 %v292
        %471 = vmatprep.subr.mxu0 0.0
        %472 = vmatpush1.msra.mxu0 %v293
        %473 = vmatprep.subr.mxu0 0.0
        %474 = vmatpush1.msra.mxu0 %v294
        %475 = vmatprep.subr.mxu0 0.0
        %476 = vmatpush1.msra.mxu0 %v295
        %477 = vmatprep.subr.mxu0 0.0
        %478 = vmatpush1.msra.mxu0 %v296
        %479 = vmatprep.subr.mxu0 0.0
        %480 = vmatpush1.msra.mxu0 %v297
        %481 = vmatprep.subr.mxu0 0.0
        %482 = vmatpush1.msra.mxu0 %v298
        %483 = vmatprep.subr.mxu0 0.0
        %484 = vmatpush1.msra.mxu0 %v299
        %485 = vmatprep.subr.mxu0 0.0
        %486 = vmatpush1.msra.mxu0 %v300
        %487 = vmatprep.subr.mxu0 0.0
        %488 = vmatpush1.msra.mxu0 %v301
        %489 = vmatprep.subr.mxu0 0.0
        %490 = vmatpush1.msra.mxu0 %v302
        %491 = vmatprep.subr.mxu0 0.0
        %492 = vmatpush1.msra.mxu0 %v303
        %493 = vmatprep.subr.mxu0 0.0
        %494 = vmatpush1.msra.mxu0 %v304
        %495 = vmatprep.subr.mxu0 0.0
        %496 = vmatpush1.msra.mxu0 %v305
        %497 = vmatprep.subr.mxu0 0.0
        %498 = vmatpush1.msra.mxu0 %v306
        %499 = vmatprep.subr.mxu0 0.0
        %500 = vmatpush1.msra.mxu0 %v307
        %501 = vmatprep.subr.mxu0 0.0
        %502 = vmatpush1.msra.mxu0 0.0
        %503 = vmatprep.subr.mxu0 0.0
        %504 = vmatpush1.msra.mxu0 0.0
        %505 = vmatprep.subr.mxu0 0.0
        %506 = vmatpush1.msra.mxu0 0.0
        %507 = vmatprep.subr.mxu0 0.0
        %508 = vmatpush1.msra.mxu0 0.0
        %509 = vmatprep.subr.mxu0 0.0
        %510 = vmatpush1.msra.mxu0 0.0
        %511 = vmatprep.subr.mxu0 0.0
        %512 = vmatpush1.msra.mxu0 0.0
        %513 = vmatprep.subr.mxu0 0.0
        %514 = vmatpush1.msra.mxu0 0.0
        %515 = vmatprep.subr.mxu0 0.0
        %516 = vmatpush1.msra.mxu0 0.0
        %517 = vmatprep.subr.mxu0 0.0
        %518 = vmatpush1.msra.mxu0 0.0
        %519 = vmatprep.subr.mxu0 0.0
        %520 = vmatpush1.msra.mxu0 0.0
        %521 = vmatprep.subr.mxu0 0.0
        %522 = vmatpush1.msra.mxu0 0.0
        %523 = vmatprep.subr.mxu0 0.0
        %524 = vmatpush1.msra.mxu0 0.0
        %525 = vmatprep.subr.mxu0 0.0
        %526 = vmatpush1.msra.mxu0 0.0
        %527 = vmatprep.subr.mxu0 0.0
        %528 = vmatpush1.msra.mxu0 0.0
        %529 = vmatprep.subr.mxu0 0.0
        %530 = vmatpush1.msra.mxu0 0.0
        %531 = vmatprep.subr.mxu0 0.0
        %532 = vmatpush1.msra.mxu0 0.0
        %533 = vmatprep.mubr.f32.mxu0 0.0
        %534 = vmatmul.mubr.f32.gmra.mrb[0].mxu0 %v310
        %v535 = vpop.f32.mrb[0].mxu0
        %v536 = vadd.f32 0.0, %v535
        %v537 = vpop.f32.mrb[0].mxu0
        %538 = vmatprep.mubr.f32.mxu0 0.0
        %539 = vmatmul.mubr.f32.gmra.mrb[0].mxu0 %v311
        %v540 = vpop.f32.mrb[0].mxu0
        %v541 = vadd.f32 0.0, %v540
        %v542 = vpop.f32.mrb[0].mxu0
        %543 = vdwg.mxu0
        %544 = vmatprep.subr.mxu0 0.0
        %545 = vmatpush1.msra.mxu0 %v536
        %546 = vmatprep.subr.mxu0 0.0
        %547 = vmatpush1.msra.mxu0 %v541
        %548 = vmatprep.subr.mxu0 0.0
        %549 = vmatpush1.msra.mxu0 0.0
        %550 = vmatprep.subr.mxu0 0.0
        %551 = vmatpush1.msra.mxu0 0.0
        %552 = vmatprep.subr.mxu0 0.0
        %553 = vmatpush1.msra.mxu0 0.0
        %554 = vmatprep.subr.mxu0 0.0
        %555 = vmatpush1.msra.mxu0 0.0
        %556 = vmatprep.subr.mxu0 0.0
        %557 = vmatpush1.msra.mxu0 0.0
        %558 = vmatprep.subr.mxu0 0.0
        %559 = vmatpush1.msra.mxu0 0.0
        %560 = vmatprep.subr.mxu0 0.0
        %561 = vmatpush1.msra.mxu0 0.0
        %562 = vmatprep.subr.mxu0 0.0
        %563 = vmatpush1.msra.mxu0 0.0
        %564 = vmatprep.subr.mxu0 0.0
        %565 = vmatpush1.msra.mxu0 0.0
        %566 = vmatprep.subr.mxu0 0.0
        %567 = vmatpush1.msra.mxu0 0.0
        %568 = vmatprep.subr.mxu0 0.0
        %569 = vmatpush1.msra.mxu0 0.0
        %570 = vmatprep.subr.mxu0 0.0
        %571 = vmatpush1.msra.mxu0 0.0
        %572 = vmatprep.subr.mxu0 0.0
        %573 = vmatpush1.msra.mxu0 0.0
        %574 = vmatprep.subr.mxu0 0.0
        %575 = vmatpush1.msra.mxu0 0.0
        %576 = vmatprep.subr.mxu0 0.0
        %577 = vmatpush1.msra.mxu0 0.0
        %578 = vmatprep.subr.mxu0 0.0
        %579 = vmatpush1.msra.mxu0 0.0
        %580 = vmatprep.subr.mxu0 0.0
        %581 = vmatpush1.msra.mxu0 0.0
        %582 = vmatprep.subr.mxu0 0.0
        %583 = vmatpush1.msra.mxu0 0.0
        %584 = vmatprep.subr.mxu0 0.0
        %585 = vmatpush1.msra.mxu0 0.0
        %586 = vmatprep.subr.mxu0 0.0
        %587 = vmatpush1.msra.mxu0 0.0
        %588 = vmatprep.subr.mxu0 0.0
        %589 = vmatpush1.msra.mxu0 0.0
        %590 = vmatprep.subr.mxu0 0.0
        %591 = vmatpush1.msra.mxu0 0.0
        %592 = vmatprep.subr.mxu0 0.0
        %593 = vmatpush1.msra.mxu0 0.0
        %594 = vmatprep.subr.mxu0 0.0
        %595 = vmatpush1.msra.mxu0 0.0
        %596 = vmatprep.subr.mxu0 0.0
        %597 = vmatpush1.msra.mxu0 0.0
        %598 = vmatprep.subr.mxu0 0.0
        %599 = vmatpush1.msra.mxu0 0.0
        %600 = vmatprep.subr.mxu0 0.0
        %601 = vmatpush1.msra.mxu0 0.0
        %602 = vmatprep.subr.mxu0 0.0
        %603 = vmatpush1.msra.mxu0 0.0
        %604 = vmatprep.subr.mxu0 0.0
        %605 = vmatpush1.msra.mxu0 0.0
        %606 = vmatprep.subr.mxu0 0.0
        %607 = vmatpush1.msra.mxu0 0.0
        %608 = vmatprep.mubr.f32.mxu0 0.0
        %609 = vmatmul.mubr.f32.gmra.mrb[0].mxu0 %v389
        %v610 = vpop.f32.mrb[0].mxu0
        %v611 = vadd.f32 0.0, %v610
        %v612 = vpop.f32.mrb[0].mxu0
        %613 = vmatprep.mubr.f32.mxu0 0.0
        %614 = vmatmul.mubr.f32.gmra.mrb[0].mxu0 %v392
        %v615 = vpop.f32.mrb[0].mxu0
        %v616 = vadd.f32 0.0, %v615
        %v617 = vpop.f32.mrb[0].mxu0
        %618 = vdwg.mxu0
        %v619 = vmul.f32 %v308, %v308
        %v620 = vmul.f32 %v309, %v309
        %621 = vmatprep.subr.mxu0 0.0
        %622 = vmatpush1.msra.mxu0 %v292
        %623 = vmatprep.subr.mxu0 0.0
        %624 = vmatpush1.msra.mxu0 %v293
        %625 = vmatprep.subr.mxu0 0.0
        %626 = vmatpush1.msra.mxu0 %v294
        %627 = vmatprep.subr.mxu0 0.0
        %628 = vmatpush1.msra.mxu0 %v295
        %629 = vmatprep.subr.mxu0 0.0
        %630 = vmatpush1.msra.mxu0 %v296
        %631 = vmatprep.subr.mxu0 0.0
        %632 = vmatpush1.msra.mxu0 %v297
        %633 = vmatprep.subr.mxu0 0.0
        %634 = vmatpush1.msra.mxu0 %v298
        %635 = vmatprep.subr.mxu0 0.0
        %636 = vmatpush1.msra.mxu0 %v299
        %637 = vmatprep.subr.mxu0 0.0
        %638 = vmatpush1.msra.mxu0 %v300
        %639 = vmatprep.subr.mxu0 0.0
        %640 = vmatpush1.msra.mxu0 %v301
        %641 = vmatprep.subr.mxu0 0.0
        %642 = vmatpush1.msra.mxu0 %v302
        %643 = vmatprep.subr.mxu0 0.0
        %644 = vmatpush1.msra.mxu0 %v303
        %645 = vmatprep.subr.mxu0 0.0
        %646 = vmatpush1.msra.mxu0 %v304
        %647 = vmatprep.subr.mxu0 0.0
        %648 = vmatpush1.msra.mxu0 %v305
        %649 = vmatprep.subr.mxu0 0.0
        %650 = vmatpush1.msra.mxu0 %v306
        %651 = vmatprep.subr.mxu0 0.0
        %652 = vmatpush1.msra.mxu0 %v307
        %653 = vmatprep.subr.mxu0 0.0
        %654 = vmatpush1.msra.mxu0 0.0
        %655 = vmatprep.subr.mxu0 0.0
        %656 = vmatpush1.msra.mxu0 0.0
        %657 = vmatprep.subr.mxu0 0.0
        %658 = vmatpush1.msra.mxu0 0.0
        %659 = vmatprep.subr.mxu0 0.0
        %660 = vmatpush1.msra.mxu0 0.0
        %661 = vmatprep.subr.mxu0 0.0
        %662 = vmatpush1.msra.mxu0 0.0
        %663 = vmatprep.subr.mxu0 0.0
        %664 = vmatpush1.msra.mxu0 0.0
        %665 = vmatprep.subr.mxu0 0.0
        %666 = vmatpush1.msra.mxu0 0.0
        %667 = vmatprep.subr.mxu0 0.0
        %668 = vmatpush1.msra.mxu0 0.0
        %669 = vmatprep.subr.mxu0 0.0
        %670 = vmatpush1.msra.mxu0 0.0
        %671 = vmatprep.subr.mxu0 0.0
        %672 = vmatpush1.msra.mxu0 0.0
        %673 = vmatprep.subr.mxu0 0.0
        %674 = vmatpush1.msra.mxu0 0.0
        %675 = vmatprep.subr.mxu0 0.0
        %676 = vmatpush1.msra.mxu0 0.0
        %677 = vmatprep.subr.mxu0 0.0
        %678 = vmatpush1.msra.mxu0 0.0
        %679 = vmatprep.subr.mxu0 0.0
        %680 = vmatpush1.msra.mxu0 0.0
        %681 = vmatprep.subr.mxu0 0.0
        %682 = vmatpush1.msra.mxu0 0.0
        %683 = vmatprep.subr.mxu0 0.0
        %684 = vmatpush1.msra.mxu0 0.0
        %685 = vmatprep.mubr.f32.mxu0 0.0
        %686 = vmatmul.mubr.f32.gmra.mrb[0].mxu0 %v619
        %v687 = vpop.f32.mrb[0].mxu0
        %v688 = vadd.f32 0.0, %v687
        %v689 = vpop.f32.mrb[0].mxu0
        %690 = vmatprep.mubr.f32.mxu0 0.0
        %691 = vmatmul.mubr.f32.gmra.mrb[0].mxu0 %v620
        %v692 = vpop.f32.mrb[0].mxu0
        %v693 = vadd.f32 0.0, %v692
        %v694 = vpop.f32.mrb[0].mxu0
        %695 = vdwg.mxu0
        %696 = vmatprep.subr.mxu0 0.0
        %697 = vmatpush1.msra.mxu0 %v688
        %698 = vmatprep.subr.mxu0 0.0
        %699 = vmatpush1.msra.mxu0 %v693
        %700 = vmatprep.subr.mxu0 0.0
        %701 = vmatpush1.msra.mxu0 0.0
        %702 = vmatprep.subr.mxu0 0.0
        %703 = vmatpush1.msra.mxu0 0.0
        %704 = vmatprep.subr.mxu0 0.0
        %705 = vmatpush1.msra.mxu0 0.0
        %706 = vmatprep.subr.mxu0 0.0
        %707 = vmatpush1.msra.mxu0 0.0
        %708 = vmatprep.subr.mxu0 0.0
        %709 = vmatpush1.msra.mxu0 0.0
        %710 = vmatprep.subr.mxu0 0.0
        %711 = vmatpush1.msra.mxu0 0.0
        %712 = vmatprep.subr.mxu0 0.0
        %713 = vmatpush1.msra.mxu0 0.0
        %714 = vmatprep.subr.mxu0 0.0
        %715 = vmatpush1.msra.mxu0 0.0
        %716 = vmatprep.subr.mxu0 0.0
        %717 = vmatpush1.msra.mxu0 0.0
        %718 = vmatprep.subr.mxu0 0.0
        %719 = vmatpush1.msra.mxu0 0.0
        %720 = vmatprep.subr.mxu0 0.0
        %721 = vmatpush1.msra.mxu0 0.0
        %722 = vmatprep.subr.mxu0 0.0
        %723 = vmatpush1.msra.mxu0 0.0
        %724 = vmatprep.subr.mxu0 0.0
        %725 = vmatpush1.msra.mxu0 0.0
        %726 = vmatprep.subr.mxu0 0.0
        %727 = vmatpush1.msra.mxu0 0.0
        %728 = vmatprep.subr.mxu0 0.0
        %729 = vmatpush1.msra.mxu0 0.0
        %730 = vmatprep.subr.mxu0 0.0
        %731 = vmatpush1.msra.mxu0 0.0
        %732 = vmatprep.subr.mxu0 0.0
        %733 = vmatpush1.msra.mxu0 0.0
        %734 = vmatprep.subr.mxu0 0.0
        %735 = vmatpush1.msra.mxu0 0.0
        %736 = vmatprep.subr.mxu0 0.0
        %737 = vmatpush1.msra.mxu0 0.0
        %738 = vmatprep.subr.mxu0 0.0
        %739 = vmatpush1.msra.mxu0 0.0
        %740 = vmatprep.subr.mxu0 0.0
        %741 = vmatpush1.msra.mxu0 0.0
        %742 = vmatprep.subr.mxu0 0.0
        %743 = vmatpush1.msra.mxu0 0.0
        %744 = vmatprep.subr.mxu0 0.0
        %745 = vmatpush1.msra.mxu0 0.0
        %746 = vmatprep.subr.mxu0 0.0
        %747 = vmatpush1.msra.mxu0 0.0
        %748 = vmatprep.subr.mxu0 0.0
        %749 = vmatpush1.msra.mxu0 0.0
        %750 = vmatprep.subr.mxu0 0.0
        %751 = vmatpush1.msra.mxu0 0.0
        %752 = vmatprep.subr.mxu0 0.0
        %753 = vmatpush1.msra.mxu0 0.0
        %754 = vmatprep.subr.mxu0 0.0
        %755 = vmatpush1.msra.mxu0 0.0
        %756 = vmatprep.subr.mxu0 0.0
        %757 = vmatpush1.msra.mxu0 0.0
        %758 = vmatprep.subr.mxu0 0.0
        %759 = vmatpush1.msra.mxu0 0.0
        %760 = vmatprep.mubr.f32.mxu0 0.0
        %761 = vmatmul.mubr.f32.gmra.mrb[0].mxu0 %v389
        %v762 = vpop.f32.mrb[0].mxu0
        %v763 = vadd.f32 0.0, %v762
        %v764 = vpop.f32.mrb[0].mxu0
        %765 = vmatprep.mubr.f32.mxu0 0.0
        %766 = vmatmul.mubr.f32.gmra.mrb[0].mxu0 %v392
        %v767 = vpop.f32.mrb[0].mxu0
        %v768 = vadd.f32 0.0, %v767
        %v769 = vpop.f32.mrb[0].mxu0
        %770 = vdwg.mxu0
        %v771 = vmul.f32 %v310, %v310
        %v772 = vmul.f32 %v311, %v311
        %773 = vmatprep.subr.mxu0 0.0
        %774 = vmatpush1.msra.mxu0 %v292
        %775 = vmatprep.subr.mxu0 0.0
        %776 = vmatpush1.msra.mxu0 %v293
        %777 = vmatprep.subr.mxu0 0.0
        %778 = vmatpush1.msra.mxu0 %v294
        %779 = vmatprep.subr.mxu0 0.0
        %780 = vmatpush1.msra.mxu0 %v295
        %781 = vmatprep.subr.mxu0 0.0
        %782 = vmatpush1.msra.mxu0 %v296
        %783 = vmatprep.subr.mxu0 0.0
        %784 = vmatpush1.msra.mxu0 %v297
        %785 = vmatprep.subr.mxu0 0.0
        %786 = vmatpush1.msra.mxu0 %v298
        %787 = vmatprep.subr.mxu0 0.0
        %788 = vmatpush1.msra.mxu0 %v299
        %789 = vmatprep.subr.mxu0 0.0
        %790 = vmatpush1.msra.mxu0 %v300
        %791 = vmatprep.subr.mxu0 0.0
        %792 = vmatpush1.msra.mxu0 %v301
        %793 = vmatprep.subr.mxu0 0.0
        %794 = vmatpush1.msra.mxu0 %v302
        %795 = vmatprep.subr.mxu0 0.0
        %796 = vmatpush1.msra.mxu0 %v303
        %797 = vmatprep.subr.mxu0 0.0
        %798 = vmatpush1.msra.mxu0 %v304
        %799 = vmatprep.subr.mxu0 0.0
        %800 = vmatpush1.msra.mxu0 %v305
        %801 = vmatprep.subr.mxu0 0.0
        %802 = vmatpush1.msra.mxu0 %v306
        %803 = vmatprep.subr.mxu0 0.0
        %804 = vmatpush1.msra.mxu0 %v307
        %805 = vmatprep.subr.mxu0 0.0
        %806 = vmatpush1.msra.mxu0 0.0
        %807 = vmatprep.subr.mxu0 0.0
        %808 = vmatpush1.msra.mxu0 0.0
        %809 = vmatprep.subr.mxu0 0.0
        %810 = vmatpush1.msra.mxu0 0.0
        %811 = vmatprep.subr.mxu0 0.0
        %812 = vmatpush1.msra.mxu0 0.0
        %813 = vmatprep.subr.mxu0 0.0
        %814 = vmatpush1.msra.mxu0 0.0
        %815 = vmatprep.subr.mxu0 0.0
        %816 = vmatpush1.msra.mxu0 0.0
        %817 = vmatprep.subr.mxu0 0.0
        %818 = vmatpush1.msra.mxu0 0.0
        %819 = vmatprep.subr.mxu0 0.0
        %820 = vmatpush1.msra.mxu0 0.0
        %821 = vmatprep.subr.mxu0 0.0
        %822 = vmatpush1.msra.mxu0 0.0
        %823 = vmatprep.subr.mxu0 0.0
        %824 = vmatpush1.msra.mxu0 0.0
        %825 = vmatprep.subr.mxu0 0.0
        %826 = vmatpush1.msra.mxu0 0.0
        %827 = vmatprep.subr.mxu0 0.0
        %828 = vmatpush1.msra.mxu0 0.0
        %829 = vmatprep.subr.mxu0 0.0
        %830 = vmatpush1.msra.mxu0 0.0
        %831 = vmatprep.subr.mxu0 0.0
        %832 = vmatpush1.msra.mxu0 0.0
        %833 = vmatprep.subr.mxu0 0.0
        %834 = vmatpush1.msra.mxu0 0.0
        %835 = vmatprep.subr.mxu0 0.0
        %836 = vmatpush1.msra.mxu0 0.0
        %837 = vmatprep.mubr.f32.mxu0 0.0
        %838 = vmatmul.mubr.f32.gmra.mrb[0].mxu0 %v771
        %v839 = vpop.f32.mrb[0].mxu0
        %v840 = vadd.f32 0.0, %v839
        %v841 = vpop.f32.mrb[0].mxu0
        %842 = vmatprep.mubr.f32.mxu0 0.0
        %843 = vmatmul.mubr.f32.gmra.mrb[0].mxu0 %v772
        %v844 = vpop.f32.mrb[0].mxu0
        %v845 = vadd.f32 0.0, %v844
        %v846 = vpop.f32.mrb[0].mxu0
        %847 = vdwg.mxu0
        %848 = vmatprep.subr.mxu0 0.0
        %849 = vmatpush1.msra.mxu0 %v840
        %850 = vmatprep.subr.mxu0 0.0
        %851 = vmatpush1.msra.mxu0 %v845
        %852 = vmatprep.subr.mxu0 0.0
        %853 = vmatpush1.msra.mxu0 0.0
        %854 = vmatprep.subr.mxu0 0.0
        %855 = vmatpush1.msra.mxu0 0.0
        %856 = vmatprep.subr.mxu0 0.0
        %857 = vmatpush1.msra.mxu0 0.0
        %858 = vmatprep.subr.mxu0 0.0
        %859 = vmatpush1.msra.mxu0 0.0
        %860 = vmatprep.subr.mxu0 0.0
        %861 = vmatpush1.msra.mxu0 0.0
        %862 = vmatprep.subr.mxu0 0.0
        %863 = vmatpush1.msra.mxu0 0.0
        %864 = vmatprep.subr.mxu0 0.0
        %865 = vmatpush1.msra.mxu0 0.0
        %866 = vmatprep.subr.mxu0 0.0
        %867 = vmatpush1.msra.mxu0 0.0
        %868 = vmatprep.subr.mxu0 0.0
        %869 = vmatpush1.msra.mxu0 0.0
        %870 = vmatprep.subr.mxu0 0.0
        %871 = vmatpush1.msra.mxu0 0.0
        %872 = vmatprep.subr.mxu0 0.0
        %873 = vmatpush1.msra.mxu0 0.0
        %874 = vmatprep.subr.mxu0 0.0
        %875 = vmatpush1.msra.mxu0 0.0
        %876 = vmatprep.subr.mxu0 0.0
        %877 = vmatpush1.msra.mxu0 0.0
        %878 = vmatprep.subr.mxu0 0.0
        %879 = vmatpush1.msra.mxu0 0.0
        %880 = vmatprep.subr.mxu0 0.0
        %881 = vmatpush1.msra.mxu0 0.0
        %882 = vmatprep.subr.mxu0 0.0
        %883 = vmatpush1.msra.mxu0 0.0
        %884 = vmatprep.subr.mxu0 0.0
        %885 = vmatpush1.msra.mxu0 0.0
        %886 = vmatprep.subr.mxu0 0.0
        %887 = vmatpush1.msra.mxu0 0.0
        %888 = vmatprep.subr.mxu0 0.0
        %889 = vmatpush1.msra.mxu0 0.0
        %890 = vmatprep.subr.mxu0 0.0
        %891 = vmatpush1.msra.mxu0 0.0
        %892 = vmatprep.subr.mxu0 0.0
        %893 = vmatpush1.msra.mxu0 0.0
        %894 = vmatprep.subr.mxu0 0.0
        %895 = vmatpush1.msra.mxu0 0.0
        %896 = vmatprep.subr.mxu0 0.0
        %897 = vmatpush1.msra.mxu0 0.0
        %898 = vmatprep.subr.mxu0 0.0
        %899 = vmatpush1.msra.mxu0 0.0
        %900 = vmatprep.subr.mxu0 0.0
        %901 = vmatpush1.msra.mxu0 0.0
        %902 = vmatprep.subr.mxu0 0.0
        %903 = vmatpush1.msra.mxu0 0.0
        %904 = vmatprep.subr.mxu0 0.0
        %905 = vmatpush1.msra.mxu0 0.0
        %906 = vmatprep.subr.mxu0 0.0
        %907 = vmatpush1.msra.mxu0 0.0
        %908 = vmatprep.subr.mxu0 0.0
        %909 = vmatpush1.msra.mxu0 0.0
        %910 = vmatprep.subr.mxu0 0.0
        %911 = vmatpush1.msra.mxu0 0.0
        %912 = vmatprep.mubr.f32.mxu0 0.0
        %913 = vmatmul.mubr.f32.gmra.mrb[0].mxu0 %v389
        %v914 = vpop.f32.mrb[0].mxu0
        %v915 = vadd.f32 0.0, %v914
        %v916 = vpop.f32.mrb[0].mxu0
        %917 = vmatprep.mubr.f32.mxu0 0.0
        %918 = vmatmul.mubr.f32.gmra.mrb[0].mxu0 %v392
        %v919 = vpop.f32.mrb[0].mxu0
        %v920 = vadd.f32 0.0, %v919
        %v921 = vpop.f32.mrb[0].mxu0
        %922 = vdwg.mxu0
        %v923 = vmul.f32 %v308, %v310
        %v924 = vmul.f32 %v309, %v311
        %925 = vmatprep.subr.mxu0 0.0
        %926 = vmatpush1.msra.mxu0 %v292
        %927 = vmatprep.subr.mxu0 0.0
        %928 = vmatpush1.msra.mxu0 %v293
        %929 = vmatprep.subr.mxu0 0.0
        %930 = vmatpush1.msra.mxu0 %v294
        %931 = vmatprep.subr.mxu0 0.0
        %932 = vmatpush1.msra.mxu0 %v295
        %933 = vmatprep.subr.mxu0 0.0
        %934 = vmatpush1.msra.mxu0 %v296
        %935 = vmatprep.subr.mxu0 0.0
        %936 = vmatpush1.msra.mxu0 %v297
        %937 = vmatprep.subr.mxu0 0.0
        %938 = vmatpush1.msra.mxu0 %v298
        %939 = vmatprep.subr.mxu0 0.0
        %940 = vmatpush1.msra.mxu0 %v299
        %941 = vmatprep.subr.mxu0 0.0
        %942 = vmatpush1.msra.mxu0 %v300
        %943 = vmatprep.subr.mxu0 0.0
        %944 = vmatpush1.msra.mxu0 %v301
        %945 = vmatprep.subr.mxu0 0.0
        %946 = vmatpush1.msra.mxu0 %v302
        %947 = vmatprep.subr.mxu0 0.0
        %948 = vmatpush1.msra.mxu0 %v303
        %949 = vmatprep.subr.mxu0 0.0
        %950 = vmatpush1.msra.mxu0 %v304
        %951 = vmatprep.subr.mxu0 0.0
        %952 = vmatpush1.msra.mxu0 %v305
        %953 = vmatprep.subr.mxu0 0.0
        %954 = vmatpush1.msra.mxu0 %v306
        %955 = vmatprep.subr.mxu0 0.0
        %956 = vmatpush1.msra.mxu0 %v307
        %957 = vmatprep.subr.mxu0 0.0
        %958 = vmatpush1.msra.mxu0 0.0
        %959 = vmatprep.subr.mxu0 0.0
        %960 = vmatpush1.msra.mxu0 0.0
        %961 = vmatprep.subr.mxu0 0.0
        %962 = vmatpush1.msra.mxu0 0.0
        %963 = vmatprep.subr.mxu0 0.0
        %964 = vmatpush1.msra.mxu0 0.0
        %965 = vmatprep.subr.mxu0 0.0
        %966 = vmatpush1.msra.mxu0 0.0
        %967 = vmatprep.subr.mxu0 0.0
        %968 = vmatpush1.msra.mxu0 0.0
        %969 = vmatprep.subr.mxu0 0.0
        %970 = vmatpush1.msra.mxu0 0.0
        %971 = vmatprep.subr.mxu0 0.0
        %972 = vmatpush1.msra.mxu0 0.0
        %973 = vmatprep.subr.mxu0 0.0
        %974 = vmatpush1.msra.mxu0 0.0
        %975 = vmatprep.subr.mxu0 0.0
        %976 = vmatpush1.msra.mxu0 0.0
        %977 = vmatprep.subr.mxu0 0.0
        %978 = vmatpush1.msra.mxu0 0.0
        %979 = vmatprep.subr.mxu0 0.0
        %980 = vmatpush1.msra.mxu0 0.0
        %981 = vmatprep.subr.mxu0 0.0
        %982 = vmatpush1.msra.mxu0 0.0
        %983 = vmatprep.subr.mxu0 0.0
        %984 = vmatpush1.msra.mxu0 0.0
        %985 = vmatprep.subr.mxu0 0.0
        %986 = vmatpush1.msra.mxu0 0.0
        %987 = vmatprep.subr.mxu0 0.0
        %988 = vmatpush1.msra.mxu0 0.0
        %989 = vmatprep.mubr.f32.mxu0 0.0
        %990 = vmatmul.mubr.f32.gmra.mrb[0].mxu0 %v923
        %v991 = vpop.f32.mrb[0].mxu0
        %v992 = vadd.f32 0.0, %v991
        %v993 = vpop.f32.mrb[0].mxu0
        %994 = vmatprep.mubr.f32.mxu0 0.0
        %995 = vmatmul.mubr.f32.gmra.mrb[0].mxu0 %v924
        %v996 = vpop.f32.mrb[0].mxu0
        %v997 = vadd.f32 0.0, %v996
        %v998 = vpop.f32.mrb[0].mxu0
        %999 = vdwg.mxu0
        %1000 = vmatprep.subr.mxu0 0.0
        %1001 = vmatpush1.msra.mxu0 %v992
        %1002 = vmatprep.subr.mxu0 0.0
        %1003 = vmatpush1.msra.mxu0 %v997
        %1004 = vmatprep.subr.mxu0 0.0
        %1005 = vmatpush1.msra.mxu0 0.0
        %1006 = vmatprep.subr.mxu0 0.0
        %1007 = vmatpush1.msra.mxu0 0.0
        %1008 = vmatprep.subr.mxu0 0.0
        %1009 = vmatpush1.msra.mxu0 0.0
        %1010 = vmatprep.subr.mxu0 0.0
        %1011 = vmatpush1.msra.mxu0 0.0
        %1012 = vmatprep.subr.mxu0 0.0
        %1013 = vmatpush1.msra.mxu0 0.0
        %1014 = vmatprep.subr.mxu0 0.0
        %1015 = vmatpush1.msra.mxu0 0.0
        %1016 = vmatprep.subr.mxu0 0.0
        %1017 = vmatpush1.msra.mxu0 0.0
        %1018 = vmatprep.subr.mxu0 0.0
        %1019 = vmatpush1.msra.mxu0 0.0
        %1020 = vmatprep.subr.mxu0 0.0
        %1021 = vmatpush1.msra.mxu0 0.0
        %1022 = vmatprep.subr.mxu0 0.0
        %1023 = vmatpush1.msra.mxu0 0.0
        %1024 = vmatprep.subr.mxu0 0.0
        %1025 = vmatpush1.msra.mxu0 0.0
        %1026 = vmatprep.subr.mxu0 0.0
        %1027 = vmatpush1.msra.mxu0 0.0
        %1028 = vmatprep.subr.mxu0 0.0
        %1029 = vmatpush1.msra.mxu0 0.0
        %1030 = vmatprep.subr.mxu0 0.0
        %1031 = vmatpush1.msra.mxu0 0.0
        %1032 = vmatprep.subr.mxu0 0.0
        %1033 = vmatpush1.msra.mxu0 0.0
        %1034 = vmatprep.subr.mxu0 0.0
        %1035 = vmatpush1.msra.mxu0 0.0
        %1036 = vmatprep.subr.mxu0 0.0
        %1037 = vmatpush1.msra.mxu0 0.0
        %1038 = vmatprep.subr.mxu0 0.0
        %1039 = vmatpush1.msra.mxu0 0.0
        %1040 = vmatprep.subr.mxu0 0.0
        %1041 = vmatpush1.msra.mxu0 0.0
        %1042 = vmatprep.subr.mxu0 0.0
        %1043 = vmatpush1.msra.mxu0 0.0
        %1044 = vmatprep.subr.mxu0 0.0
        %1045 = vmatpush1.msra.mxu0 0.0
        %1046 = vmatprep.subr.mxu0 0.0
        %1047 = vmatpush1.msra.mxu0 0.0
        %1048 = vmatprep.subr.mxu0 0.0
        %1049 = vmatpush1.msra.mxu0 0.0
        %1050 = vmatprep.subr.mxu0 0.0
        %1051 = vmatpush1.msra.mxu0 0.0
        %1052 = vmatprep.subr.mxu0 0.0
        %1053 = vmatpush1.msra.mxu0 0.0
        %1054 = vmatprep.subr.mxu0 0.0
        %1055 = vmatpush1.msra.mxu0 0.0
        %1056 = vmatprep.subr.mxu0 0.0
        %1057 = vmatpush1.msra.mxu0 0.0
        %1058 = vmatprep.subr.mxu0 0.0
        %1059 = vmatpush1.msra.mxu0 0.0
        %1060 = vmatprep.subr.mxu0 0.0
        %1061 = vmatpush1.msra.mxu0 0.0
        %1062 = vmatprep.subr.mxu0 0.0
        %1063 = vmatpush1.msra.mxu0 0.0
        %1064 = vmatprep.mubr.f32.mxu0 0.0
        %1065 = vmatmul.mubr.f32.gmra.mrb[0].mxu0 %v389
        %v1066 = vpop.f32.mrb[0].mxu0
        %v1067 = vadd.f32 0.0, %v1066
        %v1068 = vpop.f32.mrb[0].mxu0
        %1069 = vmatprep.mubr.f32.mxu0 0.0
        %1070 = vmatmul.mubr.f32.gmra.mrb[0].mxu0 %v392
        %v1071 = vpop.f32.mrb[0].mxu0
        %v1072 = vadd.f32 0.0, %v1071
        %v1073 = vpop.f32.mrb[0].mxu0
        %1074 = vdwg.mxu0
        %v1075 = vmul.f32 %v461, %v461
        %v1076 = vmul.f32 %v466, %v466
        %v1077 = vmul.f32 %v611, %v611
        %v1078 = vmul.f32 %v616, %v616
        %v1079 = vmul.f32 %v461, %v611
        %v1080 = vmul.f32 %v466, %v616
        %v1081 = vsub.f32 %v763, %v1075
        %v1082 = vsub.f32 %v768, %v1076
        %v1083 = vsub.f32 %v915, %v1077
        %v1084 = vsub.f32 %v920, %v1078
        %v1085 = vsub.f32 %v1067, %v1079
        %v1086 = vsub.f32 %v1072, %v1080
        %v1087 = vmul.f32 %v1079, 2.0
        %v1088 = vmul.f32 %v1080, 2.0
        %v1089 = vadd.f32 %v1087, 0.0001
        %v1090 = vadd.f32 %v1088, 0.0001
        %v1091 = vmul.f32 %v1085, 2.0
        %v1092 = vmul.f32 %v1086, 2.0
        %v1093 = vadd.f32 %v1091, 0.0009
        %v1094 = vadd.f32 %v1092, 0.0009
        %v1095 = vmul.f32 %v1089, %v1093
        %v1096 = vmul.f32 %v1090, %v1094
        %v1097 = vadd.f32 %v1075, %v1077
        %v1098 = vadd.f32 %v1076, %v1078
        %v1099 = vadd.f32 %v1097, 0.0001
        %v1100 = vadd.f32 %v1098, 0.0001
        %v1101 = vadd.f32 %v1081, %v1083
        %v1102 = vadd.f32 %v1082, %v1084
        %v1103 = vadd.f32 %v1101, 0.0009
        %v1104 = vadd.f32 %v1102, 0.0009
        %v1105 = vmul.f32 %v1099, %v1103
        %v1106 = vmul.f32 %v1100, %v1104
        %v1107 = vrcp.pop %v1105
        %v1108 = vrcp.pop %v1106
        %v1109 = vmul.f32 %v1105, %v1107
        %v1110 = vmul.f32 %v1106, %v1108
        %v1111 = vsub.f32 2.0, %v1109
        %v1112 = vsub.f32 2.0, %v1110
        %v1113 = vmul.f32 %v1107, %v1111
        %v1114 = vmul.f32 %v1108, %v1112
        %v1115 = vmul.f32 %v1095, %v1113
        %v1116 = vmul.f32 %v1096, %v1114
        %v1117 = vsub.f32 1.0, %v1115
        %v1118 = vsub.f32 1.0, %v1116
        %v1119 = vmax.f32 %v1117, 0.0
        %v1120 = vmax.f32 %v1118, 0.0
        %v1121 = vmin.f32 %v1119, 1.0
        %v1122 = vmin.f32 %v1120, 1.0
        %v1123 = vmul.f32 %v1121, 0.5
        %v1124 = vmul.f32 %v1122, 0.5
        %1125 = vst [vmem:[%s286] sm:$0xff] %v1123
        %1126 = vst [vmem:[%s286 + $0x8] sm:$0xff] %v1124
        %s1127 = scalar_lea.vmem %s240, 16 [#allocation2]
        %v1128 = vld [vmem:[%s1127] sm:$0xff]
        %v1129 = vld [vmem:[%s1127 + $0x8] sm:$0xff]
        %s1130 = scalar_lea.vmem %s249, 16 [#allocation5]
        %v1131 = vld [vmem:[%s1130] sm:$0xff]
        %v1132 = vld [vmem:[%s1130 + $0x8] sm:$0xff]
        %1133 = vmatprep.subr.mxu0 0.0
        %1134 = vmatpush1.msra.mxu0 %v292
        %1135 = vmatprep.subr.mxu0 0.0
        %1136 = vmatpush1.msra.mxu0 %v293
        %1137 = vmatprep.subr.mxu0 0.0
        %1138 = vmatpush1.msra.mxu0 %v294
        %1139 = vmatprep.subr.mxu0 0.0
        %1140 = vmatpush1.msra.mxu0 %v295
        %1141 = vmatprep.subr.mxu0 0.0
        %1142 = vmatpush1.msra.mxu0 %v296
        %1143 = vmatprep.subr.mxu0 0.0
        %1144 = vmatpush1.msra.mxu0 %v297
        %1145 = vmatprep.subr.mxu0 0.0
        %1146 = vmatpush1.msra.mxu0 %v298
        %1147 = vmatprep.subr.mxu0 0.0
        %1148 = vmatpush1.msra.mxu0 %v299
        %1149 = vmatprep.subr.mxu0 0.0
        %1150 = vmatpush1.msra.mxu0 %v300
        %1151 = vmatprep.subr.mxu0 0.0
        %1152 = vmatpush1.msra.mxu0 %v301
        %1153 = vmatprep.subr.mxu0 0.0
        %1154 = vmatpush1.msra.mxu0 %v302
        %1155 = vmatprep.subr.mxu0 0.0
        %1156 = vmatpush1.msra.mxu0 %v303
        %1157 = vmatprep.subr.mxu0 0.0
        %1158 = vmatpush1.msra.mxu0 %v304
        %1159 = vmatprep.subr.mxu0 0.0
        %1160 = vmatpush1.msra.mxu0 %v305
        %1161 = vmatprep.subr.mxu0 0.0
        %1162 = vmatpush1.msra.mxu0 %v306
        %1163 = vmatprep.subr.mxu0 0.0
        %1164 = vmatpush1.msra.mxu0 %v307
        %1165 = vmatprep.subr.mxu0 0.0
        %1166 = vmatpush1.msra.mxu0 0.0
        %1167 = vmatprep.subr.mxu0 0.0
        %1168 = vmatpush1.msra.mxu0 0.0
        %1169 = vmatprep.subr.mxu0 0.0
        %1170 = vmatpush1.msra.mxu0 0.0
        %1171 = vmatprep.subr.mxu0 0.0
        %1172 = vmatpush1.msra.mxu0 0.0
        %1173 = vmatprep.subr.mxu0 0.0
        %1174 = vmatpush1.msra.mxu0 0.0
        %1175 = vmatprep.subr.mxu0 0.0
        %1176 = vmatpush1.msra.mxu0 0.0
        %1177 = vmatprep.subr.mxu0 0.0
        %1178 = vmatpush1.msra.mxu0 0.0
        %1179 = vmatprep.subr.mxu0 0.0
        %1180 = vmatpush1.msra.mxu0 0.0
        %1181 = vmatprep.subr.mxu0 0.0
        %1182 = vmatpush1.msra.mxu0 0.0
        %1183 = vmatprep.subr.mxu0 0.0
        %1184 = vmatpush1.msra.mxu0 0.0
        %1185 = vmatprep.subr.mxu0 0.0
        %1186 = vmatpush1.msra.mxu0 0.0
        %1187 = vmatprep.subr.mxu0 0.0
        %1188 = vmatpush1.msra.mxu0 0.0
        %1189 = vmatprep.subr.mxu0 0.0
        %1190 = vmatpush1.msra.mxu0 0.0
        %1191 = vmatprep.subr.mxu0 0.0
        %1192 = vmatpush1.msra.mxu0 0.0
        %1193 = vmatprep.subr.mxu0 0.0
        %1194 = vmatpush1.msra.mxu0 0.0
        %1195 = vmatprep.subr.mxu0 0.0
        %1196 = vmatpush1.msra.mxu0 0.0
        %1197 = vmatprep.mubr.f32.mxu0 0.0
        %1198 = vmatmul.mubr.f32.gmra.mrb[0].mxu0 %v1128
        %v1199 = vpop.f32.mrb[0].mxu0
        %v1200 = vadd.f32 0.0, %v1199
        %v1201 = vpop.f32.mrb[0].mxu0
        %1202 = vmatprep.mubr.f32.mxu0 0.0
        %1203 = vmatmul.mubr.f32.gmra.mrb[0].mxu0 %v1129
        %v1204 = vpop.f32.mrb[0].mxu0
        %v1205 = vadd.f32 0.0, %v1204
        %v1206 = vpop.f32.mrb[0].mxu0
        %1207 = vdwg.mxu0
        %1208 = vmatprep.subr.mxu0 0.0
        %1209 = vmatpush1.msra.mxu0 %v1200
        %1210 = vmatprep.subr.mxu0 0.0
        %1211 = vmatpush1.msra.mxu0 %v1205
        %1212 = vmatprep.subr.mxu0 0.0
        %1213 = vmatpush1.msra.mxu0 0.0
        %1214 = vmatprep.subr.mxu0 0.0
        %1215 = vmatpush1.msra.mxu0 0.0
        %1216 = vmatprep.subr.mxu0 0.0
        %1217 = vmatpush1.msra.mxu0 0.0
        %1218 = vmatprep.subr.mxu0 0.0
        %1219 = vmatpush1.msra.mxu0 0.0
        %1220 = vmatprep.subr.mxu0 0.0
        %1221 = vmatpush1.msra.mxu0 0.0
        %1222 = vmatprep.subr.mxu0 0.0
        %1223 = vmatpush1.msra.mxu0 0.0
        %1224 = vmatprep.subr.mxu0 0.0
        %1225 = vmatpush1.msra.mxu0 0.0
        %1226 = vmatprep.subr.mxu0 0.0
        %1227 = vmatpush1.msra.mxu0 0.0
        %1228 = vmatprep.subr.mxu0 0.0
        %1229 = vmatpush1.msra.mxu0 0.0
        %1230 = vmatprep.subr.mxu0 0.0
        %1231 = vmatpush1.msra.mxu0 0.0
        %1232 = vmatprep.subr.mxu0 0.0
        %1233 = vmatpush1.msra.mxu0 0.0
        %1234 = vmatprep.subr.mxu0 0.0
        %1235 = vmatpush1.msra.mxu0 0.0
        %1236 = vmatprep.subr.mxu0 0.0
        %1237 = vmatpush1.msra.mxu0 0.0
        %1238 = vmatprep.subr.mxu0 0.0
        %1239 = vmatpush1.msra.mxu0 0.0
        %1240 = vmatprep.subr.mxu0 0.0
        %1241 = vmatpush1.msra.mxu0 0.0
        %1242 = vmatprep.subr.mxu0 0.0
        %1243 = vmatpush1.msra.mxu0 0.0
        %1244 = vmatprep.subr.mxu0 0.0
        %1245 = vmatpush1.msra.mxu0 0.0
        %1246 = vmatprep.subr.mxu0 0.0
        %1247 = vmatpush1.msra.mxu0 0.0
        %1248 = vmatprep.subr.mxu0 0.0
        %1249 = vmatpush1.msra.mxu0 0.0
        %1250 = vmatprep.subr.mxu0 0.0
        %1251 = vmatpush1.msra.mxu0 0.0
        %1252 = vmatprep.subr.mxu0 0.0
        %1253 = vmatpush1.msra.mxu0 0.0
        %1254 = vmatprep.subr.mxu0 0.0
        %1255 = vmatpush1.msra.mxu0 0.0
        %1256 = vmatprep.subr.mxu0 0.0
        %1257 = vmatpush1.msra.mxu0 0.0
        %1258 = vmatprep.subr.mxu0 0.0
        %1259 = vmatpush1.msra.mxu0 0.0
        %1260 = vmatprep.subr.mxu0 0.0
        %1261 = vmatpush1.msra.mxu0 0.0
        %1262 = vmatprep.subr.mxu0 0.0
        %1263 = vmatpush1.msra.mxu0 0.0
        %1264 = vmatprep.subr.mxu0 0.0
        %1265 = vmatpush1.msra.mxu0 0.0
        %1266 = vmatprep.subr.mxu0 0.0
        %1267 = vmatpush1.msra.mxu0 0.0
        %1268 = vmatprep.subr.mxu0 0.0
        %1269 = vmatpush1.msra.mxu0 0.0
        %1270 = vmatprep.subr.mxu0 0.0
        %1271 = vmatpush1.msra.mxu0 0.0
        %1272 = vmatprep.mubr.f32.mxu0 0.0
        %1273 = vmatmul.mubr.f32.gmra.mrb[0].mxu0 %v389
        %v1274 = vpop.f32.mrb[0].mxu0
        %v1275 = vadd.f32 0.0, %v1274
        %v1276 = vpop.f32.mrb[0].mxu0
        %1277 = vmatprep.mubr.f32.mxu0 0.0
        %1278 = vmatmul.mubr.f32.gmra.mrb[0].mxu0 %v392
        %v1279 = vpop.f32.mrb[0].mxu0
        %v1280 = vadd.f32 0.0, %v1279
        %v1281 = vpop.f32.mrb[0].mxu0
        %1282 = vdwg.mxu0
        %1283 = vmatprep.subr.mxu0 0.0
        %1284 = vmatpush1.msra.mxu0 %v292
        %1285 = vmatprep.subr.mxu0 0.0
        %1286 = vmatpush1.msra.mxu0 %v293
        %1287 = vmatprep.subr.mxu0 0.0
        %1288 = vmatpush1.msra.mxu0 %v294
        %1289 = vmatprep.subr.mxu0 0.0
        %1290 = vmatpush1.msra.mxu0 %v295
        %1291 = vmatprep.subr.mxu0 0.0
        %1292 = vmatpush1.msra.mxu0 %v296
        %1293 = vmatprep.subr.mxu0 0.0
        %1294 = vmatpush1.msra.mxu0 %v297
        %1295 = vmatprep.subr.mxu0 0.0
        %1296 = vmatpush1.msra.mxu0 %v298
        %1297 = vmatprep.subr.mxu0 0.0
        %1298 = vmatpush1.msra.mxu0 %v299
        %1299 = vmatprep.subr.mxu0 0.0
        %1300 = vmatpush1.msra.mxu0 %v300
        %1301 = vmatprep.subr.mxu0 0.0
        %1302 = vmatpush1.msra.mxu0 %v301
        %1303 = vmatprep.subr.mxu0 0.0
        %1304 = vmatpush1.msra.mxu0 %v302
        %1305 = vmatprep.subr.mxu0 0.0
        %1306 = vmatpush1.msra.mxu0 %v303
        %1307 = vmatprep.subr.mxu0 0.0
        %1308 = vmatpush1.msra.mxu0 %v304
        %1309 = vmatprep.subr.mxu0 0.0
        %1310 = vmatpush1.msra.mxu0 %v305
        %1311 = vmatprep.subr.mxu0 0.0
        %1312 = vmatpush1.msra.mxu0 %v306
        %1313 = vmatprep.subr.mxu0 0.0
        %1314 = vmatpush1.msra.mxu0 %v307
        %1315 = vmatprep.subr.mxu0 0.0
        %1316 = vmatpush1.msra.mxu0 0.0
        %1317 = vmatprep.subr.mxu0 0.0
        %1318 = vmatpush1.msra.mxu0 0.0
        %1319 = vmatprep.subr.mxu0 0.0
        %1320 = vmatpush1.msra.mxu0 0.0
        %1321 = vmatprep.subr.mxu0 0.0
        %1322 = vmatpush1.msra.mxu0 0.0
        %1323 = vmatprep.subr.mxu0 0.0
        %1324 = vmatpush1.msra.mxu0 0.0
        %1325 = vmatprep.subr.mxu0 0.0
        %1326 = vmatpush1.msra.mxu0 0.0
        %1327 = vmatprep.subr.mxu0 0.0
        %1328 = vmatpush1.msra.mxu0 0.0
        %1329 = vmatprep.subr.mxu0 0.0
        %1330 = vmatpush1.msra.mxu0 0.0
        %1331 = vmatprep.subr.mxu0 0.0
        %1332 = vmatpush1.msra.mxu0 0.0
        %1333 = vmatprep.subr.mxu0 0.0
        %1334 = vmatpush1.msra.mxu0 0.0
        %1335 = vmatprep.subr.mxu0 0.0
        %1336 = vmatpush1.msra.mxu0 0.0
        %1337 = vmatprep.subr.mxu0 0.0
        %1338 = vmatpush1.msra.mxu0 0.0
        %1339 = vmatprep.subr.mxu0 0.0
        %1340 = vmatpush1.msra.mxu0 0.0
        %1341 = vmatprep.subr.mxu0 0.0
        %1342 = vmatpush1.msra.mxu0 0.0
        %1343 = vmatprep.subr.mxu0 0.0
        %1344 = vmatpush1.msra.mxu0 0.0
        %1345 = vmatprep.subr.mxu0 0.0
        %1346 = vmatpush1.msra.mxu0 0.0
        %1347 = vmatprep.mubr.f32.mxu0 0.0
        %1348 = vmatmul.mubr.f32.gmra.mrb[0].mxu0 %v1131
        %v1349 = vpop.f32.mrb[0].mxu0
        %v1350 = vadd.f32 0.0, %v1349
        %v1351 = vpop.f32.mrb[0].mxu0
        %1352 = vmatprep.mubr.f32.mxu0 0.0
        %1353 = vmatmul.mubr.f32.gmra.mrb[0].mxu0 %v1132
        %v1354 = vpop.f32.mrb[0].mxu0
        %v1355 = vadd.f32 0.0, %v1354
        %v1356 = vpop.f32.mrb[0].mxu0
        %1357 = vdwg.mxu0
        %1358 = vmatprep.subr.mxu0 0.0
        %1359 = vmatpush1.msra.mxu0 %v1350
        %1360 = vmatprep.subr.mxu0 0.0
        %1361 = vmatpush1.msra.mxu0 %v1355
        %1362 = vmatprep.subr.mxu0 0.0
        %1363 = vmatpush1.msra.mxu0 0.0
        %1364 = vmatprep.subr.mxu0 0.0
        %1365 = vmatpush1.msra.mxu0 0.0
        %1366 = vmatprep.subr.mxu0 0.0
        %1367 = vmatpush1.msra.mxu0 0.0
        %1368 = vmatprep.subr.mxu0 0.0
        %1369 = vmatpush1.msra.mxu0 0.0
        %1370 = vmatprep.subr.mxu0 0.0
        %1371 = vmatpush1.msra.mxu0 0.0
        %1372 = vmatprep.subr.mxu0 0.0
        %1373 = vmatpush1.msra.mxu0 0.0
        %1374 = vmatprep.subr.mxu0 0.0
        %1375 = vmatpush1.msra.mxu0 0.0
        %1376 = vmatprep.subr.mxu0 0.0
        %1377 = vmatpush1.msra.mxu0 0.0
        %1378 = vmatprep.subr.mxu0 0.0
        %1379 = vmatpush1.msra.mxu0 0.0
        %1380 = vmatprep.subr.mxu0 0.0
        %1381 = vmatpush1.msra.mxu0 0.0
        %1382 = vmatprep.subr.mxu0 0.0
        %1383 = vmatpush1.msra.mxu0 0.0
        %1384 = vmatprep.subr.mxu0 0.0
        %1385 = vmatpush1.msra.mxu0 0.0
        %1386 = vmatprep.subr.mxu0 0.0
        %1387 = vmatpush1.msra.mxu0 0.0
        %1388 = vmatprep.subr.mxu0 0.0
        %1389 = vmatpush1.msra.mxu0 0.0
        %1390 = vmatprep.subr.mxu0 0.0
        %1391 = vmatpush1.msra.mxu0 0.0
        %1392 = vmatprep.subr.mxu0 0.0
        %1393 = vmatpush1.msra.mxu0 0.0
        %1394 = vmatprep.subr.mxu0 0.0
        %1395 = vmatpush1.msra.mxu0 0.0
        %1396 = vmatprep.subr.mxu0 0.0
        %1397 = vmatpush1.msra.mxu0 0.0
        %1398 = vmatprep.subr.mxu0 0.0
        %1399 = vmatpush1.msra.mxu0 0.0
        %1400 = vmatprep.subr.mxu0 0.0
        %1401 = vmatpush1.msra.mxu0 0.0
        %1402 = vmatprep.subr.mxu0 0.0
        %1403 = vmatpush1.msra.mxu0 0.0
        %1404 = vmatprep.subr.mxu0 0.0
        %1405 = vmatpush1.msra.mxu0 0.0
        %1406 = vmatprep.subr.mxu0 0.0
        %1407 = vmatpush1.msra.mxu0 0.0
        %1408 = vmatprep.subr.mxu0 0.0
        %1409 = vmatpush1.msra.mxu0 0.0
        %1410 = vmatprep.subr.mxu0 0.0
        %1411 = vmatpush1.msra.mxu0 0.0
        %1412 = vmatprep.subr.mxu0 0.0
        %1413 = vmatpush1.msra.mxu0 0.0
        %1414 = vmatprep.subr.mxu0 0.0
        %1415 = vmatpush1.msra.mxu0 0.0
        %1416 = vmatprep.subr.mxu0 0.0
        %1417 = vmatpush1.msra.mxu0 0.0
        %1418 = vmatprep.subr.mxu0 0.0
        %1419 = vmatpush1.msra.mxu0 0.0
        %1420 = vmatprep.subr.mxu0 0.0
        %1421 = vmatpush1.msra.mxu0 0.0
        %1422 = vmatprep.mubr.f32.mxu0 0.0
        %1423 = vmatmul.mubr.f32.gmra.mrb[0].mxu0 %v389
        %v1424 = vpop.f32.mrb[0].mxu0
        %v1425 = vadd.f32 0.0, %v1424
        %v1426 = vpop.f32.mrb[0].mxu0
        %1427 = vmatprep.mubr.f32.mxu0 0.0
        %1428 = vmatmul.mubr.f32.gmra.mrb[0].mxu0 %v392
        %v1429 = vpop.f32.mrb[0].mxu0
        %v1430 = vadd.f32 0.0, %v1429
        %v1431 = vpop.f32.mrb[0].mxu0
        %1432 = vdwg.mxu0
        %v1433 = vmul.f32 %v1128, %v1128
        %v1434 = vmul.f32 %v1129, %v1129
        %1435 = vmatprep.subr.mxu0 0.0
        %1436 = vmatpush1.msra.mxu0 %v292
        %1437 = vmatprep.subr.mxu0 0.0
        %1438 = vmatpush1.msra.mxu0 %v293
        %1439 = vmatprep.subr.mxu0 0.0
        %1440 = vmatpush1.msra.mxu0 %v294
        %1441 = vmatprep.subr.mxu0 0.0
        %1442 = vmatpush1.msra.mxu0 %v295
        %1443 = vmatprep.subr.mxu0 0.0
        %1444 = vmatpush1.msra.mxu0 %v296
        %1445 = vmatprep.subr.mxu0 0.0
        %1446 = vmatpush1.msra.mxu0 %v297
        %1447 = vmatprep.subr.mxu0 0.0
        %1448 = vmatpush1.msra.mxu0 %v298
        %1449 = vmatprep.subr.mxu0 0.0
        %1450 = vmatpush1.msra.mxu0 %v299
        %1451 = vmatprep.subr.mxu0 0.0
        %1452 = vmatpush1.msra.mxu0 %v300
        %1453 = vmatprep.subr.mxu0 0.0
        %1454 = vmatpush1.msra.mxu0 %v301
        %1455 = vmatprep.subr.mxu0 0.0
        %1456 = vmatpush1.msra.mxu0 %v302
        %1457 = vmatprep.subr.mxu0 0.0
        %1458 = vmatpush1.msra.mxu0 %v303
        %1459 = vmatprep.subr.mxu0 0.0
        %1460 = vmatpush1.msra.mxu0 %v304
        %1461 = vmatprep.subr.mxu0 0.0
        %1462 = vmatpush1.msra.mxu0 %v305
        %1463 = vmatprep.subr.mxu0 0.0
        %1464 = vmatpush1.msra.mxu0 %v306
        %1465 = vmatprep.subr.mxu0 0.0
        %1466 = vmatpush1.msra.mxu0 %v307
        %1467 = vmatprep.subr.mxu0 0.0
        %1468 = vmatpush1.msra.mxu0 0.0
        %1469 = vmatprep.subr.mxu0 0.0
        %1470 = vmatpush1.msra.mxu0 0.0
        %1471 = vmatprep.subr.mxu0 0.0
        %1472 = vmatpush1.msra.mxu0 0.0
        %1473 = vmatprep.subr.mxu0 0.0
        %1474 = vmatpush1.msra.mxu0 0.0
        %1475 = vmatprep.subr.mxu0 0.0
        %1476 = vmatpush1.msra.mxu0 0.0
        %1477 = vmatprep.subr.mxu0 0.0
        %1478 = vmatpush1.msra.mxu0 0.0
        %1479 = vmatprep.subr.mxu0 0.0
        %1480 = vmatpush1.msra.mxu0 0.0
        %1481 = vmatprep.subr.mxu0 0.0
        %1482 = vmatpush1.msra.mxu0 0.0
        %1483 = vmatprep.subr.mxu0 0.0
        %1484 = vmatpush1.msra.mxu0 0.0
        %1485 = vmatprep.subr.mxu0 0.0
        %1486 = vmatpush1.msra.mxu0 0.0
        %1487 = vmatprep.subr.mxu0 0.0
        %1488 = vmatpush1.msra.mxu0 0.0
        %1489 = vmatprep.subr.mxu0 0.0
        %1490 = vmatpush1.msra.mxu0 0.0
        %1491 = vmatprep.subr.mxu0 0.0
        %1492 = vmatpush1.msra.mxu0 0.0
        %1493 = vmatprep.subr.mxu0 0.0
        %1494 = vmatpush1.msra.mxu0 0.0
        %1495 = vmatprep.subr.mxu0 0.0
        %1496 = vmatpush1.msra.mxu0 0.0
        %1497 = vmatprep.subr.mxu0 0.0
        %1498 = vmatpush1.msra.mxu0 0.0
        %1499 = vmatprep.mubr.f32.mxu0 0.0
        %1500 = vmatmul.mubr.f32.gmra.mrb[0].mxu0 %v1433
        %v1501 = vpop.f32.mrb[0].mxu0
        %v1502 = vadd.f32 0.0, %v1501
        %v1503 = vpop.f32.mrb[0].mxu0
        %1504 = vmatprep.mubr.f32.mxu0 0.0
        %1505 = vmatmul.mubr.f32.gmra.mrb[0].mxu0 %v1434
        %v1506 = vpop.f32.mrb[0].mxu0
        %v1507 = vadd.f32 0.0, %v1506
        %v1508 = vpop.f32.mrb[0].mxu0
        %1509 = vdwg.mxu0
        %1510 = vmatprep.subr.mxu0 0.0
        %1511 = vmatpush1.msra.mxu0 %v1502
        %1512 = vmatprep.subr.mxu0 0.0
        %1513 = vmatpush1.msra.mxu0 %v1507
        %1514 = vmatprep.subr.mxu0 0.0
        %1515 = vmatpush1.msra.mxu0 0.0
        %1516 = vmatprep.subr.mxu0 0.0
        %1517 = vmatpush1.msra.mxu0 0.0
        %1518 = vmatprep.subr.mxu0 0.0
        %1519 = vmatpush1.msra.mxu0 0.0
        %1520 = vmatprep.subr.mxu0 0.0
        %1521 = vmatpush1.msra.mxu0 0.0
        %1522 = vmatprep.subr.mxu0 0.0
        %1523 = vmatpush1.msra.mxu0 0.0
        %1524 = vmatprep.subr.mxu0 0.0
        %1525 = vmatpush1.msra.mxu0 0.0
        %1526 = vmatprep.subr.mxu0 0.0
        %1527 = vmatpush1.msra.mxu0 0.0
        %1528 = vmatprep.subr.mxu0 0.0
        %1529 = vmatpush1.msra.mxu0 0.0
        %1530 = vmatprep.subr.mxu0 0.0
        %1531 = vmatpush1.msra.mxu0 0.0
        %1532 = vmatprep.subr.mxu0 0.0
        %1533 = vmatpush1.msra.mxu0 0.0
        %1534 = vmatprep.subr.mxu0 0.0
        %1535 = vmatpush1.msra.mxu0 0.0
        %1536 = vmatprep.subr.mxu0 0.0
        %1537 = vmatpush1.msra.mxu0 0.0
        %1538 = vmatprep.subr.mxu0 0.0
        %1539 = vmatpush1.msra.mxu0 0.0
        %1540 = vmatprep.subr.mxu0 0.0
        %1541 = vmatpush1.msra.mxu0 0.0
        %1542 = vmatprep.subr.mxu0 0.0
        %1543 = vmatpush1.msra.mxu0 0.0
        %1544 = vmatprep.subr.mxu0 0.0
        %1545 = vmatpush1.msra.mxu0 0.0
        %1546 = vmatprep.subr.mxu0 0.0
        %1547 = vmatpush1.msra.mxu0 0.0
        %1548 = vmatprep.subr.mxu0 0.0
        %1549 = vmatpush1.msra.mxu0 0.0
        %1550 = vmatprep.subr.mxu0 0.0
        %1551 = vmatpush1.msra.mxu0 0.0
        %1552 = vmatprep.subr.mxu0 0.0
        %1553 = vmatpush1.msra.mxu0 0.0
        %1554 = vmatprep.subr.mxu0 0.0
        %1555 = vmatpush1.msra.mxu0 0.0
        %1556 = vmatprep.subr.mxu0 0.0
        %1557 = vmatpush1.msra.mxu0 0.0
        %1558 = vmatprep.subr.mxu0 0.0
        %1559 = vmatpush1.msra.mxu0 0.0
        %1560 = vmatprep.subr.mxu0 0.0
        %1561 = vmatpush1.msra.mxu0 0.0
        %1562 = vmatprep.subr.mxu0 0.0
        %1563 = vmatpush1.msra.mxu0 0.0
        %1564 = vmatprep.subr.mxu0 0.0
        %1565 = vmatpush1.msra.mxu0 0.0
        %1566 = vmatprep.subr.mxu0 0.0
        %1567 = vmatpush1.msra.mxu0 0.0
        %1568 = vmatprep.subr.mxu0 0.0
        %1569 = vmatpush1.msra.mxu0 0.0
        %1570 = vmatprep.subr.mxu0 0.0
        %1571 = vmatpush1.msra.mxu0 0.0
        %1572 = vmatprep.subr.mxu0 0.0
        %1573 = vmatpush1.msra.mxu0 0.0
        %1574 = vmatprep.mubr.f32.mxu0 0.0
        %1575 = vmatmul.mubr.f32.gmra.mrb[0].mxu0 %v389
        %v1576 = vpop.f32.mrb[0].mxu0
        %v1577 = vadd.f32 0.0, %v1576
        %v1578 = vpop.f32.mrb[0].mxu0
        %1579 = vmatprep.mubr.f32.mxu0 0.0
        %1580 = vmatmul.mubr.f32.gmra.mrb[0].mxu0 %v392
        %v1581 = vpop.f32.mrb[0].mxu0
        %v1582 = vadd.f32 0.0, %v1581
        %v1583 = vpop.f32.mrb[0].mxu0
        %1584 = vdwg.mxu0
        %v1585 = vmul.f32 %v1131, %v1131
        %v1586 = vmul.f32 %v1132, %v1132
        %1587 = vmatprep.subr.mxu0 0.0
        %1588 = vmatpush1.msra.mxu0 %v292
        %1589 = vmatprep.subr.mxu0 0.0
        %1590 = vmatpush1.msra.mxu0 %v293
        %1591 = vmatprep.subr.mxu0 0.0
        %1592 = vmatpush1.msra.mxu0 %v294
        %1593 = vmatprep.subr.mxu0 0.0
        %1594 = vmatpush1.msra.mxu0 %v295
        %1595 = vmatprep.subr.mxu0 0.0
        %1596 = vmatpush1.msra.mxu0 %v296
        %1597 = vmatprep.subr.mxu0 0.0
        %1598 = vmatpush1.msra.mxu0 %v297
        %1599 = vmatprep.subr.mxu0 0.0
        %1600 = vmatpush1.msra.mxu0 %v298
        %1601 = vmatprep.subr.mxu0 0.0
        %1602 = vmatpush1.msra.mxu0 %v299
        %1603 = vmatprep.subr.mxu0 0.0
        %1604 = vmatpush1.msra.mxu0 %v300
        %1605 = vmatprep.subr.mxu0 0.0
        %1606 = vmatpush1.msra.mxu0 %v301
        %1607 = vmatprep.subr.mxu0 0.0
        %1608 = vmatpush1.msra.mxu0 %v302
        %1609 = vmatprep.subr.mxu0 0.0
        %1610 = vmatpush1.msra.mxu0 %v303
        %1611 = vmatprep.subr.mxu0 0.0
        %1612 = vmatpush1.msra.mxu0 %v304
        %1613 = vmatprep.subr.mxu0 0.0
        %1614 = vmatpush1.msra.mxu0 %v305
        %1615 = vmatprep.subr.mxu0 0.0
        %1616 = vmatpush1.msra.mxu0 %v306
        %1617 = vmatprep.subr.mxu0 0.0
        %1618 = vmatpush1.msra.mxu0 %v307
        %1619 = vmatprep.subr.mxu0 0.0
        %1620 = vmatpush1.msra.mxu0 0.0
        %1621 = vmatprep.subr.mxu0 0.0
        %1622 = vmatpush1.msra.mxu0 0.0
        %1623 = vmatprep.subr.mxu0 0.0
        %1624 = vmatpush1.msra.mxu0 0.0
        %1625 = vmatprep.subr.mxu0 0.0
        %1626 = vmatpush1.msra.mxu0 0.0
        %1627 = vmatprep.subr.mxu0 0.0
        %1628 = vmatpush1.msra.mxu0 0.0
        %1629 = vmatprep.subr.mxu0 0.0
        %1630 = vmatpush1.msra.mxu0 0.0
        %1631 = vmatprep.subr.mxu0 0.0
        %1632 = vmatpush1.msra.mxu0 0.0
        %1633 = vmatprep.subr.mxu0 0.0
        %1634 = vmatpush1.msra.mxu0 0.0
        %1635 = vmatprep.subr.mxu0 0.0
        %1636 = vmatpush1.msra.mxu0 0.0
        %1637 = vmatprep.subr.mxu0 0.0
        %1638 = vmatpush1.msra.mxu0 0.0
        %1639 = vmatprep.subr.mxu0 0.0
        %1640 = vmatpush1.msra.mxu0 0.0
        %1641 = vmatprep.subr.mxu0 0.0
        %1642 = vmatpush1.msra.mxu0 0.0
        %1643 = vmatprep.subr.mxu0 0.0
        %1644 = vmatpush1.msra.mxu0 0.0
        %1645 = vmatprep.subr.mxu0 0.0
        %1646 = vmatpush1.msra.mxu0 0.0
        %1647 = vmatprep.subr.mxu0 0.0
        %1648 = vmatpush1.msra.mxu0 0.0
        %1649 = vmatprep.subr.mxu0 0.0
        %1650 = vmatpush1.msra.mxu0 0.0
        %1651 = vmatprep.mubr.f32.mxu0 0.0
        %1652 = vmatmul.mubr.f32.gmra.mrb[0].mxu0 %v1585
        %v1653 = vpop.f32.mrb[0].mxu0
        %v1654 = vadd.f32 0.0, %v1653
        %v1655 = vpop.f32.mrb[0].mxu0
        %1656 = vmatprep.mubr.f32.mxu0 0.0
        %1657 = vmatmul.mubr.f32.gmra.mrb[0].mxu0 %v1586
        %v1658 = vpop.f32.mrb[0].mxu0
        %v1659 = vadd.f32 0.0, %v1658
        %v1660 = vpop.f32.mrb[0].mxu0
        %1661 = vdwg.mxu0
        %1662 = vmatprep.subr.mxu0 0.0
        %1663 = vmatpush1.msra.mxu0 %v1654
        %1664 = vmatprep.subr.mxu0 0.0
        %1665 = vmatpush1.msra.mxu0 %v1659
        %1666 = vmatprep.subr.mxu0 0.0
        %1667 = vmatpush1.msra.mxu0 0.0
        %1668 = vmatprep.subr.mxu0 0.0
        %1669 = vmatpush1.msra.mxu0 0.0
        %1670 = vmatprep.subr.mxu0 0.0
        %1671 = vmatpush1.msra.mxu0 0.0
        %1672 = vmatprep.subr.mxu0 0.0
        %1673 = vmatpush1.msra.mxu0 0.0
        %1674 = vmatprep.subr.mxu0 0.0
        %1675 = vmatpush1.msra.mxu0 0.0
        %1676 = vmatprep.subr.mxu0 0.0
        %1677 = vmatpush1.msra.mxu0 0.0
        %1678 = vmatprep.subr.mxu0 0.0
        %1679 = vmatpush1.msra.mxu0 0.0
        %1680 = vmatprep.subr.mxu0 0.0
        %1681 = vmatpush1.msra.mxu0 0.0
        %1682 = vmatprep.subr.mxu0 0.0
        %1683 = vmatpush1.msra.mxu0 0.0
        %1684 = vmatprep.subr.mxu0 0.0
        %1685 = vmatpush1.msra.mxu0 0.0
        %1686 = vmatprep.subr.mxu0 0.0
        %1687 = vmatpush1.msra.mxu0 0.0
        %1688 = vmatprep.subr.mxu0 0.0
        %1689 = vmatpush1.msra.mxu0 0.0
        %1690 = vmatprep.subr.mxu0 0.0
        %1691 = vmatpush1.msra.mxu0 0.0
        %1692 = vmatprep.subr.mxu0 0.0
        %1693 = vmatpush1.msra.mxu0 0.0
        %1694 = vmatprep.subr.mxu0 0.0
        %1695 = vmatpush1.msra.mxu0 0.0
        %1696 = vmatprep.subr.mxu0 0.0
        %1697 = vmatpush1.msra.mxu0 0.0
        %1698 = vmatprep.subr.mxu0 0.0
        %1699 = vmatpush1.msra.mxu0 0.0
        %1700 = vmatprep.subr.mxu0 0.0
        %1701 = vmatpush1.msra.mxu0 0.0
        %1702 = vmatprep.subr.mxu0 0.0
        %1703 = vmatpush1.msra.mxu0 0.0
        %1704 = vmatprep.subr.mxu0 0.0
        %1705 = vmatpush1.msra.mxu0 0.0
        %1706 = vmatprep.subr.mxu0 0.0
        %1707 = vmatpush1.msra.mxu0 0.0
        %1708 = vmatprep.subr.mxu0 0.0
        %1709 = vmatpush1.msra.mxu0 0.0
        %1710 = vmatprep.subr.mxu0 0.0
        %1711 = vmatpush1.msra.mxu0 0.0
        %1712 = vmatprep.subr.mxu0 0.0
        %1713 = vmatpush1.msra.mxu0 0.0
        %1714 = vmatprep.subr.mxu0 0.0
        %1715 = vmatpush1.msra.mxu0 0.0
        %1716 = vmatprep.subr.mxu0 0.0
        %1717 = vmatpush1.msra.mxu0 0.0
        %1718 = vmatprep.subr.mxu0 0.0
        %1719 = vmatpush1.msra.mxu0 0.0
        %1720 = vmatprep.subr.mxu0 0.0
        %1721 = vmatpush1.msra.mxu0 0.0
        %1722 = vmatprep.subr.mxu0 0.0
        %1723 = vmatpush1.msra.mxu0 0.0
        %1724 = vmatprep.subr.mxu0 0.0
        %1725 = vmatpush1.msra.mxu0 0.0
        %1726 = vmatprep.mubr.f32.mxu0 0.0
        %1727 = vmatmul.mubr.f32.gmra.mrb[0].mxu0 %v389
        %v1728 = vpop.f32.mrb[0].mxu0
        %v1729 = vadd.f32 0.0, %v1728
        %v1730 = vpop.f32.mrb[0].mxu0
        %1731 = vmatprep.mubr.f32.mxu0 0.0
        %1732 = vmatmul.mubr.f32.gmra.mrb[0].mxu0 %v392
        %v1733 = vpop.f32.mrb[0].mxu0
        %v1734 = vadd.f32 0.0, %v1733
        %v1735 = vpop.f32.mrb[0].mxu0
        %1736 = vdwg.mxu0
        %v1737 = vmul.f32 %v1128, %v1131
        %v1738 = vmul.f32 %v1129, %v1132
        %1739 = vmatprep.subr.mxu0 0.0
        %1740 = vmatpush1.msra.mxu0 %v292
        %1741 = vmatprep.subr.mxu0 0.0
        %1742 = vmatpush1.msra.mxu0 %v293
        %1743 = vmatprep.subr.mxu0 0.0
        %1744 = vmatpush1.msra.mxu0 %v294
        %1745 = vmatprep.subr.mxu0 0.0
        %1746 = vmatpush1.msra.mxu0 %v295
        %1747 = vmatprep.subr.mxu0 0.0
        %1748 = vmatpush1.msra.mxu0 %v296
        %1749 = vmatprep.subr.mxu0 0.0
        %1750 = vmatpush1.msra.mxu0 %v297
        %1751 = vmatprep.subr.mxu0 0.0
        %1752 = vmatpush1.msra.mxu0 %v298
        %1753 = vmatprep.subr.mxu0 0.0
        %1754 = vmatpush1.msra.mxu0 %v299
        %1755 = vmatprep.subr.mxu0 0.0
        %1756 = vmatpush1.msra.mxu0 %v300
        %1757 = vmatprep.subr.mxu0 0.0
        %1758 = vmatpush1.msra.mxu0 %v301
        %1759 = vmatprep.subr.mxu0 0.0
        %1760 = vmatpush1.msra.mxu0 %v302
        %1761 = vmatprep.subr.mxu0 0.0
        %1762 = vmatpush1.msra.mxu0 %v303
        %1763 = vmatprep.subr.mxu0 0.0
        %1764 = vmatpush1.msra.mxu0 %v304
        %1765 = vmatprep.subr.mxu0 0.0
        %1766 = vmatpush1.msra.mxu0 %v305
        %1767 = vmatprep.subr.mxu0 0.0
        %1768 = vmatpush1.msra.mxu0 %v306
        %1769 = vmatprep.subr.mxu0 0.0
        %1770 = vmatpush1.msra.mxu0 %v307
        %1771 = vmatprep.subr.mxu0 0.0
        %1772 = vmatpush1.msra.mxu0 0.0
        %1773 = vmatprep.subr.mxu0 0.0
        %1774 = vmatpush1.msra.mxu0 0.0
        %1775 = vmatprep.subr.mxu0 0.0
        %1776 = vmatpush1.msra.mxu0 0.0
        %1777 = vmatprep.subr.mxu0 0.0
        %1778 = vmatpush1.msra.mxu0 0.0
        %1779 = vmatprep.subr.mxu0 0.0
        %1780 = vmatpush1.msra.mxu0 0.0
        %1781 = vmatprep.subr.mxu0 0.0
        %1782 = vmatpush1.msra.mxu0 0.0
        %1783 = vmatprep.subr.mxu0 0.0
        %1784 = vmatpush1.msra.mxu0 0.0
        %1785 = vmatprep.subr.mxu0 0.0
        %1786 = vmatpush1.msra.mxu0 0.0
        %1787 = vmatprep.subr.mxu0 0.0
        %1788 = vmatpush1.msra.mxu0 0.0
        %1789 = vmatprep.subr.mxu0 0.0
        %1790 = vmatpush1.msra.mxu0 0.0
        %1791 = vmatprep.subr.mxu0 0.0
        %1792 = vmatpush1.msra.mxu0 0.0
        %1793 = vmatprep.subr.mxu0 0.0
        %1794 = vmatpush1.msra.mxu0 0.0
        %1795 = vmatprep.subr.mxu0 0.0
        %1796 = vmatpush1.msra.mxu0 0.0
        %1797 = vmatprep.subr.mxu0 0.0
        %1798 = vmatpush1.msra.mxu0 0.0
        %1799 = vmatprep.subr.mxu0 0.0
        %1800 = vmatpush1.msra.mxu0 0.0
        %1801 = vmatprep.subr.mxu0 0.0
        %1802 = vmatpush1.msra.mxu0 0.0
        %1803 = vmatprep.mubr.f32.mxu0 0.0
        %1804 = vmatmul.mubr.f32.gmra.mrb[0].mxu0 %v1737
        %v1805 = vpop.f32.mrb[0].mxu0
        %v1806 = vadd.f32 0.0, %v1805
        %v1807 = vpop.f32.mrb[0].mxu0
        %1808 = vmatprep.mubr.f32.mxu0 0.0
        %1809 = vmatmul.mubr.f32.gmra.mrb[0].mxu0 %v1738
        %v1810 = vpop.f32.mrb[0].mxu0
        %v1811 = vadd.f32 0.0, %v1810
        %v1812 = vpop.f32.mrb[0].mxu0
        %1813 = vdwg.mxu0
        %1814 = vmatprep.subr.mxu0 0.0
        %1815 = vmatpush1.msra.mxu0 %v1806
        %1816 = vmatprep.subr.mxu0 0.0
        %1817 = vmatpush1.msra.mxu0 %v1811
        %1818 = vmatprep.subr.mxu0 0.0
        %1819 = vmatpush1.msra.mxu0 0.0
        %1820 = vmatprep.subr.mxu0 0.0
        %1821 = vmatpush1.msra.mxu0 0.0
        %1822 = vmatprep.subr.mxu0 0.0
        %1823 = vmatpush1.msra.mxu0 0.0
        %1824 = vmatprep.subr.mxu0 0.0
        %1825 = vmatpush1.msra.mxu0 0.0
        %1826 = vmatprep.subr.mxu0 0.0
        %1827 = vmatpush1.msra.mxu0 0.0
        %1828 = vmatprep.subr.mxu0 0.0
        %1829 = vmatpush1.msra.mxu0 0.0
        %1830 = vmatprep.subr.mxu0 0.0
        %1831 = vmatpush1.msra.mxu0 0.0
        %1832 = vmatprep.subr.mxu0 0.0
        %1833 = vmatpush1.msra.mxu0 0.0
        %1834 = vmatprep.subr.mxu0 0.0
        %1835 = vmatpush1.msra.mxu0 0.0
        %1836 = vmatprep.subr.mxu0 0.0
        %1837 = vmatpush1.msra.mxu0 0.0
        %1838 = vmatprep.subr.mxu0 0.0
        %1839 = vmatpush1.msra.mxu0 0.0
        %1840 = vmatprep.subr.mxu0 0.0
        %1841 = vmatpush1.msra.mxu0 0.0
        %1842 = vmatprep.subr.mxu0 0.0
        %1843 = vmatpush1.msra.mxu0 0.0
        %1844 = vmatprep.subr.mxu0 0.0
        %1845 = vmatpush1.msra.mxu0 0.0
        %1846 = vmatprep.subr.mxu0 0.0
        %1847 = vmatpush1.msra.mxu0 0.0
        %1848 = vmatprep.subr.mxu0 0.0
        %1849 = vmatpush1.msra.mxu0 0.0
        %1850 = vmatprep.subr.mxu0 0.0
        %1851 = vmatpush1.msra.mxu0 0.0
        %1852 = vmatprep.subr.mxu0 0.0
        %1853 = vmatpush1.msra.mxu0 0.0
        %1854 = vmatprep.subr.mxu0 0.0
        %1855 = vmatpush1.msra.mxu0 0.0
        %1856 = vmatprep.subr.mxu0 0.0
        %1857 = vmatpush1.msra.mxu0 0.0
        %1858 = vmatprep.subr.mxu0 0.0
        %1859 = vmatpush1.msra.mxu0 0.0
        %1860 = vmatprep.subr.mxu0 0.0
        %1861 = vmatpush1.msra.mxu0 0.0
        %1862 = vmatprep.subr.mxu0 0.0
        %1863 = vmatpush1.msra.mxu0 0.0
        %1864 = vmatprep.subr.mxu0 0.0
        %1865 = vmatpush1.msra.mxu0 0.0
        %1866 = vmatprep.subr.mxu0 0.0
        %1867 = vmatpush1.msra.mxu0 0.0
        %1868 = vmatprep.subr.mxu0 0.0
        %1869 = vmatpush1.msra.mxu0 0.0
        %1870 = vmatprep.subr.mxu0 0.0
        %1871 = vmatpush1.msra.mxu0 0.0
        %1872 = vmatprep.subr.mxu0 0.0
        %1873 = vmatpush1.msra.mxu0 0.0
        %1874 = vmatprep.subr.mxu0 0.0
        %1875 = vmatpush1.msra.mxu0 0.0
        %1876 = vmatprep.subr.mxu0 0.0
        %1877 = vmatpush1.msra.mxu0 0.0
        %1878 = vmatprep.mubr.f32.mxu0 0.0
        %1879 = vmatmul.mubr.f32.gmra.mrb[0].mxu0 %v389
        %v1880 = vpop.f32.mrb[0].mxu0
        %v1881 = vadd.f32 0.0, %v1880
        %v1882 = vpop.f32.mrb[0].mxu0
        %1883 = vmatprep.mubr.f32.mxu0 0.0
        %1884 = vmatmul.mubr.f32.gmra.mrb[0].mxu0 %v392
        %v1885 = vpop.f32.mrb[0].mxu0
        %v1886 = vadd.f32 0.0, %v1885
        %v1887 = vpop.f32.mrb[0].mxu0
        %1888 = vdwg.mxu0
        %v1889 = vmul.f32 %v1275, %v1275
        %v1890 = vmul.f32 %v1280, %v1280
        %v1891 = vmul.f32 %v1425, %v1425
        %v1892 = vmul.f32 %v1430, %v1430
        %v1893 = vmul.f32 %v1275, %v1425
        %v1894 = vmul.f32 %v1280, %v1430
        %v1895 = vsub.f32 %v1577, %v1889
        %v1896 = vsub.f32 %v1582, %v1890
        %v1897 = vsub.f32 %v1729, %v1891
        %v1898 = vsub.f32 %v1734, %v1892
        %v1899 = vsub.f32 %v1881, %v1893
        %v1900 = vsub.f32 %v1886, %v1894
        %v1901 = vmul.f32 %v1893, 2.0
        %v1902 = vmul.f32 %v1894, 2.0
        %v1903 = vadd.f32 %v1901, 0.0001
        %v1904 = vadd.f32 %v1902, 0.0001
        %v1905 = vmul.f32 %v1899, 2.0
        %v1906 = vmul.f32 %v1900, 2.0
        %v1907 = vadd.f32 %v1905, 0.0009
        %v1908 = vadd.f32 %v1906, 0.0009
        %v1909 = vmul.f32 %v1903, %v1907
        %v1910 = vmul.f32 %v1904, %v1908
        %v1911 = vadd.f32 %v1889, %v1891
        %v1912 = vadd.f32 %v1890, %v1892
        %v1913 = vadd.f32 %v1911, 0.0001
        %v1914 = vadd.f32 %v1912, 0.0001
        %v1915 = vadd.f32 %v1895, %v1897
        %v1916 = vadd.f32 %v1896, %v1898
        %v1917 = vadd.f32 %v1915, 0.0009
        %v1918 = vadd.f32 %v1916, 0.0009
        %v1919 = vmul.f32 %v1913, %v1917
        %v1920 = vmul.f32 %v1914, %v1918
        %v1921 = vrcp.pop %v1919
        %v1922 = vrcp.pop %v1920
        %v1923 = vmul.f32 %v1919, %v1921
        %v1924 = vmul.f32 %v1920, %v1922
        %v1925 = vsub.f32 2.0, %v1923
        %v1926 = vsub.f32 2.0, %v1924
        %v1927 = vmul.f32 %v1921, %v1925
        %v1928 = vmul.f32 %v1922, %v1926
        %v1929 = vmul.f32 %v1909, %v1927
        %v1930 = vmul.f32 %v1910, %v1928
        %v1931 = vsub.f32 1.0, %v1929
        %v1932 = vsub.f32 1.0, %v1930
        %v1933 = vmax.f32 %v1931, 0.0
        %v1934 = vmax.f32 %v1932, 0.0
        %v1935 = vmin.f32 %v1933, 1.0
        %v1936 = vmin.f32 %v1934, 1.0
        %v1937 = vmul.f32 %v1935, 0.5
        %v1938 = vmul.f32 %v1936, 0.5
        %s1939 = scalar_lea.vmem %s286, 16 [#allocation10]
        %1940 = vst [vmem:[%s1939] sm:$0xff] %v1937
        %1941 = vst [vmem:[%s1939 + $0x8] sm:$0xff] %v1938
        %s1942 = scalar_lea.vmem %s240, 32 [#allocation2]
        %v1943 = vld [vmem:[%s1942] sm:$0xff]
        %v1944 = vld [vmem:[%s1942 + $0x8] sm:$0xff]
        %s1945 = scalar_lea.vmem %s249, 32 [#allocation5]
        %v1946 = vld [vmem:[%s1945] sm:$0xff]
        %v1947 = vld [vmem:[%s1945 + $0x8] sm:$0xff]
        %1948 = vmatprep.subr.mxu0 0.0
        %1949 = vmatpush1.msra.mxu0 %v292
        %1950 = vmatprep.subr.mxu0 0.0
        %1951 = vmatpush1.msra.mxu0 %v293
        %1952 = vmatprep.subr.mxu0 0.0
        %1953 = vmatpush1.msra.mxu0 %v294
        %1954 = vmatprep.subr.mxu0 0.0
        %1955 = vmatpush1.msra.mxu0 %v295
        %1956 = vmatprep.subr.mxu0 0.0
        %1957 = vmatpush1.msra.mxu0 %v296
        %1958 = vmatprep.subr.mxu0 0.0
        %1959 = vmatpush1.msra.mxu0 %v297
        %1960 = vmatprep.subr.mxu0 0.0
        %1961 = vmatpush1.msra.mxu0 %v298
        %1962 = vmatprep.subr.mxu0 0.0
        %1963 = vmatpush1.msra.mxu0 %v299
        %1964 = vmatprep.subr.mxu0 0.0
        %1965 = vmatpush1.msra.mxu0 %v300
        %1966 = vmatprep.subr.mxu0 0.0
        %1967 = vmatpush1.msra.mxu0 %v301
        %1968 = vmatprep.subr.mxu0 0.0
        %1969 = vmatpush1.msra.mxu0 %v302
        %1970 = vmatprep.subr.mxu0 0.0
        %1971 = vmatpush1.msra.mxu0 %v303
        %1972 = vmatprep.subr.mxu0 0.0
        %1973 = vmatpush1.msra.mxu0 %v304
        %1974 = vmatprep.subr.mxu0 0.0
        %1975 = vmatpush1.msra.mxu0 %v305
        %1976 = vmatprep.subr.mxu0 0.0
        %1977 = vmatpush1.msra.mxu0 %v306
        %1978 = vmatprep.subr.mxu0 0.0
        %1979 = vmatpush1.msra.mxu0 %v307
        %1980 = vmatprep.subr.mxu0 0.0
        %1981 = vmatpush1.msra.mxu0 0.0
        %1982 = vmatprep.subr.mxu0 0.0
        %1983 = vmatpush1.msra.mxu0 0.0
        %1984 = vmatprep.subr.mxu0 0.0
        %1985 = vmatpush1.msra.mxu0 0.0
        %1986 = vmatprep.subr.mxu0 0.0
        %1987 = vmatpush1.msra.mxu0 0.0
        %1988 = vmatprep.subr.mxu0 0.0
        %1989 = vmatpush1.msra.mxu0 0.0
        %1990 = vmatprep.subr.mxu0 0.0
        %1991 = vmatpush1.msra.mxu0 0.0
        %1992 = vmatprep.subr.mxu0 0.0
        %1993 = vmatpush1.msra.mxu0 0.0
        %1994 = vmatprep.subr.mxu0 0.0
        %1995 = vmatpush1.msra.mxu0 0.0
        %1996 = vmatprep.subr.mxu0 0.0
        %1997 = vmatpush1.msra.mxu0 0.0
        %1998 = vmatprep.subr.mxu0 0.0
        %1999 = vmatpush1.msra.mxu0 0.0
        %2000 = vmatprep.subr.mxu0 0.0
        %2001 = vmatpush1.msra.mxu0 0.0
        %2002 = vmatprep.subr.mxu0 0.0
        %2003 = vmatpush1.msra.mxu0 0.0
        %2004 = vmatprep.subr.mxu0 0.0
        %2005 = vmatpush1.msra.mxu0 0.0
        %2006 = vmatprep.subr.mxu0 0.0
        %2007 = vmatpush1.msra.mxu0 0.0
        %2008 = vmatprep.subr.mxu0 0.0
        %2009 = vmatpush1.msra.mxu0 0.0
        %2010 = vmatprep.subr.mxu0 0.0
        %2011 = vmatpush1.msra.mxu0 0.0
        %2012 = vmatprep.mubr.f32.mxu0 0.0
        %2013 = vmatmul.mubr.f32.gmra.mrb[0].mxu0 %v1943
        %v2014 = vpop.f32.mrb[0].mxu0
        %v2015 = vadd.f32 0.0, %v2014
        %v2016 = vpop.f32.mrb[0].mxu0
        %2017 = vmatprep.mubr.f32.mxu0 0.0
        %2018 = vmatmul.mubr.f32.gmra.mrb[0].mxu0 %v1944
        %v2019 = vpop.f32.mrb[0].mxu0
        %v2020 = vadd.f32 0.0, %v2019
        %v2021 = vpop.f32.mrb[0].mxu0
        %2022 = vdwg.mxu0
        %2023 = vmatprep.subr.mxu0 0.0
        %2024 = vmatpush1.msra.mxu0 %v2015
        %2025 = vmatprep.subr.mxu0 0.0
        %2026 = vmatpush1.msra.mxu0 %v2020
        %2027 = vmatprep.subr.mxu0 0.0
        %2028 = vmatpush1.msra.mxu0 0.0
        %2029 = vmatprep.subr.mxu0 0.0
        %2030 = vmatpush1.msra.mxu0 0.0
        %2031 = vmatprep.subr.mxu0 0.0
        %2032 = vmatpush1.msra.mxu0 0.0
        %2033 = vmatprep.subr.mxu0 0.0
        %2034 = vmatpush1.msra.mxu0 0.0
        %2035 = vmatprep.subr.mxu0 0.0
        %2036 = vmatpush1.msra.mxu0 0.0
        %2037 = vmatprep.subr.mxu0 0.0
        %2038 = vmatpush1.msra.mxu0 0.0
        %2039 = vmatprep.subr.mxu0 0.0
        %2040 = vmatpush1.msra.mxu0 0.0
        %2041 = vmatprep.subr.mxu0 0.0
        %2042 = vmatpush1.msra.mxu0 0.0
        %2043 = vmatprep.subr.mxu0 0.0
        %2044 = vmatpush1.msra.mxu0 0.0
        %2045 = vmatprep.subr.mxu0 0.0
        %2046 = vmatpush1.msra.mxu0 0.0
        %2047 = vmatprep.subr.mxu0 0.0
        %2048 = vmatpush1.msra.mxu0 0.0
        %2049 = vmatprep.subr.mxu0 0.0
        %2050 = vmatpush1.msra.mxu0 0.0
        %2051 = vmatprep.subr.mxu0 0.0
        %2052 = vmatpush1.msra.mxu0 0.0
        %2053 = vmatprep.subr.mxu0 0.0
        %2054 = vmatpush1.msra.mxu0 0.0
        %2055 = vmatprep.subr.mxu0 0.0
        %2056 = vmatpush1.msra.mxu0 0.0
        %2057 = vmatprep.subr.mxu0 0.0
        %2058 = vmatpush1.msra.mxu0 0.0
        %2059 = vmatprep.subr.mxu0 0.0
        %2060 = vmatpush1.msra.mxu0 0.0
        %2061 = vmatprep.subr.mxu0 0.0
        %2062 = vmatpush1.msra.mxu0 0.0
        %2063 = vmatprep.subr.mxu0 0.0
        %2064 = vmatpush1.msra.mxu0 0.0
        %2065 = vmatprep.subr.mxu0 0.0
        %2066 = vmatpush1.msra.mxu0 0.0
        %2067 = vmatprep.subr.mxu0 0.0
        %2068 = vmatpush1.msra.mxu0 0.0
        %2069 = vmatprep.subr.mxu0 0.0
        %2070 = vmatpush1.msra.mxu0 0.0
        %2071 = vmatprep.subr.mxu0 0.0
        %2072 = vmatpush1.msra.mxu0 0.0
        %2073 = vmatprep.subr.mxu0 0.0
        %2074 = vmatpush1.msra.mxu0 0.0
        %2075 = vmatprep.subr.mxu0 0.0
        %2076 = vmatpush1.msra.mxu0 0.0
        %2077 = vmatprep.subr.mxu0 0.0
        %2078 = vmatpush1.msra.mxu0 0.0
        %2079 = vmatprep.subr.mxu0 0.0
        %2080 = vmatpush1.msra.mxu0 0.0
        %2081 = vmatprep.subr.mxu0 0.0
        %2082 = vmatpush1.msra.mxu0 0.0
        %2083 = vmatprep.subr.mxu0 0.0
        %2084 = vmatpush1.msra.mxu0 0.0
        %2085 = vmatprep.subr.mxu0 0.0
        %2086 = vmatpush1.msra.mxu0 0.0
        %2087 = vmatprep.mubr.f32.mxu0 0.0
        %2088 = vmatmul.mubr.f32.gmra.mrb[0].mxu0 %v389
        %v2089 = vpop.f32.mrb[0].mxu0
        %v2090 = vadd.f32 0.0, %v2089
        %v2091 = vpop.f32.mrb[0].mxu0
        %2092 = vmatprep.mubr.f32.mxu0 0.0
        %2093 = vmatmul.mubr.f32.gmra.mrb[0].mxu0 %v392
        %v2094 = vpop.f32.mrb[0].mxu0
        %v2095 = vadd.f32 0.0, %v2094
        %v2096 = vpop.f32.mrb[0].mxu0
        %2097 = vdwg.mxu0
        %2098 = vmatprep.subr.mxu0 0.0
        %2099 = vmatpush1.msra.mxu0 %v292
        %2100 = vmatprep.subr.mxu0 0.0
        %2101 = vmatpush1.msra.mxu0 %v293
        %2102 = vmatprep.subr.mxu0 0.0
        %2103 = vmatpush1.msra.mxu0 %v294
        %2104 = vmatprep.subr.mxu0 0.0
        %2105 = vmatpush1.msra.mxu0 %v295
        %2106 = vmatprep.subr.mxu0 0.0
        %2107 = vmatpush1.msra.mxu0 %v296
        %2108 = vmatprep.subr.mxu0 0.0
        %2109 = vmatpush1.msra.mxu0 %v297
        %2110 = vmatprep.subr.mxu0 0.0
        %2111 = vmatpush1.msra.mxu0 %v298
        %2112 = vmatprep.subr.mxu0 0.0
        %2113 = vmatpush1.msra.mxu0 %v299
        %2114 = vmatprep.subr.mxu0 0.0
        %2115 = vmatpush1.msra.mxu0 %v300
        %2116 = vmatprep.subr.mxu0 0.0
        %2117 = vmatpush1.msra.mxu0 %v301
        %2118 = vmatprep.subr.mxu0 0.0
        %2119 = vmatpush1.msra.mxu0 %v302
        %2120 = vmatprep.subr.mxu0 0.0
        %2121 = vmatpush1.msra.mxu0 %v303
        %2122 = vmatprep.subr.mxu0 0.0
        %2123 = vmatpush1.msra.mxu0 %v304
        %2124 = vmatprep.subr.mxu0 0.0
        %2125 = vmatpush1.msra.mxu0 %v305
        %2126 = vmatprep.subr.mxu0 0.0
        %2127 = vmatpush1.msra.mxu0 %v306
        %2128 = vmatprep.subr.mxu0 0.0
        %2129 = vmatpush1.msra.mxu0 %v307
        %2130 = vmatprep.subr.mxu0 0.0
        %2131 = vmatpush1.msra.mxu0 0.0
        %2132 = vmatprep.subr.mxu0 0.0
        %2133 = vmatpush1.msra.mxu0 0.0
        %2134 = vmatprep.subr.mxu0 0.0
        %2135 = vmatpush1.msra.mxu0 0.0
        %2136 = vmatprep.subr.mxu0 0.0
        %2137 = vmatpush1.msra.mxu0 0.0
        %2138 = vmatprep.subr.mxu0 0.0
        %2139 = vmatpush1.msra.mxu0 0.0
        %2140 = vmatprep.subr.mxu0 0.0
        %2141 = vmatpush1.msra.mxu0 0.0
        %2142 = vmatprep.subr.mxu0 0.0
        %2143 = vmatpush1.msra.mxu0 0.0
        %2144 = vmatprep.subr.mxu0 0.0
        %2145 = vmatpush1.msra.mxu0 0.0
        %2146 = vmatprep.subr.mxu0 0.0
        %2147 = vmatpush1.msra.mxu0 0.0
        %2148 = vmatprep.subr.mxu0 0.0
        %2149 = vmatpush1.msra.mxu0 0.0
        %2150 = vmatprep.subr.mxu0 0.0
        %2151 = vmatpush1.msra.mxu0 0.0
        %2152 = vmatprep.subr.mxu0 0.0
        %2153 = vmatpush1.msra.mxu0 0.0
        %2154 = vmatprep.subr.mxu0 0.0
        %2155 = vmatpush1.msra.mxu0 0.0
        %2156 = vmatprep.subr.mxu0 0.0
        %2157 = vmatpush1.msra.mxu0 0.0
        %2158 = vmatprep.subr.mxu0 0.0
        %2159 = vmatpush1.msra.mxu0 0.0
        %2160 = vmatprep.subr.mxu0 0.0
        %2161 = vmatpush1.msra.mxu0 0.0
        %2162 = vmatprep.mubr.f32.mxu0 0.0
        %2163 = vmatmul.mubr.f32.gmra.mrb[0].mxu0 %v1946
        %v2164 = vpop.f32.mrb[0].mxu0
        %v2165 = vadd.f32 0.0, %v2164
        %v2166 = vpop.f32.mrb[0].mxu0
        %2167 = vmatprep.mubr.f32.mxu0 0.0
        %2168 = vmatmul.mubr.f32.gmra.mrb[0].mxu0 %v1947
        %v2169 = vpop.f32.mrb[0].mxu0
        %v2170 = vadd.f32 0.0, %v2169
        %v2171 = vpop.f32.mrb[0].mxu0
        %2172 = vdwg.mxu0
        %2173 = vmatprep.subr.mxu0 0.0
        %2174 = vmatpush1.msra.mxu0 %v2165
        %2175 = vmatprep.subr.mxu0 0.0
        %2176 = vmatpush1.msra.mxu0 %v2170
        %2177 = vmatprep.subr.mxu0 0.0
        %2178 = vmatpush1.msra.mxu0 0.0
        %2179 = vmatprep.subr.mxu0 0.0
        %2180 = vmatpush1.msra.mxu0 0.0
        %2181 = vmatprep.subr.mxu0 0.0
        %2182 = vmatpush1.msra.mxu0 0.0
        %2183 = vmatprep.subr.mxu0 0.0
        %2184 = vmatpush1.msra.mxu0 0.0
        %2185 = vmatprep.subr.mxu0 0.0
        %2186 = vmatpush1.msra.mxu0 0.0
        %2187 = vmatprep.subr.mxu0 0.0
        %2188 = vmatpush1.msra.mxu0 0.0
        %2189 = vmatprep.subr.mxu0 0.0
        %2190 = vmatpush1.msra.mxu0 0.0
        %2191 = vmatprep.subr.mxu0 0.0
        %2192 = vmatpush1.msra.mxu0 0.0
        %2193 = vmatprep.subr.mxu0 0.0
        %2194 = vmatpush1.msra.mxu0 0.0
        %2195 = vmatprep.subr.mxu0 0.0
        %2196 = vmatpush1.msra.mxu0 0.0
        %2197 = vmatprep.subr.mxu0 0.0
        %2198 = vmatpush1.msra.mxu0 0.0
        %2199 = vmatprep.subr.mxu0 0.0
        %2200 = vmatpush1.msra.mxu0 0.0
        %2201 = vmatprep.subr.mxu0 0.0
        %2202 = vmatpush1.msra.mxu0 0.0
        %2203 = vmatprep.subr.mxu0 0.0
        %2204 = vmatpush1.msra.mxu0 0.0
        %2205 = vmatprep.subr.mxu0 0.0
        %2206 = vmatpush1.msra.mxu0 0.0
        %2207 = vmatprep.subr.mxu0 0.0
        %2208 = vmatpush1.msra.mxu0 0.0
        %2209 = vmatprep.subr.mxu0 0.0
        %2210 = vmatpush1.msra.mxu0 0.0
        %2211 = vmatprep.subr.mxu0 0.0
        %2212 = vmatpush1.msra.mxu0 0.0
        %2213 = vmatprep.subr.mxu0 0.0
        %2214 = vmatpush1.msra.mxu0 0.0
        %2215 = vmatprep.subr.mxu0 0.0
        %2216 = vmatpush1.msra.mxu0 0.0
        %2217 = vmatprep.subr.mxu0 0.0
        %2218 = vmatpush1.msra.mxu0 0.0
        %2219 = vmatprep.subr.mxu0 0.0
        %2220 = vmatpush1.msra.mxu0 0.0
        %2221 = vmatprep.subr.mxu0 0.0
        %2222 = vmatpush1.msra.mxu0 0.0
        %2223 = vmatprep.subr.mxu0 0.0
        %2224 = vmatpush1.msra.mxu0 0.0
        %2225 = vmatprep.subr.mxu0 0.0
        %2226 = vmatpush1.msra.mxu0 0.0
        %2227 = vmatprep.subr.mxu0 0.0
        %2228 = vmatpush1.msra.mxu0 0.0
        %2229 = vmatprep.subr.mxu0 0.0
        %2230 = vmatpush1.msra.mxu0 0.0
        %2231 = vmatprep.subr.mxu0 0.0
        %2232 = vmatpush1.msra.mxu0 0.0
        %2233 = vmatprep.subr.mxu0 0.0
        %2234 = vmatpush1.msra.mxu0 0.0
        %2235 = vmatprep.subr.mxu0 0.0
        %2236 = vmatpush1.msra.mxu0 0.0
        %2237 = vmatprep.mubr.f32.mxu0 0.0
        %2238 = vmatmul.mubr.f32.gmra.mrb[0].mxu0 %v389
        %v2239 = vpop.f32.mrb[0].mxu0
        %v2240 = vadd.f32 0.0, %v2239
        %v2241 = vpop.f32.mrb[0].mxu0
        %2242 = vmatprep.mubr.f32.mxu0 0.0
        %2243 = vmatmul.mubr.f32.gmra.mrb[0].mxu0 %v392
        %v2244 = vpop.f32.mrb[0].mxu0
        %v2245 = vadd.f32 0.0, %v2244
        %v2246 = vpop.f32.mrb[0].mxu0
        %2247 = vdwg.mxu0
        %v2248 = vmul.f32 %v1943, %v1943
        %v2249 = vmul.f32 %v1944, %v1944
        %2250 = vmatprep.subr.mxu0 0.0
        %2251 = vmatpush1.msra.mxu0 %v292
        %2252 = vmatprep.subr.mxu0 0.0
        %2253 = vmatpush1.msra.mxu0 %v293
        %2254 = vmatprep.subr.mxu0 0.0
        %2255 = vmatpush1.msra.mxu0 %v294
        %2256 = vmatprep.subr.mxu0 0.0
        %2257 = vmatpush1.msra.mxu0 %v295
        %2258 = vmatprep.subr.mxu0 0.0
        %2259 = vmatpush1.msra.mxu0 %v296
        %2260 = vmatprep.subr.mxu0 0.0
        %2261 = vmatpush1.msra.mxu0 %v297
        %2262 = vmatprep.subr.mxu0 0.0
        %2263 = vmatpush1.msra.mxu0 %v298
        %2264 = vmatprep.subr.mxu0 0.0
        %2265 = vmatpush1.msra.mxu0 %v299
        %2266 = vmatprep.subr.mxu0 0.0
        %2267 = vmatpush1.msra.mxu0 %v300
        %2268 = vmatprep.subr.mxu0 0.0
        %2269 = vmatpush1.msra.mxu0 %v301
        %2270 = vmatprep.subr.mxu0 0.0
        %2271 = vmatpush1.msra.mxu0 %v302
        %2272 = vmatprep.subr.mxu0 0.0
        %2273 = vmatpush1.msra.mxu0 %v303
        %2274 = vmatprep.subr.mxu0 0.0
        %2275 = vmatpush1.msra.mxu0 %v304
        %2276 = vmatprep.subr.mxu0 0.0
        %2277 = vmatpush1.msra.mxu0 %v305
        %2278 = vmatprep.subr.mxu0 0.0
        %2279 = vmatpush1.msra.mxu0 %v306
        %2280 = vmatprep.subr.mxu0 0.0
        %2281 = vmatpush1.msra.mxu0 %v307
        %2282 = vmatprep.subr.mxu0 0.0
        %2283 = vmatpush1.msra.mxu0 0.0
        %2284 = vmatprep.subr.mxu0 0.0
        %2285 = vmatpush1.msra.mxu0 0.0
        %2286 = vmatprep.subr.mxu0 0.0
        %2287 = vmatpush1.msra.mxu0 0.0
        %2288 = vmatprep.subr.mxu0 0.0
        %2289 = vmatpush1.msra.mxu0 0.0
        %2290 = vmatprep.subr.mxu0 0.0
        %2291 = vmatpush1.msra.mxu0 0.0
        %2292 = vmatprep.subr.mxu0 0.0
        %2293 = vmatpush1.msra.mxu0 0.0
        %2294 = vmatprep.subr.mxu0 0.0
        %2295 = vmatpush1.msra.mxu0 0.0
        %2296 = vmatprep.subr.mxu0 0.0
        %2297 = vmatpush1.msra.mxu0 0.0
        %2298 = vmatprep.subr.mxu0 0.0
        %2299 = vmatpush1.msra.mxu0 0.0
        %2300 = vmatprep.subr.mxu0 0.0
        %2301 = vmatpush1.msra.mxu0 0.0
        %2302 = vmatprep.subr.mxu0 0.0
        %2303 = vmatpush1.msra.mxu0 0.0
        %2304 = vmatprep.subr.mxu0 0.0
        %2305 = vmatpush1.msra.mxu0 0.0
        %2306 = vmatprep.subr.mxu0 0.0
        %2307 = vmatpush1.msra.mxu0 0.0
        %2308 = vmatprep.subr.mxu0 0.0
        %2309 = vmatpush1.msra.mxu0 0.0
        %2310 = vmatprep.subr.mxu0 0.0
        %2311 = vmatpush1.msra.mxu0 0.0
        %2312 = vmatprep.subr.mxu0 0.0
        %2313 = vmatpush1.msra.mxu0 0.0
        %2314 = vmatprep.mubr.f32.mxu0 0.0
        %2315 = vmatmul.mubr.f32.gmra.mrb[0].mxu0 %v2248
        %v2316 = vpop.f32.mrb[0].mxu0
        %v2317 = vadd.f32 0.0, %v2316
        %v2318 = vpop.f32.mrb[0].mxu0
        %2319 = vmatprep.mubr.f32.mxu0 0.0
        %2320 = vmatmul.mubr.f32.gmra.mrb[0].mxu0 %v2249
        %v2321 = vpop.f32.mrb[0].mxu0
        %v2322 = vadd.f32 0.0, %v2321
        %v2323 = vpop.f32.mrb[0].mxu0
        %2324 = vdwg.mxu0
        %2325 = vmatprep.subr.mxu0 0.0
        %2326 = vmatpush1.msra.mxu0 %v2317
        %2327 = vmatprep.subr.mxu0 0.0
        %2328 = vmatpush1.msra.mxu0 %v2322
        %2329 = vmatprep.subr.mxu0 0.0
        %2330 = vmatpush1.msra.mxu0 0.0
        %2331 = vmatprep.subr.mxu0 0.0
        %2332 = vmatpush1.msra.mxu0 0.0
        %2333 = vmatprep.subr.mxu0 0.0
        %2334 = vmatpush1.msra.mxu0 0.0
        %2335 = vmatprep.subr.mxu0 0.0
        %2336 = vmatpush1.msra.mxu0 0.0
        %2337 = vmatprep.subr.mxu0 0.0
        %2338 = vmatpush1.msra.mxu0 0.0
        %2339 = vmatprep.subr.mxu0 0.0
        %2340 = vmatpush1.msra.mxu0 0.0
        %2341 = vmatprep.subr.mxu0 0.0
        %2342 = vmatpush1.msra.mxu0 0.0
        %2343 = vmatprep.subr.mxu0 0.0
        %2344 = vmatpush1.msra.mxu0 0.0
        %2345 = vmatprep.subr.mxu0 0.0
        %2346 = vmatpush1.msra.mxu0 0.0
        %2347 = vmatprep.subr.mxu0 0.0
        %2348 = vmatpush1.msra.mxu0 0.0
        %2349 = vmatprep.subr.mxu0 0.0
        %2350 = vmatpush1.msra.mxu0 0.0
        %2351 = vmatprep.subr.mxu0 0.0
        %2352 = vmatpush1.msra.mxu0 0.0
        %2353 = vmatprep.subr.mxu0 0.0
        %2354 = vmatpush1.msra.mxu0 0.0
        %2355 = vmatprep.subr.mxu0 0.0
        %2356 = vmatpush1.msra.mxu0 0.0
        %2357 = vmatprep.subr.mxu0 0.0
        %2358 = vmatpush1.msra.mxu0 0.0
        %2359 = vmatprep.subr.mxu0 0.0
        %2360 = vmatpush1.msra.mxu0 0.0
        %2361 = vmatprep.subr.mxu0 0.0
        %2362 = vmatpush1.msra.mxu0 0.0
        %2363 = vmatprep.subr.mxu0 0.0
        %2364 = vmatpush1.msra.mxu0 0.0
        %2365 = vmatprep.subr.mxu0 0.0
        %2366 = vmatpush1.msra.mxu0 0.0
        %2367 = vmatprep.subr.mxu0 0.0
        %2368 = vmatpush1.msra.mxu0 0.0
        %2369 = vmatprep.subr.mxu0 0.0
        %2370 = vmatpush1.msra.mxu0 0.0
        %2371 = vmatprep.subr.mxu0 0.0
        %2372 = vmatpush1.msra.mxu0 0.0
        %2373 = vmatprep.subr.mxu0 0.0
        %2374 = vmatpush1.msra.mxu0 0.0
        %2375 = vmatprep.subr.mxu0 0.0
        %2376 = vmatpush1.msra.mxu0 0.0
        %2377 = vmatprep.subr.mxu0 0.0
        %2378 = vmatpush1.msra.mxu0 0.0
        %2379 = vmatprep.subr.mxu0 0.0
        %2380 = vmatpush1.msra.mxu0 0.0
        %2381 = vmatprep.subr.mxu0 0.0
        %2382 = vmatpush1.msra.mxu0 0.0
        %2383 = vmatprep.subr.mxu0 0.0
        %2384 = vmatpush1.msra.mxu0 0.0
        %2385 = vmatprep.subr.mxu0 0.0
        %2386 = vmatpush1.msra.mxu0 0.0
        %2387 = vmatprep.subr.mxu0 0.0
        %2388 = vmatpush1.msra.mxu0 0.0
        %2389 = vmatprep.mubr.f32.mxu0 0.0
        %2390 = vmatmul.mubr.f32.gmra.mrb[0].mxu0 %v389
        %v2391 = vpop.f32.mrb[0].mxu0
        %v2392 = vadd.f32 0.0, %v2391
        %v2393 = vpop.f32.mrb[0].mxu0
        %2394 = vmatprep.mubr.f32.mxu0 0.0
        %2395 = vmatmul.mubr.f32.gmra.mrb[0].mxu0 %v392
        %v2396 = vpop.f32.mrb[0].mxu0
        %v2397 = vadd.f32 0.0, %v2396
        %v2398 = vpop.f32.mrb[0].mxu0
        %2399 = vdwg.mxu0
        %v2400 = vmul.f32 %v1946, %v1946
        %v2401 = vmul.f32 %v1947, %v1947
        %2402 = vmatprep.subr.mxu0 0.0
        %2403 = vmatpush1.msra.mxu0 %v292
        %2404 = vmatprep.subr.mxu0 0.0
        %2405 = vmatpush1.msra.mxu0 %v293
        %2406 = vmatprep.subr.mxu0 0.0
        %2407 = vmatpush1.msra.mxu0 %v294
        %2408 = vmatprep.subr.mxu0 0.0
        %2409 = vmatpush1.msra.mxu0 %v295
        %2410 = vmatprep.subr.mxu0 0.0
        %2411 = vmatpush1.msra.mxu0 %v296
        %2412 = vmatprep.subr.mxu0 0.0
        %2413 = vmatpush1.msra.mxu0 %v297
        %2414 = vmatprep.subr.mxu0 0.0
        %2415 = vmatpush1.msra.mxu0 %v298
        %2416 = vmatprep.subr.mxu0 0.0
        %2417 = vmatpush1.msra.mxu0 %v299
        %2418 = vmatprep.subr.mxu0 0.0
        %2419 = vmatpush1.msra.mxu0 %v300
        %2420 = vmatprep.subr.mxu0 0.0
        %2421 = vmatpush1.msra.mxu0 %v301
        %2422 = vmatprep.subr.mxu0 0.0
        %2423 = vmatpush1.msra.mxu0 %v302
        %2424 = vmatprep.subr.mxu0 0.0
        %2425 = vmatpush1.msra.mxu0 %v303
        %2426 = vmatprep.subr.mxu0 0.0
        %2427 = vmatpush1.msra.mxu0 %v304
        %2428 = vmatprep.subr.mxu0 0.0
        %2429 = vmatpush1.msra.mxu0 %v305
        %2430 = vmatprep.subr.mxu0 0.0
        %2431 = vmatpush1.msra.mxu0 %v306
        %2432 = vmatprep.subr.mxu0 0.0
        %2433 = vmatpush1.msra.mxu0 %v307
        %2434 = vmatprep.subr.mxu0 0.0
        %2435 = vmatpush1.msra.mxu0 0.0
        %2436 = vmatprep.subr.mxu0 0.0
        %2437 = vmatpush1.msra.mxu0 0.0
        %2438 = vmatprep.subr.mxu0 0.0
        %2439 = vmatpush1.msra.mxu0 0.0
        %2440 = vmatprep.subr.mxu0 0.0
        %2441 = vmatpush1.msra.mxu0 0.0
        %2442 = vmatprep.subr.mxu0 0.0
        %2443 = vmatpush1.msra.mxu0 0.0
        %2444 = vmatprep.subr.mxu0 0.0
        %2445 = vmatpush1.msra.mxu0 0.0
        %2446 = vmatprep.subr.mxu0 0.0
        %2447 = vmatpush1.msra.mxu0 0.0
        %2448 = vmatprep.subr.mxu0 0.0
        %2449 = vmatpush1.msra.mxu0 0.0
        %2450 = vmatprep.subr.mxu0 0.0
        %2451 = vmatpush1.msra.mxu0 0.0
        %2452 = vmatprep.subr.mxu0 0.0
        %2453 = vmatpush1.msra.mxu0 0.0
        %2454 = vmatprep.subr.mxu0 0.0
        %2455 = vmatpush1.msra.mxu0 0.0
        %2456 = vmatprep.subr.mxu0 0.0
        %2457 = vmatpush1.msra.mxu0 0.0
        %2458 = vmatprep.subr.mxu0 0.0
        %2459 = vmatpush1.msra.mxu0 0.0
        %2460 = vmatprep.subr.mxu0 0.0
        %2461 = vmatpush1.msra.mxu0 0.0
        %2462 = vmatprep.subr.mxu0 0.0
        %2463 = vmatpush1.msra.mxu0 0.0
        %2464 = vmatprep.subr.mxu0 0.0
        %2465 = vmatpush1.msra.mxu0 0.0
        %2466 = vmatprep.mubr.f32.mxu0 0.0
        %2467 = vmatmul.mubr.f32.gmra.mrb[0].mxu0 %v2400
        %v2468 = vpop.f32.mrb[0].mxu0
        %v2469 = vadd.f32 0.0, %v2468
        %v2470 = vpop.f32.mrb[0].mxu0
        %2471 = vmatprep.mubr.f32.mxu0 0.0
        %2472 = vmatmul.mubr.f32.gmra.mrb[0].mxu0 %v2401
        %v2473 = vpop.f32.mrb[0].mxu0
        %v2474 = vadd.f32 0.0, %v2473
        %v2475 = vpop.f32.mrb[0].mxu0
        %2476 = vdwg.mxu0
        %2477 = vmatprep.subr.mxu0 0.0
        %2478 = vmatpush1.msra.mxu0 %v2469
        %2479 = vmatprep.subr.mxu0 0.0
        %2480 = vmatpush1.msra.mxu0 %v2474
        %2481 = vmatprep.subr.mxu0 0.0
        %2482 = vmatpush1.msra.mxu0 0.0
        %2483 = vmatprep.subr.mxu0 0.0
        %2484 = vmatpush1.msra.mxu0 0.0
        %2485 = vmatprep.subr.mxu0 0.0
        %2486 = vmatpush1.msra.mxu0 0.0
        %2487 = vmatprep.subr.mxu0 0.0
        %2488 = vmatpush1.msra.mxu0 0.0
        %2489 = vmatprep.subr.mxu0 0.0
        %2490 = vmatpush1.msra.mxu0 0.0
        %2491 = vmatprep.subr.mxu0 0.0
        %2492 = vmatpush1.msra.mxu0 0.0
        %2493 = vmatprep.subr.mxu0 0.0
        %2494 = vmatpush1.msra.mxu0 0.0
        %2495 = vmatprep.subr.mxu0 0.0
        %2496 = vmatpush1.msra.mxu0 0.0
        %2497 = vmatprep.subr.mxu0 0.0
        %2498 = vmatpush1.msra.mxu0 0.0
        %2499 = vmatprep.subr.mxu0 0.0
        %2500 = vmatpush1.msra.mxu0 0.0
        %2501 = vmatprep.subr.mxu0 0.0
        %2502 = vmatpush1.msra.mxu0 0.0
        %2503 = vmatprep.subr.mxu0 0.0
        %2504 = vmatpush1.msra.mxu0 0.0
        %2505 = vmatprep.subr.mxu0 0.0
        %2506 = vmatpush1.msra.mxu0 0.0
        %2507 = vmatprep.subr.mxu0 0.0
        %2508 = vmatpush1.msra.mxu0 0.0
        %2509 = vmatprep.subr.mxu0 0.0
        %2510 = vmatpush1.msra.mxu0 0.0
        %2511 = vmatprep.subr.mxu0 0.0
        %2512 = vmatpush1.msra.mxu0 0.0
        %2513 = vmatprep.subr.mxu0 0.0
        %2514 = vmatpush1.msra.mxu0 0.0
        %2515 = vmatprep.subr.mxu0 0.0
        %2516 = vmatpush1.msra.mxu0 0.0
        %2517 = vmatprep.subr.mxu0 0.0
        %2518 = vmatpush1.msra.mxu0 0.0
        %2519 = vmatprep.subr.mxu0 0.0
        %2520 = vmatpush1.msra.mxu0 0.0
        %2521 = vmatprep.subr.mxu0 0.0
        %2522 = vmatpush1.msra.mxu0 0.0
        %2523 = vmatprep.subr.mxu0 0.0
        %2524 = vmatpush1.msra.mxu0 0.0
        %2525 = vmatprep.subr.mxu0 0.0
        %2526 = vmatpush1.msra.mxu0 0.0
        %2527 = vmatprep.subr.mxu0 0.0
        %2528 = vmatpush1.msra.mxu0 0.0
        %2529 = vmatprep.subr.mxu0 0.0
        %2530 = vmatpush1.msra.mxu0 0.0
        %2531 = vmatprep.subr.mxu0 0.0
        %2532 = vmatpush1.msra.mxu0 0.0
        %2533 = vmatprep.subr.mxu0 0.0
        %2534 = vmatpush1.msra.mxu0 0.0
        %2535 = vmatprep.subr.mxu0 0.0
        %2536 = vmatpush1.msra.mxu0 0.0
        %2537 = vmatprep.subr.mxu0 0.0
        %2538 = vmatpush1.msra.mxu0 0.0
        %2539 = vmatprep.subr.mxu0 0.0
        %2540 = vmatpush1.msra.mxu0 0.0
        %2541 = vmatprep.mubr.f32.mxu0 0.0
        %2542 = vmatmul.mubr.f32.gmra.mrb[0].mxu0 %v389
        %v2543 = vpop.f32.mrb[0].mxu0
        %v2544 = vadd.f32 0.0, %v2543
        %v2545 = vpop.f32.mrb[0].mxu0
        %2546 = vmatprep.mubr.f32.mxu0 0.0
        %2547 = vmatmul.mubr.f32.gmra.mrb[0].mxu0 %v392
        %v2548 = vpop.f32.mrb[0].mxu0
        %v2549 = vadd.f32 0.0, %v2548
        %v2550 = vpop.f32.mrb[0].mxu0
        %2551 = vdwg.mxu0
        %v2552 = vmul.f32 %v1943, %v1946
        %v2553 = vmul.f32 %v1944, %v1947
        %2554 = vmatprep.subr.mxu0 0.0
        %2555 = vmatpush1.msra.mxu0 %v292
        %2556 = vmatprep.subr.mxu0 0.0
        %2557 = vmatpush1.msra.mxu0 %v293
        %2558 = vmatprep.subr.mxu0 0.0
        %2559 = vmatpush1.msra.mxu0 %v294
        %2560 = vmatprep.subr.mxu0 0.0
        %2561 = vmatpush1.msra.mxu0 %v295
        %2562 = vmatprep.subr.mxu0 0.0
        %2563 = vmatpush1.msra.mxu0 %v296
        %2564 = vmatprep.subr.mxu0 0.0
        %2565 = vmatpush1.msra.mxu0 %v297
        %2566 = vmatprep.subr.mxu0 0.0
        %2567 = vmatpush1.msra.mxu0 %v298
        %2568 = vmatprep.subr.mxu0 0.0
        %2569 = vmatpush1.msra.mxu0 %v299
        %2570 = vmatprep.subr.mxu0 0.0
        %2571 = vmatpush1.msra.mxu0 %v300
        %2572 = vmatprep.subr.mxu0 0.0
        %2573 = vmatpush1.msra.mxu0 %v301
        %2574 = vmatprep.subr.mxu0 0.0
        %2575 = vmatpush1.msra.mxu0 %v302
        %2576 = vmatprep.subr.mxu0 0.0
        %2577 = vmatpush1.msra.mxu0 %v303
        %2578 = vmatprep.subr.mxu0 0.0
        %2579 = vmatpush1.msra.mxu0 %v304
        %2580 = vmatprep.subr.mxu0 0.0
        %2581 = vmatpush1.msra.mxu0 %v305
        %2582 = vmatprep.subr.mxu0 0.0
        %2583 = vmatpush1.msra.mxu0 %v306
        %2584 = vmatprep.subr.mxu0 0.0
        %2585 = vmatpush1.msra.mxu0 %v307
        %2586 = vmatprep.subr.mxu0 0.0
        %2587 = vmatpush1.msra.mxu0 0.0
        %2588 = vmatprep.subr.mxu0 0.0
        %2589 = vmatpush1.msra.mxu0 0.0
        %2590 = vmatprep.subr.mxu0 0.0
        %2591 = vmatpush1.msra.mxu0 0.0
        %2592 = vmatprep.subr.mxu0 0.0
        %2593 = vmatpush1.msra.mxu0 0.0
        %2594 = vmatprep.subr.mxu0 0.0
        %2595 = vmatpush1.msra.mxu0 0.0
        %2596 = vmatprep.subr.mxu0 0.0
        %2597 = vmatpush1.msra.mxu0 0.0
        %2598 = vmatprep.subr.mxu0 0.0
        %2599 = vmatpush1.msra.mxu0 0.0
        %2600 = vmatprep.subr.mxu0 0.0
        %2601 = vmatpush1.msra.mxu0 0.0
        %2602 = vmatprep.subr.mxu0 0.0
        %2603 = vmatpush1.msra.mxu0 0.0
        %2604 = vmatprep.subr.mxu0 0.0
        %2605 = vmatpush1.msra.mxu0 0.0
        %2606 = vmatprep.subr.mxu0 0.0
        %2607 = vmatpush1.msra.mxu0 0.0
        %2608 = vmatprep.subr.mxu0 0.0
        %2609 = vmatpush1.msra.mxu0 0.0
        %2610 = vmatprep.subr.mxu0 0.0
        %2611 = vmatpush1.msra.mxu0 0.0
        %2612 = vmatprep.subr.mxu0 0.0
        %2613 = vmatpush1.msra.mxu0 0.0
        %2614 = vmatprep.subr.mxu0 0.0
        %2615 = vmatpush1.msra.mxu0 0.0
        %2616 = vmatprep.subr.mxu0 0.0
        %2617 = vmatpush1.msra.mxu0 0.0
        %2618 = vmatprep.mubr.f32.mxu0 0.0
        %2619 = vmatmul.mubr.f32.gmra.mrb[0].mxu0 %v2552
        %v2620 = vpop.f32.mrb[0].mxu0
        %v2621 = vadd.f32 0.0, %v2620
        %v2622 = vpop.f32.mrb[0].mxu0
        %2623 = vmatprep.mubr.f32.mxu0 0.0
        %2624 = vmatmul.mubr.f32.gmra.mrb[0].mxu0 %v2553
        %v2625 = vpop.f32.mrb[0].mxu0
        %v2626 = vadd.f32 0.0, %v2625
        %v2627 = vpop.f32.mrb[0].mxu0
        %2628 = vdwg.mxu0
        %2629 = vmatprep.subr.mxu0 0.0
        %2630 = vmatpush1.msra.mxu0 %v2621
        %2631 = vmatprep.subr.mxu0 0.0
        %2632 = vmatpush1.msra.mxu0 %v2626
        %2633 = vmatprep.subr.mxu0 0.0
        %2634 = vmatpush1.msra.mxu0 0.0
        %2635 = vmatprep.subr.mxu0 0.0
        %2636 = vmatpush1.msra.mxu0 0.0
        %2637 = vmatprep.subr.mxu0 0.0
        %2638 = vmatpush1.msra.mxu0 0.0
        %2639 = vmatprep.subr.mxu0 0.0
        %2640 = vmatpush1.msra.mxu0 0.0
        %2641 = vmatprep.subr.mxu0 0.0
        %2642 = vmatpush1.msra.mxu0 0.0
        %2643 = vmatprep.subr.mxu0 0.0
        %2644 = vmatpush1.msra.mxu0 0.0
        %2645 = vmatprep.subr.mxu0 0.0
        %2646 = vmatpush1.msra.mxu0 0.0
        %2647 = vmatprep.subr.mxu0 0.0
        %2648 = vmatpush1.msra.mxu0 0.0
        %2649 = vmatprep.subr.mxu0 0.0
        %2650 = vmatpush1.msra.mxu0 0.0
        %2651 = vmatprep.subr.mxu0 0.0
        %2652 = vmatpush1.msra.mxu0 0.0
        %2653 = vmatprep.subr.mxu0 0.0
        %2654 = vmatpush1.msra.mxu0 0.0
        %2655 = vmatprep.subr.mxu0 0.0
        %2656 = vmatpush1.msra.mxu0 0.0
        %2657 = vmatprep.subr.mxu0 0.0
        %2658 = vmatpush1.msra.mxu0 0.0
        %2659 = vmatprep.subr.mxu0 0.0
        %2660 = vmatpush1.msra.mxu0 0.0
        %2661 = vmatprep.subr.mxu0 0.0
        %2662 = vmatpush1.msra.mxu0 0.0
        %2663 = vmatprep.subr.mxu0 0.0
        %2664 = vmatpush1.msra.mxu0 0.0
        %2665 = vmatprep.subr.mxu0 0.0
        %2666 = vmatpush1.msra.mxu0 0.0
        %2667 = vmatprep.subr.mxu0 0.0
        %2668 = vmatpush1.msra.mxu0 0.0
        %2669 = vmatprep.subr.mxu0 0.0
        %2670 = vmatpush1.msra.mxu0 0.0
        %2671 = vmatprep.subr.mxu0 0.0
        %2672 = vmatpush1.msra.mxu0 0.0
        %2673 = vmatprep.subr.mxu0 0.0
        %2674 = vmatpush1.msra.mxu0 0.0
        %2675 = vmatprep.subr.mxu0 0.0
        %2676 = vmatpush1.msra.mxu0 0.0
        %2677 = vmatprep.subr.mxu0 0.0
        %2678 = vmatpush1.msra.mxu0 0.0
        %2679 = vmatprep.subr.mxu0 0.0
        %2680 = vmatpush1.msra.mxu0 0.0
        %2681 = vmatprep.subr.mxu0 0.0
        %2682 = vmatpush1.msra.mxu0 0.0
        %2683 = vmatprep.subr.mxu0 0.0
        %2684 = vmatpush1.msra.mxu0 0.0
        %2685 = vmatprep.subr.mxu0 0.0
        %2686 = vmatpush1.msra.mxu0 0.0
        %2687 = vmatprep.subr.mxu0 0.0
        %2688 = vmatpush1.msra.mxu0 0.0
        %2689 = vmatprep.subr.mxu0 0.0
        %2690 = vmatpush1.msra.mxu0 0.0
        %2691 = vmatprep.subr.mxu0 0.0
        %2692 = vmatpush1.msra.mxu0 0.0
        %2693 = vmatprep.mubr.f32.mxu0 0.0
        %2694 = vmatmul.mubr.f32.gmra.mrb[0].mxu0 %v389
        %v2695 = vpop.f32.mrb[0].mxu0
        %v2696 = vadd.f32 0.0, %v2695
        %v2697 = vpop.f32.mrb[0].mxu0
        %2698 = vmatprep.mubr.f32.mxu0 0.0
        %2699 = vmatmul.mubr.f32.gmra.mrb[0].mxu0 %v392
        %v2700 = vpop.f32.mrb[0].mxu0
        %v2701 = vadd.f32 0.0, %v2700
        %v2702 = vpop.f32.mrb[0].mxu0
        %2703 = vdwg.mxu0
        %v2704 = vmul.f32 %v2090, %v2090
        %v2705 = vmul.f32 %v2095, %v2095
        %v2706 = vmul.f32 %v2240, %v2240
        %v2707 = vmul.f32 %v2245, %v2245
        %v2708 = vmul.f32 %v2090, %v2240
        %v2709 = vmul.f32 %v2095, %v2245
        %v2710 = vsub.f32 %v2392, %v2704
        %v2711 = vsub.f32 %v2397, %v2705
        %v2712 = vsub.f32 %v2544, %v2706
        %v2713 = vsub.f32 %v2549, %v2707
        %v2714 = vsub.f32 %v2696, %v2708
        %v2715 = vsub.f32 %v2701, %v2709
        %v2716 = vmul.f32 %v2708, 2.0
        %v2717 = vmul.f32 %v2709, 2.0
        %v2718 = vadd.f32 %v2716, 0.0001
        %v2719 = vadd.f32 %v2717, 0.0001
        %v2720 = vmul.f32 %v2714, 2.0
        %v2721 = vmul.f32 %v2715, 2.0
        %v2722 = vadd.f32 %v2720, 0.0009
        %v2723 = vadd.f32 %v2721, 0.0009
        %v2724 = vmul.f32 %v2718, %v2722
        %v2725 = vmul.f32 %v2719, %v2723
        %v2726 = vadd.f32 %v2704, %v2706
        %v2727 = vadd.f32 %v2705, %v2707
        %v2728 = vadd.f32 %v2726, 0.0001
        %v2729 = vadd.f32 %v2727, 0.0001
        %v2730 = vadd.f32 %v2710, %v2712
        %v2731 = vadd.f32 %v2711, %v2713
        %v2732 = vadd.f32 %v2730, 0.0009
        %v2733 = vadd.f32 %v2731, 0.0009
        %v2734 = vmul.f32 %v2728, %v2732
        %v2735 = vmul.f32 %v2729, %v2733
        %v2736 = vrcp.pop %v2734
        %v2737 = vrcp.pop %v2735
        %v2738 = vmul.f32 %v2734, %v2736
        %v2739 = vmul.f32 %v2735, %v2737
        %v2740 = vsub.f32 2.0, %v2738
        %v2741 = vsub.f32 2.0, %v2739
        %v2742 = vmul.f32 %v2736, %v2740
        %v2743 = vmul.f32 %v2737, %v2741
        %v2744 = vmul.f32 %v2724, %v2742
        %v2745 = vmul.f32 %v2725, %v2743
        %v2746 = vsub.f32 1.0, %v2744
        %v2747 = vsub.f32 1.0, %v2745
        %v2748 = vmax.f32 %v2746, 0.0
        %v2749 = vmax.f32 %v2747, 0.0
        %v2750 = vmin.f32 %v2748, 1.0
        %v2751 = vmin.f32 %v2749, 1.0
        %v2752 = vmul.f32 %v2750, 0.5
        %v2753 = vmul.f32 %v2751, 0.5
        %s2754 = scalar_lea.vmem %s286, 32 [#allocation10]
        %2755 = vst [vmem:[%s2754] sm:$0xff] %v2752
        %2756 = vst [vmem:[%s2754 + $0x8] sm:$0xff] %v2753
        %s2757 = scalar_lea.vmem %s240, 48 [#allocation2]
        %v2758 = vld [vmem:[%s2757] sm:$0xff]
        %v2759 = vld [vmem:[%s2757 + $0x8] sm:$0xff]
        %s2760 = scalar_lea.vmem %s249, 48 [#allocation5]
        %v2761 = vld [vmem:[%s2760] sm:$0xff]
        %v2762 = vld [vmem:[%s2760 + $0x8] sm:$0xff]
        %2763 = vmatprep.subr.mxu0 0.0
        %2764 = vmatpush1.msra.mxu0 %v292
        %2765 = vmatprep.subr.mxu0 0.0
        %2766 = vmatpush1.msra.mxu0 %v293
        %2767 = vmatprep.subr.mxu0 0.0
        %2768 = vmatpush1.msra.mxu0 %v294
        %2769 = vmatprep.subr.mxu0 0.0
        %2770 = vmatpush1.msra.mxu0 %v295
        %2771 = vmatprep.subr.mxu0 0.0
        %2772 = vmatpush1.msra.mxu0 %v296
        %2773 = vmatprep.subr.mxu0 0.0
        %2774 = vmatpush1.msra.mxu0 %v297
        %2775 = vmatprep.subr.mxu0 0.0
        %2776 = vmatpush1.msra.mxu0 %v298
        %2777 = vmatprep.subr.mxu0 0.0
        %2778 = vmatpush1.msra.mxu0 %v299
        %2779 = vmatprep.subr.mxu0 0.0
        %2780 = vmatpush1.msra.mxu0 %v300
        %2781 = vmatprep.subr.mxu0 0.0
        %2782 = vmatpush1.msra.mxu0 %v301
        %2783 = vmatprep.subr.mxu0 0.0
        %2784 = vmatpush1.msra.mxu0 %v302
        %2785 = vmatprep.subr.mxu0 0.0
        %2786 = vmatpush1.msra.mxu0 %v303
        %2787 = vmatprep.subr.mxu0 0.0
        %2788 = vmatpush1.msra.mxu0 %v304
        %2789 = vmatprep.subr.mxu0 0.0
        %2790 = vmatpush1.msra.mxu0 %v305
        %2791 = vmatprep.subr.mxu0 0.0
        %2792 = vmatpush1.msra.mxu0 %v306
        %2793 = vmatprep.subr.mxu0 0.0
        %2794 = vmatpush1.msra.mxu0 %v307
        %2795 = vmatprep.subr.mxu0 0.0
        %2796 = vmatpush1.msra.mxu0 0.0
        %2797 = vmatprep.subr.mxu0 0.0
        %2798 = vmatpush1.msra.mxu0 0.0
        %2799 = vmatprep.subr.mxu0 0.0
        %2800 = vmatpush1.msra.mxu0 0.0
        %2801 = vmatprep.subr.mxu0 0.0
        %2802 = vmatpush1.msra.mxu0 0.0
        %2803 = vmatprep.subr.mxu0 0.0
        %2804 = vmatpush1.msra.mxu0 0.0
        %2805 = vmatprep.subr.mxu0 0.0
        %2806 = vmatpush1.msra.mxu0 0.0
        %2807 = vmatprep.subr.mxu0 0.0
        %2808 = vmatpush1.msra.mxu0 0.0
        %2809 = vmatprep.subr.mxu0 0.0
        %2810 = vmatpush1.msra.mxu0 0.0
        %2811 = vmatprep.subr.mxu0 0.0
        %2812 = vmatpush1.msra.mxu0 0.0
        %2813 = vmatprep.subr.mxu0 0.0
        %2814 = vmatpush1.msra.mxu0 0.0
        %2815 = vmatprep.subr.mxu0 0.0
        %2816 = vmatpush1.msra.mxu0 0.0
        %2817 = vmatprep.subr.mxu0 0.0
        %2818 = vmatpush1.msra.mxu0 0.0
        %2819 = vmatprep.subr.mxu0 0.0
        %2820 = vmatpush1.msra.mxu0 0.0
        %2821 = vmatprep.subr.mxu0 0.0
        %2822 = vmatpush1.msra.mxu0 0.0
        %2823 = vmatprep.subr.mxu0 0.0
        %2824 = vmatpush1.msra.mxu0 0.0
        %2825 = vmatprep.subr.mxu0 0.0
        %2826 = vmatpush1.msra.mxu0 0.0
        %2827 = vmatprep.mubr.f32.mxu0 0.0
        %2828 = vmatmul.mubr.f32.gmra.mrb[0].mxu0 %v2758
        %v2829 = vpop.f32.mrb[0].mxu0
        %v2830 = vadd.f32 0.0, %v2829
        %v2831 = vpop.f32.mrb[0].mxu0
        %2832 = vmatprep.mubr.f32.mxu0 0.0
        %2833 = vmatmul.mubr.f32.gmra.mrb[0].mxu0 %v2759
        %v2834 = vpop.f32.mrb[0].mxu0
        %v2835 = vadd.f32 0.0, %v2834
        %v2836 = vpop.f32.mrb[0].mxu0
        %2837 = vdwg.mxu0
        %2838 = vmatprep.subr.mxu0 0.0
        %2839 = vmatpush1.msra.mxu0 %v2830
        %2840 = vmatprep.subr.mxu0 0.0
        %2841 = vmatpush1.msra.mxu0 %v2835
        %2842 = vmatprep.subr.mxu0 0.0
        %2843 = vmatpush1.msra.mxu0 0.0
        %2844 = vmatprep.subr.mxu0 0.0
        %2845 = vmatpush1.msra.mxu0 0.0
        %2846 = vmatprep.subr.mxu0 0.0
        %2847 = vmatpush1.msra.mxu0 0.0
        %2848 = vmatprep.subr.mxu0 0.0
        %2849 = vmatpush1.msra.mxu0 0.0
        %2850 = vmatprep.subr.mxu0 0.0
        %2851 = vmatpush1.msra.mxu0 0.0
        %2852 = vmatprep.subr.mxu0 0.0
        %2853 = vmatpush1.msra.mxu0 0.0
        %2854 = vmatprep.subr.mxu0 0.0
        %2855 = vmatpush1.msra.mxu0 0.0
        %2856 = vmatprep.subr.mxu0 0.0
        %2857 = vmatpush1.msra.mxu0 0.0
        %2858 = vmatprep.subr.mxu0 0.0
        %2859 = vmatpush1.msra.mxu0 0.0
        %2860 = vmatprep.subr.mxu0 0.0
        %2861 = vmatpush1.msra.mxu0 0.0
        %2862 = vmatprep.subr.mxu0 0.0
        %2863 = vmatpush1.msra.mxu0 0.0
        %2864 = vmatprep.subr.mxu0 0.0
        %2865 = vmatpush1.msra.mxu0 0.0
        %2866 = vmatprep.subr.mxu0 0.0
        %2867 = vmatpush1.msra.mxu0 0.0
        %2868 = vmatprep.subr.mxu0 0.0
        %2869 = vmatpush1.msra.mxu0 0.0
        %2870 = vmatprep.subr.mxu0 0.0
        %2871 = vmatpush1.msra.mxu0 0.0
        %2872 = vmatprep.subr.mxu0 0.0
        %2873 = vmatpush1.msra.mxu0 0.0
        %2874 = vmatprep.subr.mxu0 0.0
        %2875 = vmatpush1.msra.mxu0 0.0
        %2876 = vmatprep.subr.mxu0 0.0
        %2877 = vmatpush1.msra.mxu0 0.0
        %2878 = vmatprep.subr.mxu0 0.0
        %2879 = vmatpush1.msra.mxu0 0.0
        %2880 = vmatprep.subr.mxu0 0.0
        %2881 = vmatpush1.msra.mxu0 0.0
        %2882 = vmatprep.subr.mxu0 0.0
        %2883 = vmatpush1.msra.mxu0 0.0
        %2884 = vmatprep.subr.mxu0 0.0
        %2885 = vmatpush1.msra.mxu0 0.0
        %2886 = vmatprep.subr.mxu0 0.0
        %2887 = vmatpush1.msra.mxu0 0.0
        %2888 = vmatprep.subr.mxu0 0.0
        %2889 = vmatpush1.msra.mxu0 0.0
        %2890 = vmatprep.subr.mxu0 0.0
        %2891 = vmatpush1.msra.mxu0 0.0
        %2892 = vmatprep.subr.mxu0 0.0
        %2893 = vmatpush1.msra.mxu0 0.0
        %2894 = vmatprep.subr.mxu0 0.0
        %2895 = vmatpush1.msra.mxu0 0.0
        %2896 = vmatprep.subr.mxu0 0.0
        %2897 = vmatpush1.msra.mxu0 0.0
        %2898 = vmatprep.subr.mxu0 0.0
        %2899 = vmatpush1.msra.mxu0 0.0
        %2900 = vmatprep.subr.mxu0 0.0
        %2901 = vmatpush1.msra.mxu0 0.0
        %2902 = vmatprep.mubr.f32.mxu0 0.0
        %2903 = vmatmul.mubr.f32.gmra.mrb[0].mxu0 %v389
        %v2904 = vpop.f32.mrb[0].mxu0
        %v2905 = vadd.f32 0.0, %v2904
        %v2906 = vpop.f32.mrb[0].mxu0
        %2907 = vmatprep.mubr.f32.mxu0 0.0
        %2908 = vmatmul.mubr.f32.gmra.mrb[0].mxu0 %v392
        %v2909 = vpop.f32.mrb[0].mxu0
        %v2910 = vadd.f32 0.0, %v2909
        %v2911 = vpop.f32.mrb[0].mxu0
        %2912 = vdwg.mxu0
        %2913 = vmatprep.subr.mxu0 0.0
        %2914 = vmatpush1.msra.mxu0 %v292
        %2915 = vmatprep.subr.mxu0 0.0
        %2916 = vmatpush1.msra.mxu0 %v293
        %2917 = vmatprep.subr.mxu0 0.0
        %2918 = vmatpush1.msra.mxu0 %v294
        %2919 = vmatprep.subr.mxu0 0.0
        %2920 = vmatpush1.msra.mxu0 %v295
        %2921 = vmatprep.subr.mxu0 0.0
        %2922 = vmatpush1.msra.mxu0 %v296
        %2923 = vmatprep.subr.mxu0 0.0
        %2924 = vmatpush1.msra.mxu0 %v297
        %2925 = vmatprep.subr.mxu0 0.0
        %2926 = vmatpush1.msra.mxu0 %v298
        %2927 = vmatprep.subr.mxu0 0.0
        %2928 = vmatpush1.msra.mxu0 %v299
        %2929 = vmatprep.subr.mxu0 0.0
        %2930 = vmatpush1.msra.mxu0 %v300
        %2931 = vmatprep.subr.mxu0 0.0
        %2932 = vmatpush1.msra.mxu0 %v301
        %2933 = vmatprep.subr.mxu0 0.0
        %2934 = vmatpush1.msra.mxu0 %v302
        %2935 = vmatprep.subr.mxu0 0.0
        %2936 = vmatpush1.msra.mxu0 %v303
        %2937 = vmatprep.subr.mxu0 0.0
        %2938 = vmatpush1.msra.mxu0 %v304
        %2939 = vmatprep.subr.mxu0 0.0
        %2940 = vmatpush1.msra.mxu0 %v305
        %2941 = vmatprep.subr.mxu0 0.0
        %2942 = vmatpush1.msra.mxu0 %v306
        %2943 = vmatprep.subr.mxu0 0.0
        %2944 = vmatpush1.msra.mxu0 %v307
        %2945 = vmatprep.subr.mxu0 0.0
        %2946 = vmatpush1.msra.mxu0 0.0
        %2947 = vmatprep.subr.mxu0 0.0
        %2948 = vmatpush1.msra.mxu0 0.0
        %2949 = vmatprep.subr.mxu0 0.0
        %2950 = vmatpush1.msra.mxu0 0.0
        %2951 = vmatprep.subr.mxu0 0.0
        %2952 = vmatpush1.msra.mxu0 0.0
        %2953 = vmatprep.subr.mxu0 0.0
        %2954 = vmatpush1.msra.mxu0 0.0
        %2955 = vmatprep.subr.mxu0 0.0
        %2956 = vmatpush1.msra.mxu0 0.0
        %2957 = vmatprep.subr.mxu0 0.0
        %2958 = vmatpush1.msra.mxu0 0.0
        %2959 = vmatprep.subr.mxu0 0.0
        %2960 = vmatpush1.msra.mxu0 0.0
        %2961 = vmatprep.subr.mxu0 0.0
        %2962 = vmatpush1.msra.mxu0 0.0
        %2963 = vmatprep.subr.mxu0 0.0
        %2964 = vmatpush1.msra.mxu0 0.0
        %2965 = vmatprep.subr.mxu0 0.0
        %2966 = vmatpush1.msra.mxu0 0.0
        %2967 = vmatprep.subr.mxu0 0.0
        %2968 = vmatpush1.msra.mxu0 0.0
        %2969 = vmatprep.subr.mxu0 0.0
        %2970 = vmatpush1.msra.mxu0 0.0
        %2971 = vmatprep.subr.mxu0 0.0
        %2972 = vmatpush1.msra.mxu0 0.0
        %2973 = vmatprep.subr.mxu0 0.0
        %2974 = vmatpush1.msra.mxu0 0.0
        %2975 = vmatprep.subr.mxu0 0.0
        %2976 = vmatpush1.msra.mxu0 0.0
        %2977 = vmatprep.mubr.f32.mxu0 0.0
        %2978 = vmatmul.mubr.f32.gmra.mrb[0].mxu0 %v2761
        %v2979 = vpop.f32.mrb[0].mxu0
        %v2980 = vadd.f32 0.0, %v2979
        %v2981 = vpop.f32.mrb[0].mxu0
        %2982 = vmatprep.mubr.f32.mxu0 0.0
        %2983 = vmatmul.mubr.f32.gmra.mrb[0].mxu0 %v2762
        %v2984 = vpop.f32.mrb[0].mxu0
        %v2985 = vadd.f32 0.0, %v2984
        %v2986 = vpop.f32.mrb[0].mxu0
        %2987 = vdwg.mxu0
        %2988 = vmatprep.subr.mxu0 0.0
        %2989 = vmatpush1.msra.mxu0 %v2980
        %2990 = vmatprep.subr.mxu0 0.0
        %2991 = vmatpush1.msra.mxu0 %v2985
        %2992 = vmatprep.subr.mxu0 0.0
        %2993 = vmatpush1.msra.mxu0 0.0
        %2994 = vmatprep.subr.mxu0 0.0
        %2995 = vmatpush1.msra.mxu0 0.0
        %2996 = vmatprep.subr.mxu0 0.0
        %2997 = vmatpush1.msra.mxu0 0.0
        %2998 = vmatprep.subr.mxu0 0.0
        %2999 = vmatpush1.msra.mxu0 0.0
        %3000 = vmatprep.subr.mxu0 0.0
        %3001 = vmatpush1.msra.mxu0 0.0
        %3002 = vmatprep.subr.mxu0 0.0
        %3003 = vmatpush1.msra.mxu0 0.0
        %3004 = vmatprep.subr.mxu0 0.0
        %3005 = vmatpush1.msra.mxu0 0.0
        %3006 = vmatprep.subr.mxu0 0.0
        %3007 = vmatpush1.msra.mxu0 0.0
        %3008 = vmatprep.subr.mxu0 0.0
        %3009 = vmatpush1.msra.mxu0 0.0
        %3010 = vmatprep.subr.mxu0 0.0
        %3011 = vmatpush1.msra.mxu0 0.0
        %3012 = vmatprep.subr.mxu0 0.0
        %3013 = vmatpush1.msra.mxu0 0.0
        %3014 = vmatprep.subr.mxu0 0.0
        %3015 = vmatpush1.msra.mxu0 0.0
        %3016 = vmatprep.subr.mxu0 0.0
        %3017 = vmatpush1.msra.mxu0 0.0
        %3018 = vmatprep.subr.mxu0 0.0
        %3019 = vmatpush1.msra.mxu0 0.0
        %3020 = vmatprep.subr.mxu0 0.0
        %3021 = vmatpush1.msra.mxu0 0.0
        %3022 = vmatprep.subr.mxu0 0.0
        %3023 = vmatpush1.msra.mxu0 0.0
        %3024 = vmatprep.subr.mxu0 0.0
        %3025 = vmatpush1.msra.mxu0 0.0
        %3026 = vmatprep.subr.mxu0 0.0
        %3027 = vmatpush1.msra.mxu0 0.0
        %3028 = vmatprep.subr.mxu0 0.0
        %3029 = vmatpush1.msra.mxu0 0.0
        %3030 = vmatprep.subr.mxu0 0.0
        %3031 = vmatpush1.msra.mxu0 0.0
        %3032 = vmatprep.subr.mxu0 0.0
        %3033 = vmatpush1.msra.mxu0 0.0
        %3034 = vmatprep.subr.mxu0 0.0
        %3035 = vmatpush1.msra.mxu0 0.0
        %3036 = vmatprep.subr.mxu0 0.0
        %3037 = vmatpush1.msra.mxu0 0.0
        %3038 = vmatprep.subr.mxu0 0.0
        %3039 = vmatpush1.msra.mxu0 0.0
        %3040 = vmatprep.subr.mxu0 0.0
        %3041 = vmatpush1.msra.mxu0 0.0
        %3042 = vmatprep.subr.mxu0 0.0
        %3043 = vmatpush1.msra.mxu0 0.0
        %3044 = vmatprep.subr.mxu0 0.0
        %3045 = vmatpush1.msra.mxu0 0.0
        %3046 = vmatprep.subr.mxu0 0.0
        %3047 = vmatpush1.msra.mxu0 0.0
        %3048 = vmatprep.subr.mxu0 0.0
        %3049 = vmatpush1.msra.mxu0 0.0
        %3050 = vmatprep.subr.mxu0 0.0
        %3051 = vmatpush1.msra.mxu0 0.0
        %3052 = vmatprep.mubr.f32.mxu0 0.0
        %3053 = vmatmul.mubr.f32.gmra.mrb[0].mxu0 %v389
        %v3054 = vpop.f32.mrb[0].mxu0
        %v3055 = vadd.f32 0.0, %v3054
        %v3056 = vpop.f32.mrb[0].mxu0
        %3057 = vmatprep.mubr.f32.mxu0 0.0
        %3058 = vmatmul.mubr.f32.gmra.mrb[0].mxu0 %v392
        %v3059 = vpop.f32.mrb[0].mxu0
        %v3060 = vadd.f32 0.0, %v3059
        %v3061 = vpop.f32.mrb[0].mxu0
        %3062 = vdwg.mxu0
        %v3063 = vmul.f32 %v2758, %v2758
        %v3064 = vmul.f32 %v2759, %v2759
        %3065 = vmatprep.subr.mxu0 0.0
        %3066 = vmatpush1.msra.mxu0 %v292
        %3067 = vmatprep.subr.mxu0 0.0
        %3068 = vmatpush1.msra.mxu0 %v293
        %3069 = vmatprep.subr.mxu0 0.0
        %3070 = vmatpush1.msra.mxu0 %v294
        %3071 = vmatprep.subr.mxu0 0.0
        %3072 = vmatpush1.msra.mxu0 %v295
        %3073 = vmatprep.subr.mxu0 0.0
        %3074 = vmatpush1.msra.mxu0 %v296
        %3075 = vmatprep.subr.mxu0 0.0
        %3076 = vmatpush1.msra.mxu0 %v297
        %3077 = vmatprep.subr.mxu0 0.0
        %3078 = vmatpush1.msra.mxu0 %v298
        %3079 = vmatprep.subr.mxu0 0.0
        %3080 = vmatpush1.msra.mxu0 %v299
        %3081 = vmatprep.subr.mxu0 0.0
        %3082 = vmatpush1.msra.mxu0 %v300
        %3083 = vmatprep.subr.mxu0 0.0
        %3084 = vmatpush1.msra.mxu0 %v301
        %3085 = vmatprep.subr.mxu0 0.0
        %3086 = vmatpush1.msra.mxu0 %v302
        %3087 = vmatprep.subr.mxu0 0.0
        %3088 = vmatpush1.msra.mxu0 %v303
        %3089 = vmatprep.subr.mxu0 0.0
        %3090 = vmatpush1.msra.mxu0 %v304
        %3091 = vmatprep.subr.mxu0 0.0
        %3092 = vmatpush1.msra.mxu0 %v305
        %3093 = vmatprep.subr.mxu0 0.0
        %3094 = vmatpush1.msra.mxu0 %v306
        %3095 = vmatprep.subr.mxu0 0.0
        %3096 = vmatpush1.msra.mxu0 %v307
        %3097 = vmatprep.subr.mxu0 0.0
        %3098 = vmatpush1.msra.mxu0 0.0
        %3099 = vmatprep.subr.mxu0 0.0
        %3100 = vmatpush1.msra.mxu0 0.0
        %3101 = vmatprep.subr.mxu0 0.0
        %3102 = vmatpush1.msra.mxu0 0.0
        %3103 = vmatprep.subr.mxu0 0.0
        %3104 = vmatpush1.msra.mxu0 0.0
        %3105 = vmatprep.subr.mxu0 0.0
        %3106 = vmatpush1.msra.mxu0 0.0
        %3107 = vmatprep.subr.mxu0 0.0
        %3108 = vmatpush1.msra.mxu0 0.0
        %3109 = vmatprep.subr.mxu0 0.0
        %3110 = vmatpush1.msra.mxu0 0.0
        %3111 = vmatprep.subr.mxu0 0.0
        %3112 = vmatpush1.msra.mxu0 0.0
        %3113 = vmatprep.subr.mxu0 0.0
        %3114 = vmatpush1.msra.mxu0 0.0
        %3115 = vmatprep.subr.mxu0 0.0
        %3116 = vmatpush1.msra.mxu0 0.0
        %3117 = vmatprep.subr.mxu0 0.0
        %3118 = vmatpush1.msra.mxu0 0.0
        %3119 = vmatprep.subr.mxu0 0.0
        %3120 = vmatpush1.msra.mxu0 0.0
        %3121 = vmatprep.subr.mxu0 0.0
        %3122 = vmatpush1.msra.mxu0 0.0
        %3123 = vmatprep.subr.mxu0 0.0
        %3124 = vmatpush1.msra.mxu0 0.0
        %3125 = vmatprep.subr.mxu0 0.0
        %3126 = vmatpush1.msra.mxu0 0.0
        %3127 = vmatprep.subr.mxu0 0.0
        %3128 = vmatpush1.msra.mxu0 0.0
        %3129 = vmatprep.mubr.f32.mxu0 0.0
        %3130 = vmatmul.mubr.f32.gmra.mrb[0].mxu0 %v3063
        %v3131 = vpop.f32.mrb[0].mxu0
        %v3132 = vadd.f32 0.0, %v3131
        %v3133 = vpop.f32.mrb[0].mxu0
        %3134 = vmatprep.mubr.f32.mxu0 0.0
        %3135 = vmatmul.mubr.f32.gmra.mrb[0].mxu0 %v3064
        %v3136 = vpop.f32.mrb[0].mxu0
        %v3137 = vadd.f32 0.0, %v3136
        %v3138 = vpop.f32.mrb[0].mxu0
        %3139 = vdwg.mxu0
        %3140 = vmatprep.subr.mxu0 0.0
        %3141 = vmatpush1.msra.mxu0 %v3132
        %3142 = vmatprep.subr.mxu0 0.0
        %3143 = vmatpush1.msra.mxu0 %v3137
        %3144 = vmatprep.subr.mxu0 0.0
        %3145 = vmatpush1.msra.mxu0 0.0
        %3146 = vmatprep.subr.mxu0 0.0
        %3147 = vmatpush1.msra.mxu0 0.0
        %3148 = vmatprep.subr.mxu0 0.0
        %3149 = vmatpush1.msra.mxu0 0.0
        %3150 = vmatprep.subr.mxu0 0.0
        %3151 = vmatpush1.msra.mxu0 0.0
        %3152 = vmatprep.subr.mxu0 0.0
        %3153 = vmatpush1.msra.mxu0 0.0
        %3154 = vmatprep.subr.mxu0 0.0
        %3155 = vmatpush1.msra.mxu0 0.0
        %3156 = vmatprep.subr.mxu0 0.0
        %3157 = vmatpush1.msra.mxu0 0.0
        %3158 = vmatprep.subr.mxu0 0.0
        %3159 = vmatpush1.msra.mxu0 0.0
        %3160 = vmatprep.subr.mxu0 0.0
        %3161 = vmatpush1.msra.mxu0 0.0
        %3162 = vmatprep.subr.mxu0 0.0
        %3163 = vmatpush1.msra.mxu0 0.0
        %3164 = vmatprep.subr.mxu0 0.0
        %3165 = vmatpush1.msra.mxu0 0.0
        %3166 = vmatprep.subr.mxu0 0.0
        %3167 = vmatpush1.msra.mxu0 0.0
        %3168 = vmatprep.subr.mxu0 0.0
        %3169 = vmatpush1.msra.mxu0 0.0
        %3170 = vmatprep.subr.mxu0 0.0
        %3171 = vmatpush1.msra.mxu0 0.0
        %3172 = vmatprep.subr.mxu0 0.0
        %3173 = vmatpush1.msra.mxu0 0.0
        %3174 = vmatprep.subr.mxu0 0.0
        %3175 = vmatpush1.msra.mxu0 0.0
        %3176 = vmatprep.subr.mxu0 0.0
        %3177 = vmatpush1.msra.mxu0 0.0
        %3178 = vmatprep.subr.mxu0 0.0
        %3179 = vmatpush1.msra.mxu0 0.0
        %3180 = vmatprep.subr.mxu0 0.0
        %3181 = vmatpush1.msra.mxu0 0.0
        %3182 = vmatprep.subr.mxu0 0.0
        %3183 = vmatpush1.msra.mxu0 0.0
        %3184 = vmatprep.subr.mxu0 0.0
        %3185 = vmatpush1.msra.mxu0 0.0
        %3186 = vmatprep.subr.mxu0 0.0
        %3187 = vmatpush1.msra.mxu0 0.0
        %3188 = vmatprep.subr.mxu0 0.0
        %3189 = vmatpush1.msra.mxu0 0.0
        %3190 = vmatprep.subr.mxu0 0.0
        %3191 = vmatpush1.msra.mxu0 0.0
        %3192 = vmatprep.subr.mxu0 0.0
        %3193 = vmatpush1.msra.mxu0 0.0
        %3194 = vmatprep.subr.mxu0 0.0
        %3195 = vmatpush1.msra.mxu0 0.0
        %3196 = vmatprep.subr.mxu0 0.0
        %3197 = vmatpush1.msra.mxu0 0.0
        %3198 = vmatprep.subr.mxu0 0.0
        %3199 = vmatpush1.msra.mxu0 0.0
        %3200 = vmatprep.subr.mxu0 0.0
        %3201 = vmatpush1.msra.mxu0 0.0
        %3202 = vmatprep.subr.mxu0 0.0
        %3203 = vmatpush1.msra.mxu0 0.0
        %3204 = vmatprep.mubr.f32.mxu0 0.0
        %3205 = vmatmul.mubr.f32.gmra.mrb[0].mxu0 %v389
        %v3206 = vpop.f32.mrb[0].mxu0
        %v3207 = vadd.f32 0.0, %v3206
        %v3208 = vpop.f32.mrb[0].mxu0
        %3209 = vmatprep.mubr.f32.mxu0 0.0
        %3210 = vmatmul.mubr.f32.gmra.mrb[0].mxu0 %v392
        %v3211 = vpop.f32.mrb[0].mxu0
        %v3212 = vadd.f32 0.0, %v3211
        %v3213 = vpop.f32.mrb[0].mxu0
        %3214 = vdwg.mxu0
        %v3215 = vmul.f32 %v2761, %v2761
        %v3216 = vmul.f32 %v2762, %v2762
        %3217 = vmatprep.subr.mxu0 0.0
        %3218 = vmatpush1.msra.mxu0 %v292
        %3219 = vmatprep.subr.mxu0 0.0
        %3220 = vmatpush1.msra.mxu0 %v293
        %3221 = vmatprep.subr.mxu0 0.0
        %3222 = vmatpush1.msra.mxu0 %v294
        %3223 = vmatprep.subr.mxu0 0.0
        %3224 = vmatpush1.msra.mxu0 %v295
        %3225 = vmatprep.subr.mxu0 0.0
        %3226 = vmatpush1.msra.mxu0 %v296
        %3227 = vmatprep.subr.mxu0 0.0
        %3228 = vmatpush1.msra.mxu0 %v297
        %3229 = vmatprep.subr.mxu0 0.0
        %3230 = vmatpush1.msra.mxu0 %v298
        %3231 = vmatprep.subr.mxu0 0.0
        %3232 = vmatpush1.msra.mxu0 %v299
        %3233 = vmatprep.subr.mxu0 0.0
        %3234 = vmatpush1.msra.mxu0 %v300
        %3235 = vmatprep.subr.mxu0 0.0
        %3236 = vmatpush1.msra.mxu0 %v301
        %3237 = vmatprep.subr.mxu0 0.0
        %3238 = vmatpush1.msra.mxu0 %v302
        %3239 = vmatprep.subr.mxu0 0.0
        %3240 = vmatpush1.msra.mxu0 %v303
        %3241 = vmatprep.subr.mxu0 0.0
        %3242 = vmatpush1.msra.mxu0 %v304
        %3243 = vmatprep.subr.mxu0 0.0
        %3244 = vmatpush1.msra.mxu0 %v305
        %3245 = vmatprep.subr.mxu0 0.0
        %3246 = vmatpush1.msra.mxu0 %v306
        %3247 = vmatprep.subr.mxu0 0.0
        %3248 = vmatpush1.msra.mxu0 %v307
        %3249 = vmatprep.subr.mxu0 0.0
        %3250 = vmatpush1.msra.mxu0 0.0
        %3251 = vmatprep.subr.mxu0 0.0
        %3252 = vmatpush1.msra.mxu0 0.0
        %3253 = vmatprep.subr.mxu0 0.0
        %3254 = vmatpush1.msra.mxu0 0.0
        %3255 = vmatprep.subr.mxu0 0.0
        %3256 = vmatpush1.msra.mxu0 0.0
        %3257 = vmatprep.subr.mxu0 0.0
        %3258 = vmatpush1.msra.mxu0 0.0
        %3259 = vmatprep.subr.mxu0 0.0
        %3260 = vmatpush1.msra.mxu0 0.0
        %3261 = vmatprep.subr.mxu0 0.0
        %3262 = vmatpush1.msra.mxu0 0.0
        %3263 = vmatprep.subr.mxu0 0.0
        %3264 = vmatpush1.msra.mxu0 0.0
        %3265 = vmatprep.subr.mxu0 0.0
        %3266 = vmatpush1.msra.mxu0 0.0
        %3267 = vmatprep.subr.mxu0 0.0
        %3268 = vmatpush1.msra.mxu0 0.0
        %3269 = vmatprep.subr.mxu0 0.0
        %3270 = vmatpush1.msra.mxu0 0.0
        %3271 = vmatprep.subr.mxu0 0.0
        %3272 = vmatpush1.msra.mxu0 0.0
        %3273 = vmatprep.subr.mxu0 0.0
        %3274 = vmatpush1.msra.mxu0 0.0
        %3275 = vmatprep.subr.mxu0 0.0
        %3276 = vmatpush1.msra.mxu0 0.0
        %3277 = vmatprep.subr.mxu0 0.0
        %3278 = vmatpush1.msra.mxu0 0.0
        %3279 = vmatprep.subr.mxu0 0.0
        %3280 = vmatpush1.msra.mxu0 0.0
        %3281 = vmatprep.mubr.f32.mxu0 0.0
        %3282 = vmatmul.mubr.f32.gmra.mrb[0].mxu0 %v3215
        %v3283 = vpop.f32.mrb[0].mxu0
        %v3284 = vadd.f32 0.0, %v3283
        %v3285 = vpop.f32.mrb[0].mxu0
        %3286 = vmatprep.mubr.f32.mxu0 0.0
        %3287 = vmatmul.mubr.f32.gmra.mrb[0].mxu0 %v3216
        %v3288 = vpop.f32.mrb[0].mxu0
        %v3289 = vadd.f32 0.0, %v3288
        %v3290 = vpop.f32.mrb[0].mxu0
        %3291 = vdwg.mxu0
        %3292 = vmatprep.subr.mxu0 0.0
        %3293 = vmatpush1.msra.mxu0 %v3284
        %3294 = vmatprep.subr.mxu0 0.0
        %3295 = vmatpush1.msra.mxu0 %v3289
        %3296 = vmatprep.subr.mxu0 0.0
        %3297 = vmatpush1.msra.mxu0 0.0
        %3298 = vmatprep.subr.mxu0 0.0
        %3299 = vmatpush1.msra.mxu0 0.0
        %3300 = vmatprep.subr.mxu0 0.0
        %3301 = vmatpush1.msra.mxu0 0.0
        %3302 = vmatprep.subr.mxu0 0.0
        %3303 = vmatpush1.msra.mxu0 0.0
        %3304 = vmatprep.subr.mxu0 0.0
        %3305 = vmatpush1.msra.mxu0 0.0
        %3306 = vmatprep.subr.mxu0 0.0
        %3307 = vmatpush1.msra.mxu0 0.0
        %3308 = vmatprep.subr.mxu0 0.0
        %3309 = vmatpush1.msra.mxu0 0.0
        %3310 = vmatprep.subr.mxu0 0.0
        %3311 = vmatpush1.msra.mxu0 0.0
        %3312 = vmatprep.subr.mxu0 0.0
        %3313 = vmatpush1.msra.mxu0 0.0
        %3314 = vmatprep.subr.mxu0 0.0
        %3315 = vmatpush1.msra.mxu0 0.0
        %3316 = vmatprep.subr.mxu0 0.0
        %3317 = vmatpush1.msra.mxu0 0.0
        %3318 = vmatprep.subr.mxu0 0.0
        %3319 = vmatpush1.msra.mxu0 0.0
        %3320 = vmatprep.subr.mxu0 0.0
        %3321 = vmatpush1.msra.mxu0 0.0
        %3322 = vmatprep.subr.mxu0 0.0
        %3323 = vmatpush1.msra.mxu0 0.0
        %3324 = vmatprep.subr.mxu0 0.0
        %3325 = vmatpush1.msra.mxu0 0.0
        %3326 = vmatprep.subr.mxu0 0.0
        %3327 = vmatpush1.msra.mxu0 0.0
        %3328 = vmatprep.subr.mxu0 0.0
        %3329 = vmatpush1.msra.mxu0 0.0
        %3330 = vmatprep.subr.mxu0 0.0
        %3331 = vmatpush1.msra.mxu0 0.0
        %3332 = vmatprep.subr.mxu0 0.0
        %3333 = vmatpush1.msra.mxu0 0.0
        %3334 = vmatprep.subr.mxu0 0.0
        %3335 = vmatpush1.msra.mxu0 0.0
        %3336 = vmatprep.subr.mxu0 0.0
        %3337 = vmatpush1.msra.mxu0 0.0
        %3338 = vmatprep.subr.mxu0 0.0
        %3339 = vmatpush1.msra.mxu0 0.0
        %3340 = vmatprep.subr.mxu0 0.0
        %3341 = vmatpush1.msra.mxu0 0.0
        %3342 = vmatprep.subr.mxu0 0.0
        %3343 = vmatpush1.msra.mxu0 0.0
        %3344 = vmatprep.subr.mxu0 0.0
        %3345 = vmatpush1.msra.mxu0 0.0
        %3346 = vmatprep.subr.mxu0 0.0
        %3347 = vmatpush1.msra.mxu0 0.0
        %3348 = vmatprep.subr.mxu0 0.0
        %3349 = vmatpush1.msra.mxu0 0.0
        %3350 = vmatprep.subr.mxu0 0.0
        %3351 = vmatpush1.msra.mxu0 0.0
        %3352 = vmatprep.subr.mxu0 0.0
        %3353 = vmatpush1.msra.mxu0 0.0
        %3354 = vmatprep.subr.mxu0 0.0
        %3355 = vmatpush1.msra.mxu0 0.0
        %3356 = vmatprep.mubr.f32.mxu0 0.0
        %3357 = vmatmul.mubr.f32.gmra.mrb[0].mxu0 %v389
        %v3358 = vpop.f32.mrb[0].mxu0
        %v3359 = vadd.f32 0.0, %v3358
        %v3360 = vpop.f32.mrb[0].mxu0
        %3361 = vmatprep.mubr.f32.mxu0 0.0
        %3362 = vmatmul.mubr.f32.gmra.mrb[0].mxu0 %v392
        %v3363 = vpop.f32.mrb[0].mxu0
        %v3364 = vadd.f32 0.0, %v3363
        %v3365 = vpop.f32.mrb[0].mxu0
        %3366 = vdwg.mxu0
        %v3367 = vmul.f32 %v2758, %v2761
        %v3368 = vmul.f32 %v2759, %v2762
        %3369 = vmatprep.subr.mxu0 0.0
        %3370 = vmatpush1.msra.mxu0 %v292
        %3371 = vmatprep.subr.mxu0 0.0
        %3372 = vmatpush1.msra.mxu0 %v293
        %3373 = vmatprep.subr.mxu0 0.0
        %3374 = vmatpush1.msra.mxu0 %v294
        %3375 = vmatprep.subr.mxu0 0.0
        %3376 = vmatpush1.msra.mxu0 %v295
        %3377 = vmatprep.subr.mxu0 0.0
        %3378 = vmatpush1.msra.mxu0 %v296
        %3379 = vmatprep.subr.mxu0 0.0
        %3380 = vmatpush1.msra.mxu0 %v297
        %3381 = vmatprep.subr.mxu0 0.0
        %3382 = vmatpush1.msra.mxu0 %v298
        %3383 = vmatprep.subr.mxu0 0.0
        %3384 = vmatpush1.msra.mxu0 %v299
        %3385 = vmatprep.subr.mxu0 0.0
        %3386 = vmatpush1.msra.mxu0 %v300
        %3387 = vmatprep.subr.mxu0 0.0
        %3388 = vmatpush1.msra.mxu0 %v301
        %3389 = vmatprep.subr.mxu0 0.0
        %3390 = vmatpush1.msra.mxu0 %v302
        %3391 = vmatprep.subr.mxu0 0.0
        %3392 = vmatpush1.msra.mxu0 %v303
        %3393 = vmatprep.subr.mxu0 0.0
        %3394 = vmatpush1.msra.mxu0 %v304
        %3395 = vmatprep.subr.mxu0 0.0
        %3396 = vmatpush1.msra.mxu0 %v305
        %3397 = vmatprep.subr.mxu0 0.0
        %3398 = vmatpush1.msra.mxu0 %v306
        %3399 = vmatprep.subr.mxu0 0.0
        %3400 = vmatpush1.msra.mxu0 %v307
        %3401 = vmatprep.subr.mxu0 0.0
        %3402 = vmatpush1.msra.mxu0 0.0
        %3403 = vmatprep.subr.mxu0 0.0
        %3404 = vmatpush1.msra.mxu0 0.0
        %3405 = vmatprep.subr.mxu0 0.0
        %3406 = vmatpush1.msra.mxu0 0.0
        %3407 = vmatprep.subr.mxu0 0.0
        %3408 = vmatpush1.msra.mxu0 0.0
        %3409 = vmatprep.subr.mxu0 0.0
        %3410 = vmatpush1.msra.mxu0 0.0
        %3411 = vmatprep.subr.mxu0 0.0
        %3412 = vmatpush1.msra.mxu0 0.0
        %3413 = vmatprep.subr.mxu0 0.0
        %3414 = vmatpush1.msra.mxu0 0.0
        %3415 = vmatprep.subr.mxu0 0.0
        %3416 = vmatpush1.msra.mxu0 0.0
        %3417 = vmatprep.subr.mxu0 0.0
        %3418 = vmatpush1.msra.mxu0 0.0
        %3419 = vmatprep.subr.mxu0 0.0
        %3420 = vmatpush1.msra.mxu0 0.0
        %3421 = vmatprep.subr.mxu0 0.0
        %3422 = vmatpush1.msra.mxu0 0.0
        %3423 = vmatprep.subr.mxu0 0.0
        %3424 = vmatpush1.msra.mxu0 0.0
        %3425 = vmatprep.subr.mxu0 0.0
        %3426 = vmatpush1.msra.mxu0 0.0
        %3427 = vmatprep.subr.mxu0 0.0
        %3428 = vmatpush1.msra.mxu0 0.0
        %3429 = vmatprep.subr.mxu0 0.0
        %3430 = vmatpush1.msra.mxu0 0.0
        %3431 = vmatprep.subr.mxu0 0.0
        %3432 = vmatpush1.msra.mxu0 0.0
        %3433 = vmatprep.mubr.f32.mxu0 0.0
        %3434 = vmatmul.mubr.f32.gmra.mrb[0].mxu0 %v3367
        %v3435 = vpop.f32.mrb[0].mxu0
        %v3436 = vadd.f32 0.0, %v3435
        %v3437 = vpop.f32.mrb[0].mxu0
        %3438 = vmatprep.mubr.f32.mxu0 0.0
        %3439 = vmatmul.mubr.f32.gmra.mrb[0].mxu0 %v3368
        %v3440 = vpop.f32.mrb[0].mxu0
        %v3441 = vadd.f32 0.0, %v3440
        %v3442 = vpop.f32.mrb[0].mxu0
        %3443 = vdwg.mxu0
        %3444 = vmatprep.subr.mxu0 0.0
        %3445 = vmatpush1.msra.mxu0 %v3436
        %3446 = vmatprep.subr.mxu0 0.0
        %3447 = vmatpush1.msra.mxu0 %v3441
        %3448 = vmatprep.subr.mxu0 0.0
        %3449 = vmatpush1.msra.mxu0 0.0
        %3450 = vmatprep.subr.mxu0 0.0
        %3451 = vmatpush1.msra.mxu0 0.0
        %3452 = vmatprep.subr.mxu0 0.0
        %3453 = vmatpush1.msra.mxu0 0.0
        %3454 = vmatprep.subr.mxu0 0.0
        %3455 = vmatpush1.msra.mxu0 0.0
        %3456 = vmatprep.subr.mxu0 0.0
        %3457 = vmatpush1.msra.mxu0 0.0
        %3458 = vmatprep.subr.mxu0 0.0
        %3459 = vmatpush1.msra.mxu0 0.0
        %3460 = vmatprep.subr.mxu0 0.0
        %3461 = vmatpush1.msra.mxu0 0.0
        %3462 = vmatprep.subr.mxu0 0.0
        %3463 = vmatpush1.msra.mxu0 0.0
        %3464 = vmatprep.subr.mxu0 0.0
        %3465 = vmatpush1.msra.mxu0 0.0
        %3466 = vmatprep.subr.mxu0 0.0
        %3467 = vmatpush1.msra.mxu0 0.0
        %3468 = vmatprep.subr.mxu0 0.0
        %3469 = vmatpush1.msra.mxu0 0.0
        %3470 = vmatprep.subr.mxu0 0.0
        %3471 = vmatpush1.msra.mxu0 0.0
        %3472 = vmatprep.subr.mxu0 0.0
        %3473 = vmatpush1.msra.mxu0 0.0
        %3474 = vmatprep.subr.mxu0 0.0
        %3475 = vmatpush1.msra.mxu0 0.0
        %3476 = vmatprep.subr.mxu0 0.0
        %3477 = vmatpush1.msra.mxu0 0.0
        %3478 = vmatprep.subr.mxu0 0.0
        %3479 = vmatpush1.msra.mxu0 0.0
        %3480 = vmatprep.subr.mxu0 0.0
        %3481 = vmatpush1.msra.mxu0 0.0
        %3482 = vmatprep.subr.mxu0 0.0
        %3483 = vmatpush1.msra.mxu0 0.0
        %3484 = vmatprep.subr.mxu0 0.0
        %3485 = vmatpush1.msra.mxu0 0.0
        %3486 = vmatprep.subr.mxu0 0.0
        %3487 = vmatpush1.msra.mxu0 0.0
        %3488 = vmatprep.subr.mxu0 0.0
        %3489 = vmatpush1.msra.mxu0 0.0
        %3490 = vmatprep.subr.mxu0 0.0
        %3491 = vmatpush1.msra.mxu0 0.0
        %3492 = vmatprep.subr.mxu0 0.0
        %3493 = vmatpush1.msra.mxu0 0.0
        %3494 = vmatprep.subr.mxu0 0.0
        %3495 = vmatpush1.msra.mxu0 0.0
        %3496 = vmatprep.subr.mxu0 0.0
        %3497 = vmatpush1.msra.mxu0 0.0
        %3498 = vmatprep.subr.mxu0 0.0
        %3499 = vmatpush1.msra.mxu0 0.0
        %3500 = vmatprep.subr.mxu0 0.0
        %3501 = vmatpush1.msra.mxu0 0.0
        %3502 = vmatprep.subr.mxu0 0.0
        %3503 = vmatpush1.msra.mxu0 0.0
        %3504 = vmatprep.subr.mxu0 0.0
        %3505 = vmatpush1.msra.mxu0 0.0
        %3506 = vmatprep.subr.mxu0 0.0
        %3507 = vmatpush1.msra.mxu0 0.0
        %3508 = vmatprep.mubr.f32.mxu0 0.0
        %3509 = vmatmul.mubr.f32.gmra.mrb[0].mxu0 %v389
        %v3510 = vpop.f32.mrb[0].mxu0
        %v3511 = vadd.f32 0.0, %v3510
        %v3512 = vpop.f32.mrb[0].mxu0
        %3513 = vmatprep.mubr.f32.mxu0 0.0
        %3514 = vmatmul.mubr.f32.gmra.mrb[0].mxu0 %v392
        %v3515 = vpop.f32.mrb[0].mxu0
        %v3516 = vadd.f32 0.0, %v3515
        %v3517 = vpop.f32.mrb[0].mxu0
        %3518 = vdwg.mxu0
        %v3519 = vmul.f32 %v2905, %v2905
        %v3520 = vmul.f32 %v2910, %v2910
        %v3521 = vmul.f32 %v3055, %v3055
        %v3522 = vmul.f32 %v3060, %v3060
        %v3523 = vmul.f32 %v2905, %v3055
        %v3524 = vmul.f32 %v2910, %v3060
        %v3525 = vsub.f32 %v3207, %v3519
        %v3526 = vsub.f32 %v3212, %v3520
        %v3527 = vsub.f32 %v3359, %v3521
        %v3528 = vsub.f32 %v3364, %v3522
        %v3529 = vsub.f32 %v3511, %v3523
        %v3530 = vsub.f32 %v3516, %v3524
        %v3531 = vmul.f32 %v3523, 2.0
        %v3532 = vmul.f32 %v3524, 2.0
        %v3533 = vadd.f32 %v3531, 0.0001
        %v3534 = vadd.f32 %v3532, 0.0001
        %v3535 = vmul.f32 %v3529, 2.0
        %v3536 = vmul.f32 %v3530, 2.0
        %v3537 = vadd.f32 %v3535, 0.0009
        %v3538 = vadd.f32 %v3536, 0.0009
        %v3539 = vmul.f32 %v3533, %v3537
        %v3540 = vmul.f32 %v3534, %v3538
        %v3541 = vadd.f32 %v3519, %v3521
        %v3542 = vadd.f32 %v3520, %v3522
        %v3543 = vadd.f32 %v3541, 0.0001
        %v3544 = vadd.f32 %v3542, 0.0001
        %v3545 = vadd.f32 %v3525, %v3527
        %v3546 = vadd.f32 %v3526, %v3528
        %v3547 = vadd.f32 %v3545, 0.0009
        %v3548 = vadd.f32 %v3546, 0.0009
        %v3549 = vmul.f32 %v3543, %v3547
        %v3550 = vmul.f32 %v3544, %v3548
        %v3551 = vrcp.pop %v3549
        %v3552 = vrcp.pop %v3550
        %v3553 = vmul.f32 %v3549, %v3551
        %v3554 = vmul.f32 %v3550, %v3552
        %v3555 = vsub.f32 2.0, %v3553
        %v3556 = vsub.f32 2.0, %v3554
        %v3557 = vmul.f32 %v3551, %v3555
        %v3558 = vmul.f32 %v3552, %v3556
        %v3559 = vmul.f32 %v3539, %v3557
        %v3560 = vmul.f32 %v3540, %v3558
        %v3561 = vsub.f32 1.0, %v3559
        %v3562 = vsub.f32 1.0, %v3560
        %v3563 = vmax.f32 %v3561, 0.0
        %v3564 = vmax.f32 %v3562, 0.0
        %v3565 = vmin.f32 %v3563, 1.0
        %v3566 = vmin.f32 %v3564, 1.0
        %v3567 = vmul.f32 %v3565, 0.5
        %v3568 = vmul.f32 %v3566, 0.5
        %s3569 = scalar_lea.vmem %s286, 48 [#allocation10]
        %3570 = vst [vmem:[%s3569] sm:$0xff] %v3567
        %3571 = vst [vmem:[%s3569 + $0x8] sm:$0xff] %v3568
        %s3572 = sand.u32 %s127, 1
        %s3573 = scalar_lea.sflag [#allocation4], %s3572
        %s3574 = sand.u32 %s127, 1
        %s3575 = smul.addr %s3574, 64
        %s3576 = scalar_lea.vmem [#allocation10], %s3575
        // Predicated region
        $region53: #{tpu_custom_call.1} parent=35 // pred_check
          %p3577 = pneg %p137
        $region54: #{tpu_custom_call.1} parent=35 // pred_check_branch
          %3579 = sbr.rel (%p3577) target = $region56
        $region55: #{tpu_custom_call.1} parent=35 // pred_region
          %s3580 = smul.u32 4, %s25
          %s3582 = ssub.s32 1024, 1024
          %3583 = vsyncadd %s3573, %s3582
          %s3584 = smul.addr %s3580, 2
          %s3585 = smul.addr %s3584, 128
          %s3586 = scalar_lea.hbm %s4, %s3585
          %s3587 = sshll.u32 %s3576, 4
          %s3588 = int_to_ptr.vmem [resolvable:$true] %s3587
          %3593 = dma.vmem_to_hbm [thread:$0]  %s3588, 1024, %s3586, %s3573, 128, 128, 8
        $region56: #{tpu_custom_call.1} parent=35 // pred_fallthru
          _
      $region36: #{tpu_custom_call.1} parent=5 // pred_fallthru
        _
      %p3594 = scmp.le.s32.totalorder 2, %s20
      // Predicated region
      $region57: #{tpu_custom_call.1} parent=5 // pred_check
        %p3595 = pneg %p3594
      $region58: #{tpu_custom_call.1} parent=5 // pred_check_branch
        %3597 = sbr.rel (%p3595) target = $region60
      $region59: #{tpu_custom_call.1} parent=5 // pred_region
        %s3598 = ssub.s32 %s20, 2
        // Predicated region
        $region61: #{tpu_custom_call.1} parent=59 // pred_check
          %p3599 = pneg %p143
        $region62: #{tpu_custom_call.1} parent=59 // pred_check_branch
          %3601 = sbr.rel (%p3599) target = $region64
        $region63: #{tpu_custom_call.1} parent=59 // pred_region
          %s3602 = sand.u32 %s128, 1
          %s3603 = scalar_lea.sflag [#allocation4], %s3602
          %s3604 = sand.u32 %s128, 1
          %s3605 = smul.addr %s3604, 64
          %s3606 = scalar_lea.vmem [#allocation10], %s3605
          %3607 = dma.done %s3603, 1024
        $region64: #{tpu_custom_call.1} parent=59 // pred_fallthru
          _
      $region60: #{tpu_custom_call.1} parent=5 // pred_fallthru
        _
    $region6: #{tpu_custom_call.1} parent=1 // loop_footer
      %s24 = sadd.s32 1, %s20
    $region7: #{tpu_custom_call.1} parent=1 // loop_footer_branch
      %19 = sbr.rel target = $region3
    $region8: #{tpu_custom_call.1} parent=1 // loop_exit
      _
    %3608 = vsyncpa [#allocation3], 1
    %s3609 = scalar_lea.sflag [#allocation3], 1
    %3610 = vsyncpa %s3609, 1
    %3611 = vsyncpa [#allocation6], 1
    %s3612 = scalar_lea.sflag [#allocation6], 1
    %3613 = vsyncpa %s3612, 1
    %3614 = vsyncpa [#allocation9], 1
    %3615 = vsyncpa [#allocation4], 1
    %s3616 = scalar_lea.sflag [#allocation4], 1
    %3617 = vsyncpa %s3616, 1

</llo_original>
